<compile_context>
chip_gen: v6e
topology: v6e:2x2x1
jax: 0.10.0
libtpu: 0.0.40
codegen_flags: <defaults>
</compile_context>

<pallas_src>
import functools

import jax
import jax.numpy as jnp
import numpy as np
from jax.experimental import pallas as pl
from jax.experimental.pallas import tpu as pltpu


def _layer_norm(x, w, b, eps=1e-5):
    mu = jnp.mean(x, axis=-1, keepdims=True)
    var = jnp.mean(jnp.square(x - mu), axis=-1, keepdims=True)
    return (x - mu) * jax.lax.rsqrt(var + eps) * w + b


# ---------------------------------------------------------------------------
# Kernel A: full spatial-attention branch for one batch item per grid step.
#   grid = (b,), block = (n, m) in the ORIGINAL token layout.
# ---------------------------------------------------------------------------
def _attn_kernel(*refs, t, p, num_heads, head_dim, mask_mode):
    if mask_mode:
        (x_ref, mask_ref, lnw_ref, lnb_ref, wqkv_ref, bqkv_ref,
         wo_ref, bo_ref, o_ref) = refs
    else:
        (x_ref, lnw_ref, lnb_ref, wqkv_ref, bqkv_ref,
         wo_ref, bo_ref, o_ref) = refs
        mask_ref = None

    m = num_heads * head_dim
    L = p + 1
    cdt = wqkv_ref.dtype                               # bf16 MXU operand dtype

    x = x_ref[...].astype(jnp.float32)                 # (n, m), n = 1 + p*t

    # 'b (p t) m -> (b t) p m' + cls broadcast, entirely in VMEM.
    frames = jnp.transpose(x[1:, :].reshape(p, t, m), (1, 0, 2))       # (t, p, m)
    cls_b = jnp.broadcast_to(x[0:1, :].reshape(1, 1, m), (t, 1, m))
    xs = jnp.concatenate([cls_b, frames], axis=1)                      # (t, L, m)

    xn = _layer_norm(xs, lnw_ref[...], lnb_ref[...])
    xn2 = xn.reshape(t * L, m).astype(cdt)

    # Fused QKV projection (q-scale folded into wq/bq at pack time); cast the
    # (t*L, 3m) intermediate to bf16 right after the bias add.
    qkv = (jnp.dot(xn2, wqkv_ref[...], preferred_element_type=jnp.float32)
           + bqkv_ref[...]).astype(cdt)                                # (t*L, 3m)

    def split_heads(z):      # (t*L, m) -> (H*t, L, d); batch index = h*t + frame
        z = z.reshape(t * L, num_heads, head_dim)
        z = jnp.transpose(z, (1, 0, 2))                                # (H, t*L, d)
        return z.reshape(num_heads * t, L, head_dim)

    q = split_heads(qkv[:, :m])
    k = split_heads(qkv[:, m:2 * m])
    v = split_heads(qkv[:, 2 * m:])

    # Head-batched scores / context: one batch dim (H*t), the robust Mosaic path.
    s = jnp.einsum('bqd,bkd->bqk', q, k,
                   preferred_element_type=jnp.float32)                 # (H*t, L, L)
    if mask_mode == 1:            # one additive (L, L) mask shared by this step
        s = s + mask_ref[...]
    elif mask_mode == 2:          # per-frame additive (t, L, L) mask
        s = (s.reshape(num_heads, t, L, L)
             + mask_ref[...][None]).reshape(num_heads * t, L, L)

    s = s - jnp.max(s, axis=-1, keepdims=True)
    e = jnp.exp(s)
    # NOTE: approx reciprocal (~1e-3 rel err) is inside the test tolerance.
    probs = e * pl.reciprocal(jnp.sum(e, axis=-1, keepdims=True), approx=True)

    ctx = jnp.einsum('bqk,bkd->bqd', probs.astype(cdt), v,
                     preferred_element_type=jnp.float32)               # (H*t, L, d)
    ctx = ctx.astype(cdt).reshape(num_heads, t * L, head_dim)
    ctx = jnp.transpose(ctx, (1, 0, 2)).reshape(t * L, m)

    out = (jnp.dot(ctx, wo_ref[...], preferred_element_type=jnp.float32)
           + bo_ref[...]).reshape(t, L, m)

    # cls-mean over frames + '(b t) p m -> b (p t) m', written straight back in
    # the original token layout so Kernel B consumes it with a free reshape.
    cls_out = jnp.mean(out[:, 0:1, :], axis=0)                         # (1, m)
    pat_out = jnp.transpose(out[:, 1:, :], (1, 0, 2)).reshape(p * t, m)
    o_ref[...] = jnp.concatenate([cls_out, pat_out], axis=0).astype(o_ref.dtype)


# ---------------------------------------------------------------------------
# Kernel B: residual add + LayerNorm2 + CLIPMLP (quick_gelu) + residual.
#   grid = (token_tiles,), fc1/fc2 resident in VMEM (constant index maps).
# ---------------------------------------------------------------------------
def _mlp_kernel(res_ref, attn_ref, lnw_ref, lnb_ref,
                w1_ref, b1_ref, w2_ref, b2_ref, o_ref):
    cdt = w1_ref.dtype
    h = res_ref[...].astype(jnp.float32) + attn_ref[...].astype(jnp.float32)
    hn = _layer_norm(h, lnw_ref[...], lnb_ref[...]).astype(cdt)
    f = jnp.dot(hn, w1_ref[...], preferred_element_type=jnp.float32) + b1_ref[...]
    f = f * jax.nn.sigmoid(1.702 * f)                                  # quick_gelu
    o = jnp.dot(f.astype(cdt), w2_ref[...],
                preferred_element_type=jnp.float32) + b2_ref[...]
    o_ref[...] = (h + o).astype(o_ref.dtype)


# ---------------------------------------------------------------------------
# Parameter packing (done once, outside the per-call path).
# ---------------------------------------------------------------------------
def pack_params(params, num_heads, weight_dtype=jnp.bfloat16):
    m = params["wq"].shape[0]
    inter = params["w1"].shape[1]
    scale = (m // num_heads) ** -0.5                   # fold q-scale into weights
    wqkv = jnp.concatenate(
        [params["wq"] * scale, params["wk"], params["wv"]], axis=1)
    bqkv = jnp.concatenate(
        [params["bq"] * scale, params["bk"], params["bv"]]).reshape(1, 3 * m)
    f32 = jnp.float32
    return dict(
        ln1_w=params["ln1_w"].reshape(1, m).astype(f32),
        ln1_b=params["ln1_b"].reshape(1, m).astype(f32),
        ln2_w=params["ln2_w"].reshape(1, m).astype(f32),
        ln2_b=params["ln2_b"].reshape(1, m).astype(f32),
        wqkv=wqkv.astype(weight_dtype), bqkv=bqkv.astype(f32),
        wo=params["wo"].astype(weight_dtype), bo=params["bo"].reshape(1, m).astype(f32),
        w1=params["w1"].astype(weight_dtype), b1=params["b1"].reshape(1, inter).astype(f32),
        w2=params["w2"].astype(weight_dtype), b2=params["b2"].reshape(1, m).astype(f32),
    )


# ---------------------------------------------------------------------------
# Wrapper.
# ---------------------------------------------------------------------------
@functools.partial(jax.jit, static_argnames=("t", "num_heads"))
def clip_layer_spatial(hidden_states, packed, *, t, num_heads,
                       attention_mask=None, causal_attention_mask=None):
    b, n, m = hidden_states.shape
    pt = n - 1
    assert pt % t == 0, "token count (n - 1) must be divisible by t"
    p = pt // t
    L = 1 + p
    head_dim = m // num_heads
    inter = packed["w1"].shape[1]
    wbytes = packed["wqkv"].dtype.itemsize
    xbytes = hidden_states.dtype.itemsize

    # --- additive attention mask, kept at its natural leading size -----------
    mask_arr, mask_mode, mask_spec = None, 0, None
    masks = [mm for mm in (causal_attention_mask, attention_mask) if mm is not None]
    if masks:
        comb = None
        for mm in masks:
            mm = jnp.asarray(mm, jnp.float32).reshape(-1, L, L)
            comb = mm if comb is None else comb + mm
        lead = comb.shape[0]
        if lead == 1:
            mask_arr, mask_mode = comb, 1
            mask_spec = pl.BlockSpec((None, L, L), lambda i: (0, 0, 0))
        elif lead == b:
            mask_arr, mask_mode = comb, 1
            mask_spec = pl.BlockSpec((None, L, L), lambda i: (i, 0, 0))
        elif lead == b * t:                      # per-frame, ordered (b t)
            mask_arr, mask_mode = comb.reshape(b, t, L, L), 2
            mask_spec = pl.BlockSpec((None, t, L, L), lambda i: (i, 0, 0, 0))
        else:
            raise ValueError(f"unsupported mask leading dim {lead}")

    # --- Kernel A: spatial self-attention, one batch item per step -----------
    in_specs = [pl.BlockSpec((None, n, m), lambda i: (i, 0, 0))]
    inputs = [hidden_states]
    if mask_mode:
        in_specs.append(mask_spec)
        inputs.append(mask_arr)
    in_specs += [
        pl.BlockSpec((1, m), lambda i: (0, 0)),         # ln1 weight
        pl.BlockSpec((1, m), lambda i: (0, 0)),         # ln1 bias
        pl.BlockSpec((m, 3 * m), lambda i: (0, 0)),     # fused qkv weight (bf16)
        pl.BlockSpec((1, 3 * m), lambda i: (0, 0)),     # fused qkv bias
        pl.BlockSpec((m, m), lambda i: (0, 0)),         # out_proj weight (bf16)
        pl.BlockSpec((1, m), lambda i: (0, 0)),         # out_proj bias
    ]
    inputs += [packed["ln1_w"], packed["ln1_b"], packed["wqkv"], packed["bqkv"],
               packed["wo"], packed["bo"]]

    attn_cost = pl.CostEstimate(
        flops=int(b * (2 * t * L * m * 4 * m + 4 * t * L * L * m)),
        transcendentals=int(b * num_heads * t * L * L),
        bytes_accessed=int(b * n * m * (xbytes + 2) + 4 * m * m * wbytes
                           + (0 if mask_arr is None else mask_arr.size * 4)),
    )
    est_a = int(2 * n * m * xbytes + 2 * n * m * 2 + 2 * 4 * m * m * wbytes
                + t * L * 3 * m * 6 + 3 * num_heads * t * L * L * 4
                + num_heads * t * L * head_dim * 6 + t * L * m * 8)
    vmem_a = int(min(max(est_a * 3 // 2, 32 << 20), 48 << 20))   # <= v7x physical

    attn_out = pl.pallas_call(
        functools.partial(_attn_kernel, t=t, p=p, num_heads=num_heads,
                          head_dim=head_dim, mask_mode=mask_mode),
        out_shape=jax.ShapeDtypeStruct((b, n, m), jnp.bfloat16),
        grid=(b,),
        in_specs=in_specs,
        out_specs=pl.BlockSpec((None, n, m), lambda i: (i, 0, 0)),
        compiler_params=pltpu.CompilerParams(
            dimension_semantics=("parallel",), vmem_limit_bytes=vmem_a),
        cost_estimate=attn_cost,
    )(*inputs)

    # --- Kernel B: residual + LN2 + MLP + residual, resident weights ---------
    tokens = b * n
    res_flat = hidden_states.reshape(tokens, m)         # free reshapes (no copies)
    attn_flat = attn_out.reshape(tokens, m)

    TN = min(512, tokens)                               # token tile
    n_tt = pl.cdiv(tokens, TN)

    mlp_cost = pl.CostEstimate(
        flops=int(4 * tokens * m * inter),
        transcendentals=int(tokens * inter),
        bytes_accessed=int(tokens * m * (2 * xbytes + 2) + 2 * m * inter * wbytes),
    )
    est_b = int(2 * TN * m * (2 * xbytes + 2) + 4 * m * inter * wbytes
                + 2 * TN * inter * 4)
    vmem_b = int(min(max(est_b * 3 // 2, 32 << 20), 48 << 20))

    out_flat = pl.pallas_call(
        _mlp_kernel,
        out_shape=jax.ShapeDtypeStruct((tokens, m), hidden_states.dtype),
        grid=(n_tt,),
        in_specs=[
            pl.BlockSpec((TN, m), lambda i: (i, 0)),    # residual tokens
            pl.BlockSpec((TN, m), lambda i: (i, 0)),    # attention-branch tokens
            pl.BlockSpec((1, m), lambda i: (0, 0)),     # ln2 weight
            pl.BlockSpec((1, m), lambda i: (0, 0)),     # ln2 bias
            pl.BlockSpec((m, inter), lambda i: (0, 0)),  # fc1 weight (resident)
            pl.BlockSpec((1, inter), lambda i: (0, 0)),  # fc1 bias
            pl.BlockSpec((inter, m), lambda i: (0, 0)),  # fc2 weight (resident)
            pl.BlockSpec((1, m), lambda i: (0, 0)),      # fc2 bias
        ],
        out_specs=pl.BlockSpec((TN, m), lambda i: (i, 0)),
        compiler_params=pltpu.CompilerParams(
            dimension_semantics=("parallel",), vmem_limit_bytes=vmem_b),
        cost_estimate=mlp_cost,
    )(res_flat, attn_flat, packed["ln2_w"], packed["ln2_b"],
      packed["w1"], packed["b1"], packed["w2"], packed["b2"])

    return out_flat.reshape(b, n, m)


# ---------------------------------------------------------------------------
# Pure-JAX f32 reference (same math) for correctness checking.
# ---------------------------------------------------------------------------
def reference(hidden_states, params, t):
    b, n, m = hidden_states.shape
    pt = n - 1
    p = pt // t
    bt = b * t
    H = params["num_heads"]
    hd = m // H
    L = 1 + p

    query_s = hidden_states[:, 1:, :].reshape(b, p, t, m).transpose(0, 2, 1, 3).reshape(bt, p, m)
    cls_tok = jnp.broadcast_to(hidden_states[:, :1, :][:, None], (b, t, 1, m)).reshape(bt, 1, m)
    x = jnp.concatenate([cls_tok, query_s], axis=1)
    xn = _layer_norm(x, params["ln1_w"], params["ln1_b"])

    scale = hd ** -0.5
    q = (xn @ params["wq"] + params["bq"]) * scale
    k = xn @ params["wk"] + params["bk"]
    v = xn @ params["wv"] + params["bv"]
    q = q.reshape(bt, L, H, hd).transpose(0, 2, 1, 3)
    k = k.reshape(bt, L, H, hd).transpose(0, 2, 1, 3)
    v = v.reshape(bt, L, H, hd).transpose(0, 2, 1, 3)
    s = jnp.einsum('bhld,bhkd->bhlk', q, k)
    a = jax.nn.softmax(s, axis=-1)
    ctx = jnp.einsum('bhlk,bhkd->bhld', a, v).transpose(0, 2, 1, 3).reshape(bt, L, m)
    attn_out = ctx @ params["wo"] + params["bo"]

    cls_out = jnp.mean(attn_out[:, :1, :].reshape(b, t, 1, m), axis=1)
    rest = attn_out[:, 1:, :].reshape(b, t, p, m).transpose(0, 2, 1, 3).reshape(b, pt, m)
    h = hidden_states + jnp.concatenate([cls_out, rest], axis=1)

    hn = _layer_norm(h, params["ln2_w"], params["ln2_b"])
    f = hn @ params["w1"] + params["b1"]
    f = f * jax.nn.sigmoid(1.702 * f)
    return h + f @ params["w2"] + params["b2"]


def init_params(key, m, intermediate, num_heads):
    ks = jax.random.split(key, 8)
    rnd = lambda k, shape: (0.02 * jax.random.normal(k, shape)).astype(jnp.float32)
    return dict(
        num_heads=num_heads,
        ln1_w=jnp.ones((m,), jnp.float32), ln1_b=jnp.zeros((m,), jnp.float32),
        ln2_w=jnp.ones((m,), jnp.float32), ln2_b=jnp.zeros((m,), jnp.float32),
        wq=rnd(ks[0], (m, m)), bq=rnd(ks[1], (m,)),
        wk=rnd(ks[2], (m, m)), bk=jnp.zeros((m,), jnp.float32),
        wv=rnd(ks[3], (m, m)), bv=jnp.zeros((m,), jnp.float32),
        wo=rnd(ks[4], (m, m)), bo=jnp.zeros((m,), jnp.float32),
        w1=rnd(ks[5], (m, intermediate)), b1=jnp.zeros((intermediate,), jnp.float32),
        w2=rnd(ks[6], (intermediate, m)), b2=jnp.zeros((m,), jnp.float32),
    )


if __name__ == "__main__":
    # Small shapes consistent with the module: b=2 clips, t=2 frames, p=8 patches
    # per frame, hidden=256 with 2 heads (head_dim=128), MLP intermediate=512.
    b, t, p, m, heads, inter = 2, 2, 8, 256, 2, 512
    n = 1 + p * t                                       # 17 tokens: cls + p*t
    key = jax.random.PRNGKey(0)
    kx, kp = jax.random.split(key)
    hidden_states = jax.random.normal(kx, (b, n, m), jnp.float32)
    params = init_params(kp, m, inter, heads)
    packed = pack_params(params, num_heads=heads)       # bf16 weights, f32 LN/bias

    out = clip_layer_spatial(hidden_states, packed, t=t, num_heads=heads)  # masks: None
    out = jax.block_until_ready(out)

    ref = reference(hidden_states, params, t)
    assert out.shape == (b, n, m)
    np.testing.assert_allclose(np.asarray(out), np.asarray(ref), rtol=2e-2, atol=2e-2)
    print("KERNEL_OK")
</pallas_src>

<mosaic_0001>
module attributes {stable_mosaic.version = 11 : i64} {
  func.func @_attn_kernel(%arg0: i32, %arg1: memref<1x17x256xf32, #tpu.memory_space<vmem>>, %arg2: memref<1x256xf32, #tpu.memory_space<vmem>>, %arg3: memref<1x256xf32, #tpu.memory_space<vmem>>, %arg4: memref<256x768xbf16, #tpu.memory_space<vmem>>, %arg5: memref<1x768xf32, #tpu.memory_space<vmem>>, %arg6: memref<256x256xbf16, #tpu.memory_space<vmem>>, %arg7: memref<1x256xf32, #tpu.memory_space<vmem>>, %arg8: memref<1x17x256xbf16, #tpu.memory_space<vmem>>) attributes {dimension_semantics = [#tpu.dimension_semantics<parallel>], iteration_bounds = array<i64: 2>, scalar_prefetch = 0 : i64, scratch_operands = 0 : i64, tpu.core_type = #tpu.core_type<tc>, window_params = [{transform_indices = @transform_0, window_bounds = array<i64: 1, 17, 256>}, {pipeline_mode = #tpu.pipeline_mode<synchronous>, transform_indices = @transform_1, window_bounds = array<i64: 1, 256>}, {pipeline_mode = #tpu.pipeline_mode<synchronous>, transform_indices = @transform_2, window_bounds = array<i64: 1, 256>}, {pipeline_mode = #tpu.pipeline_mode<synchronous>, transform_indices = @transform_3, window_bounds = array<i64: 256, 768>}, {pipeline_mode = #tpu.pipeline_mode<synchronous>, transform_indices = @transform_4, window_bounds = array<i64: 1, 768>}, {pipeline_mode = #tpu.pipeline_mode<synchronous>, transform_indices = @transform_5, window_bounds = array<i64: 256, 256>}, {pipeline_mode = #tpu.pipeline_mode<synchronous>, transform_indices = @transform_6, window_bounds = array<i64: 1, 256>}, {transform_indices = @transform_7, window_bounds = array<i64: 1, 17, 256>}]} {
    %c0 = arith.constant 0 : index
    %c0_0 = arith.constant 0 : index
    %c0_1 = arith.constant 0 : index
    %0 = vector.load %arg1[%c0, %c0_0, %c0_1] : memref<1x17x256xf32, #tpu.memory_space<vmem>>, vector<1x17x256xf32>
    %1 = vector.shape_cast %0 : vector<1x17x256xf32> to vector<17x256xf32>
    %2 = vector.extract_strided_slice %1 {offsets = [1, 0], sizes = [16, 256], strides = [1, 1]} : vector<17x256xf32> to vector<16x256xf32>
    %3 = vector.shape_cast %2 : vector<16x256xf32> to vector<8x2x256xf32>
    %4 = tpu.transpose %3, [1, 0, 2] : vector<8x2x256xf32> -> vector<2x8x256xf32>
    %5 = vector.extract_strided_slice %1 {offsets = [0, 0], sizes = [1, 256], strides = [1, 1]} : vector<17x256xf32> to vector<1x256xf32>
    %6 = vector.shape_cast %5 : vector<1x256xf32> to vector<1x1x256xf32>
    %7 = vector.shape_cast %6 : vector<1x1x256xf32> to vector<1x1x256xf32>
    %8 = vector.broadcast %7 : vector<1x1x256xf32> to vector<2x1x256xf32>
    %9 = tpu.concatenate %8, %4 in 1 : vector<2x1x256xf32>, vector<2x8x256xf32> -> vector<2x9x256xf32>
    %c0_2 = arith.constant 0 : index
    %c0_3 = arith.constant 0 : index
    %10 = vector.load %arg2[%c0_2, %c0_3] : memref<1x256xf32, #tpu.memory_space<vmem>>, vector<1x256xf32>
    %c0_4 = arith.constant 0 : index
    %c0_5 = arith.constant 0 : index
    %11 = vector.load %arg3[%c0_4, %c0_5] : memref<1x256xf32, #tpu.memory_space<vmem>>, vector<1x256xf32>
    %cst = arith.constant dense<0.000000e+00> : vector<2x9xf32>
    %12 = vector.multi_reduction <add>, %9, %cst [2] : vector<2x9x256xf32> to vector<2x9xf32>
    %13 = vector.shape_cast %12 : vector<2x9xf32> to vector<2x9x1xf32>
    %cst_6 = arith.constant 2.560000e+02 : f32
    %14 = vector.broadcast %cst_6 : f32 to vector<2x9x1xf32>
    %15 = arith.divf %13, %14 : vector<2x9x1xf32>
    %16 = vector.broadcast %15 : vector<2x9x1xf32> to vector<2x9x256xf32>
    %17 = arith.subf %9, %16 : vector<2x9x256xf32>
    %18 = arith.mulf %17, %17 : vector<2x9x256xf32>
    %cst_7 = arith.constant dense<0.000000e+00> : vector<2x9xf32>
    %19 = vector.multi_reduction <add>, %18, %cst_7 [2] : vector<2x9x256xf32> to vector<2x9xf32>
    %20 = vector.shape_cast %19 : vector<2x9xf32> to vector<2x9x1xf32>
    %cst_8 = arith.constant 2.560000e+02 : f32
    %21 = vector.broadcast %cst_8 : f32 to vector<2x9x1xf32>
    %22 = arith.divf %20, %21 : vector<2x9x1xf32>
    %23 = vector.broadcast %15 : vector<2x9x1xf32> to vector<2x9x256xf32>
    %24 = arith.subf %9, %23 : vector<2x9x256xf32>
    %cst_9 = arith.constant 9.99999974E-6 : f32
    %25 = vector.broadcast %cst_9 : f32 to vector<2x9x1xf32>
    %26 = arith.addf %22, %25 : vector<2x9x1xf32>
    %27 = math.rsqrt %26 : vector<2x9x1xf32>
    %28 = vector.broadcast %27 : vector<2x9x1xf32> to vector<2x9x256xf32>
    %29 = arith.mulf %24, %28 : vector<2x9x256xf32>
    %30 = vector.shape_cast %10 : vector<1x256xf32> to vector<1x1x256xf32>
    %31 = vector.broadcast %30 : vector<1x1x256xf32> to vector<2x9x256xf32>
    %32 = arith.mulf %29, %31 : vector<2x9x256xf32>
    %33 = vector.shape_cast %11 : vector<1x256xf32> to vector<1x1x256xf32>
    %34 = vector.broadcast %33 : vector<1x1x256xf32> to vector<2x9x256xf32>
    %35 = arith.addf %32, %34 : vector<2x9x256xf32>
    %36 = vector.shape_cast %35 : vector<2x9x256xf32> to vector<18x256xf32>
    %37 = arith.truncf %36 : vector<18x256xf32> to vector<18x256xbf16>
    %c0_10 = arith.constant 0 : index
    %c0_11 = arith.constant 0 : index
    %38 = vector.load %arg4[%c0_10, %c0_11] : memref<256x768xbf16, #tpu.memory_space<vmem>>, vector<256x768xbf16>
    %cst_12 = arith.constant dense<0.000000e+00> : vector<18x768xf32>
    %39 = tpu.matmul %37, %38, %cst_12 {dimension_numbers = #tpu.dot_dimension_numbers<[1], [0], [0], [1], [0, 0, 1, 1], [], []>} : vector<18x256xbf16>, vector<256x768xbf16>, vector<18x768xf32> -> vector<18x768xf32>
    %c0_13 = arith.constant 0 : index
    %c0_14 = arith.constant 0 : index
    %40 = vector.load %arg5[%c0_13, %c0_14] : memref<1x768xf32, #tpu.memory_space<vmem>>, vector<1x768xf32>
    %41 = vector.broadcast %40 : vector<1x768xf32> to vector<18x768xf32>
    %42 = arith.addf %39, %41 : vector<18x768xf32>
    %43 = arith.truncf %42 : vector<18x768xf32> to vector<18x768xbf16>
    %44 = vector.extract_strided_slice %43 {offsets = [0, 0], sizes = [18, 256], strides = [1, 1]} : vector<18x768xbf16> to vector<18x256xbf16>
    %45 = vector.shape_cast %44 : vector<18x256xbf16> to vector<18x2x128xbf16>
    %46 = tpu.transpose %45, [1, 0, 2] : vector<18x2x128xbf16> -> vector<2x18x128xbf16>
    %47 = vector.shape_cast %46 : vector<2x18x128xbf16> to vector<4x9x128xbf16>
    %48 = vector.extract_strided_slice %43 {offsets = [0, 256], sizes = [18, 256], strides = [1, 1]} : vector<18x768xbf16> to vector<18x256xbf16>
    %49 = vector.shape_cast %48 : vector<18x256xbf16> to vector<18x2x128xbf16>
    %50 = tpu.transpose %49, [1, 0, 2] : vector<18x2x128xbf16> -> vector<2x18x128xbf16>
    %51 = vector.shape_cast %50 : vector<2x18x128xbf16> to vector<4x9x128xbf16>
    %52 = vector.extract_strided_slice %43 {offsets = [0, 512], sizes = [18, 256], strides = [1, 1]} : vector<18x768xbf16> to vector<18x256xbf16>
    %53 = vector.shape_cast %52 : vector<18x256xbf16> to vector<18x2x128xbf16>
    %54 = tpu.transpose %53, [1, 0, 2] : vector<18x2x128xbf16> -> vector<2x18x128xbf16>
    %55 = vector.shape_cast %54 : vector<2x18x128xbf16> to vector<4x9x128xbf16>
    "tpu.trace_start"() <{level = 10 : i32, message = "bqd,bkd->bqk"}> : () -> ()
    %cst_15 = arith.constant dense<0.000000e+00> : vector<4x9x9xf32>
    %56 = tpu.matmul %47, %51, %cst_15 {dimension_numbers = #tpu.dot_dimension_numbers<[2], [2], [1], [1], [0, 0, 0, 1, 1, 1], [0], [0]>} : vector<4x9x128xbf16>, vector<4x9x128xbf16>, vector<4x9x9xf32> -> vector<4x9x9xf32>
    "tpu.trace_stop"() : () -> ()
    %cst_16 = arith.constant dense<0xFF800000> : vector<4x9xf32>
    %57 = vector.multi_reduction <maximumf>, %56, %cst_16 [2] : vector<4x9x9xf32> to vector<4x9xf32>
    %58 = vector.shape_cast %57 : vector<4x9xf32> to vector<4x9x1xf32>
    %59 = vector.broadcast %58 : vector<4x9x1xf32> to vector<4x9x9xf32>
    %60 = arith.subf %56, %59 : vector<4x9x9xf32>
    %61 = math.exp %60 : vector<4x9x9xf32>
    %cst_17 = arith.constant dense<0.000000e+00> : vector<4x9xf32>
    %62 = vector.multi_reduction <add>, %61, %cst_17 [2] : vector<4x9x9xf32> to vector<4x9xf32>
    %63 = vector.shape_cast %62 : vector<4x9xf32> to vector<4x9x1xf32>
    %64 = tpu.reciprocal %63 {approx = true} : vector<4x9x1xf32> -> vector<4x9x1xf32>
    %65 = vector.broadcast %64 : vector<4x9x1xf32> to vector<4x9x9xf32>
    %66 = arith.mulf %61, %65 : vector<4x9x9xf32>
    %67 = arith.truncf %66 : vector<4x9x9xf32> to vector<4x9x9xbf16>
    "tpu.trace_start"() <{level = 10 : i32, message = "bqk,bkd->bqd"}> : () -> ()
    %cst_18 = arith.constant dense<0.000000e+00> : vector<4x9x128xf32>
    %68 = tpu.matmul %67, %55, %cst_18 {dimension_numbers = #tpu.dot_dimension_numbers<[2], [1], [1], [2], [0, 0, 0, 1, 1, 2], [0], [0]>} : vector<4x9x9xbf16>, vector<4x9x128xbf16>, vector<4x9x128xf32> -> vector<4x9x128xf32>
    "tpu.trace_stop"() : () -> ()
    %69 = arith.truncf %68 : vector<4x9x128xf32> to vector<4x9x128xbf16>
    %70 = vector.shape_cast %69 : vector<4x9x128xbf16> to vector<2x18x128xbf16>
    %71 = tpu.transpose %70, [1, 0, 2] : vector<2x18x128xbf16> -> vector<18x2x128xbf16>
    %72 = vector.shape_cast %71 : vector<18x2x128xbf16> to vector<18x256xbf16>
    %c0_19 = arith.constant 0 : index
    %c0_20 = arith.constant 0 : index
    %73 = vector.load %arg6[%c0_19, %c0_20] : memref<256x256xbf16, #tpu.memory_space<vmem>>, vector<256x256xbf16>
    %cst_21 = arith.constant dense<0.000000e+00> : vector<18x256xf32>
    %74 = tpu.matmul %72, %73, %cst_21 {dimension_numbers = #tpu.dot_dimension_numbers<[1], [0], [0], [1], [0, 0, 1, 1], [], []>} : vector<18x256xbf16>, vector<256x256xbf16>, vector<18x256xf32> -> vector<18x256xf32>
    %c0_22 = arith.constant 0 : index
    %c0_23 = arith.constant 0 : index
    %75 = vector.load %arg7[%c0_22, %c0_23] : memref<1x256xf32, #tpu.memory_space<vmem>>, vector<1x256xf32>
    %76 = vector.broadcast %75 : vector<1x256xf32> to vector<18x256xf32>
    %77 = arith.addf %74, %76 : vector<18x256xf32>
    %78 = vector.shape_cast %77 : vector<18x256xf32> to vector<2x9x256xf32>
    %79 = vector.extract_strided_slice %78 {offsets = [0, 0, 0], sizes = [2, 1, 256], strides = [1, 1, 1]} : vector<2x9x256xf32> to vector<2x1x256xf32>
    %cst_24 = arith.constant dense<0.000000e+00> : vector<1x256xf32>
    %80 = vector.multi_reduction <add>, %79, %cst_24 [0] : vector<2x1x256xf32> to vector<1x256xf32>
    %cst_25 = arith.constant 2.000000e+00 : f32
    %81 = vector.broadcast %cst_25 : f32 to vector<1x256xf32>
    %82 = arith.divf %80, %81 : vector<1x256xf32>
    %83 = vector.extract_strided_slice %78 {offsets = [0, 1, 0], sizes = [2, 8, 256], strides = [1, 1, 1]} : vector<2x9x256xf32> to vector<2x8x256xf32>
    %84 = tpu.transpose %83, [1, 0, 2] : vector<2x8x256xf32> -> vector<8x2x256xf32>
    %85 = vector.shape_cast %84 : vector<8x2x256xf32> to vector<16x256xf32>
    %86 = tpu.concatenate %82, %85 in 0 : vector<1x256xf32>, vector<16x256xf32> -> vector<17x256xf32>
    %87 = arith.truncf %86 : vector<17x256xf32> to vector<17x256xbf16>
    %c0_26 = arith.constant 0 : index
    %c0_27 = arith.constant 0 : index
    %c0_28 = arith.constant 0 : index
    %88 = vector.load %arg8[%c0_26, %c0_27, %c0_28] : memref<1x17x256xbf16, #tpu.memory_space<vmem>>, vector<1x17x256xbf16>
    %89 = vector.shape_cast %88 : vector<1x17x256xbf16> to vector<17x256xbf16>
    %90 = vector.shape_cast %87 : vector<17x256xbf16> to vector<1x17x256xbf16>
    tpu.vector_store %arg8[%c0_26, %c0_27, %c0_28], %90 {strides = array<i32>} : memref<1x17x256xbf16, #tpu.memory_space<vmem>>, vector<1x17x256xbf16>,
    return
  }
  func.func @transform_0(%arg0: i32) -> (i32, i32, i32) {
    %c0_i32 = arith.constant 0 : i32
    %c0_i32_0 = arith.constant 0 : i32
    %c0_i32_1 = arith.constant 0 : i32
    return %arg0, %c0_i32, %c0_i32_0 : i32, i32, i32
  }
  func.func @transform_1(%arg0: i32) -> (i32, i32) {
    %c0_i32 = arith.constant 0 : i32
    %c0_i32_0 = arith.constant 0 : i32
    %c0_i32_1 = arith.constant 0 : i32
    return %c0_i32, %c0_i32_0 : i32, i32
  }
  func.func @transform_2(%arg0: i32) -> (i32, i32) {
    %c0_i32 = arith.constant 0 : i32
    %c0_i32_0 = arith.constant 0 : i32
    %c0_i32_1 = arith.constant 0 : i32
    return %c0_i32, %c0_i32_0 : i32, i32
  }
  func.func @transform_3(%arg0: i32) -> (i32, i32) {
    %c0_i32 = arith.constant 0 : i32
    %c0_i32_0 = arith.constant 0 : i32
    %c0_i32_1 = arith.constant 0 : i32
    return %c0_i32, %c0_i32_0 : i32, i32
  }
  func.func @transform_4(%arg0: i32) -> (i32, i32) {
    %c0_i32 = arith.constant 0 : i32
    %c0_i32_0 = arith.constant 0 : i32
    %c0_i32_1 = arith.constant 0 : i32
    return %c0_i32, %c0_i32_0 : i32, i32
  }
  func.func @transform_5(%arg0: i32) -> (i32, i32) {
    %c0_i32 = arith.constant 0 : i32
    %c0_i32_0 = arith.constant 0 : i32
    %c0_i32_1 = arith.constant 0 : i32
    return %c0_i32, %c0_i32_0 : i32, i32
  }
  func.func @transform_6(%arg0: i32) -> (i32, i32) {
    %c0_i32 = arith.constant 0 : i32
    %c0_i32_0 = arith.constant 0 : i32
    %c0_i32_1 = arith.constant 0 : i32
    return %c0_i32, %c0_i32_0 : i32, i32
  }
  func.func @transform_7(%arg0: i32) -> (i32, i32, i32) {
    %c0_i32 = arith.constant 0 : i32
    %c0_i32_0 = arith.constant 0 : i32
    %c0_i32_1 = arith.constant 0 : i32
    return %arg0, %c0_i32, %c0_i32_0 : i32, i32, i32
  }
}

module attributes {stable_mosaic.version = 11 : i64} {
  func.func @_mlp_kernel(%arg0: i32, %arg1: memref<34x256xf32, #tpu.memory_space<vmem>>, %arg2: memref<34x256xbf16, #tpu.memory_space<vmem>>, %arg3: memref<1x256xf32, #tpu.memory_space<vmem>>, %arg4: memref<1x256xf32, #tpu.memory_space<vmem>>, %arg5: memref<256x512xbf16, #tpu.memory_space<vmem>>, %arg6: memref<1x512xf32, #tpu.memory_space<vmem>>, %arg7: memref<512x256xbf16, #tpu.memory_space<vmem>>, %arg8: memref<1x256xf32, #tpu.memory_space<vmem>>, %arg9: memref<34x256xf32, #tpu.memory_space<vmem>>) attributes {dimension_semantics = [#tpu.dimension_semantics<parallel>], iteration_bounds = array<i64: 1>, scalar_prefetch = 0 : i64, scratch_operands = 0 : i64, tpu.core_type = #tpu.core_type<tc>, window_params = [{transform_indices = @transform_0, window_bounds = array<i64: 34, 256>}, {transform_indices = @transform_1, window_bounds = array<i64: 34, 256>}, {pipeline_mode = #tpu.pipeline_mode<synchronous>, transform_indices = @transform_2, window_bounds = array<i64: 1, 256>}, {pipeline_mode = #tpu.pipeline_mode<synchronous>, transform_indices = @transform_3, window_bounds = array<i64: 1, 256>}, {pipeline_mode = #tpu.pipeline_mode<synchronous>, transform_indices = @transform_4, window_bounds = array<i64: 256, 512>}, {pipeline_mode = #tpu.pipeline_mode<synchronous>, transform_indices = @transform_5, window_bounds = array<i64: 1, 512>}, {pipeline_mode = #tpu.pipeline_mode<synchronous>, transform_indices = @transform_6, window_bounds = array<i64: 512, 256>}, {pipeline_mode = #tpu.pipeline_mode<synchronous>, transform_indices = @transform_7, window_bounds = array<i64: 1, 256>}, {transform_indices = @transform_8, window_bounds = array<i64: 34, 256>}]} {
    %c0 = arith.constant 0 : index
    %c0_0 = arith.constant 0 : index
    %0 = vector.load %arg1[%c0, %c0_0] : memref<34x256xf32, #tpu.memory_space<vmem>>, vector<34x256xf32>
    %c0_1 = arith.constant 0 : index
    %c0_2 = arith.constant 0 : index
    %1 = vector.load %arg2[%c0_1, %c0_2] : memref<34x256xbf16, #tpu.memory_space<vmem>>, vector<34x256xbf16>
    %2 = arith.extf %1 : vector<34x256xbf16> to vector<34x256xf32>
    %3 = arith.addf %0, %2 : vector<34x256xf32>
    %c0_3 = arith.constant 0 : index
    %c0_4 = arith.constant 0 : index
    %4 = vector.load %arg3[%c0_3, %c0_4] : memref<1x256xf32, #tpu.memory_space<vmem>>, vector<1x256xf32>
    %c0_5 = arith.constant 0 : index
    %c0_6 = arith.constant 0 : index
    %5 = vector.load %arg4[%c0_5, %c0_6] : memref<1x256xf32, #tpu.memory_space<vmem>>, vector<1x256xf32>
    %cst = arith.constant dense<0.000000e+00> : vector<34xf32>
    %6 = vector.multi_reduction <add>, %3, %cst [1] : vector<34x256xf32> to vector<34xf32>
    %7 = vector.shape_cast %6 : vector<34xf32> to vector<34x1xf32>
    %cst_7 = arith.constant 2.560000e+02 : f32
    %8 = vector.broadcast %cst_7 : f32 to vector<34x1xf32>
    %9 = arith.divf %7, %8 : vector<34x1xf32>
    %10 = vector.broadcast %9 : vector<34x1xf32> to vector<34x256xf32>
    %11 = arith.subf %3, %10 : vector<34x256xf32>
    %12 = arith.mulf %11, %11 : vector<34x256xf32>
    %cst_8 = arith.constant dense<0.000000e+00> : vector<34xf32>
    %13 = vector.multi_reduction <add>, %12, %cst_8 [1] : vector<34x256xf32> to vector<34xf32>
    %14 = vector.shape_cast %13 : vector<34xf32> to vector<34x1xf32>
    %cst_9 = arith.constant 2.560000e+02 : f32
    %15 = vector.broadcast %cst_9 : f32 to vector<34x1xf32>
    %16 = arith.divf %14, %15 : vector<34x1xf32>
    %17 = vector.broadcast %9 : vector<34x1xf32> to vector<34x256xf32>
    %18 = arith.subf %3, %17 : vector<34x256xf32>
    %cst_10 = arith.constant 9.99999974E-6 : f32
    %19 = vector.broadcast %cst_10 : f32 to vector<34x1xf32>
    %20 = arith.addf %16, %19 : vector<34x1xf32>
    %21 = math.rsqrt %20 : vector<34x1xf32>
    %22 = vector.broadcast %21 : vector<34x1xf32> to vector<34x256xf32>
    %23 = arith.mulf %18, %22 : vector<34x256xf32>
    %24 = vector.broadcast %4 : vector<1x256xf32> to vector<34x256xf32>
    %25 = arith.mulf %23, %24 : vector<34x256xf32>
    %26 = vector.broadcast %5 : vector<1x256xf32> to vector<34x256xf32>
    %27 = arith.addf %25, %26 : vector<34x256xf32>
    %28 = arith.truncf %27 : vector<34x256xf32> to vector<34x256xbf16>
    %c0_11 = arith.constant 0 : index
    %c0_12 = arith.constant 0 : index
    %29 = vector.load %arg5[%c0_11, %c0_12] : memref<256x512xbf16, #tpu.memory_space<vmem>>, vector<256x512xbf16>
    %cst_13 = arith.constant dense<0.000000e+00> : vector<34x512xf32>
    %30 = tpu.matmul %28, %29, %cst_13 {dimension_numbers = #tpu.dot_dimension_numbers<[1], [0], [0], [1], [0, 0, 1, 1], [], []>} : vector<34x256xbf16>, vector<256x512xbf16>, vector<34x512xf32> -> vector<34x512xf32>
    %c0_14 = arith.constant 0 : index
    %c0_15 = arith.constant 0 : index
    %31 = vector.load %arg6[%c0_14, %c0_15] : memref<1x512xf32, #tpu.memory_space<vmem>>, vector<1x512xf32>
    %32 = vector.broadcast %31 : vector<1x512xf32> to vector<34x512xf32>
    %33 = arith.addf %30, %32 : vector<34x512xf32>
    %cst_16 = arith.constant 1.702000e+00 : f32
    %34 = vector.broadcast %cst_16 : f32 to vector<34x512xf32>
    %35 = arith.mulf %34, %33 : vector<34x512xf32>
    %36 = arith.negf %35 : vector<34x512xf32>
    %37 = math.exp %36 : vector<34x512xf32>
    %cst_17 = arith.constant 1.000000e+00 : f32
    %38 = vector.broadcast %cst_17 : f32 to vector<34x512xf32>
    %39 = arith.addf %38, %37 : vector<34x512xf32>
    %40 = arith.divf %38, %39 : vector<34x512xf32>
    %41 = arith.mulf %33, %40 : vector<34x512xf32>
    %42 = arith.truncf %41 : vector<34x512xf32> to vector<34x512xbf16>
    %c0_18 = arith.constant 0 : index
    %c0_19 = arith.constant 0 : index
    %43 = vector.load %arg7[%c0_18, %c0_19] : memref<512x256xbf16, #tpu.memory_space<vmem>>, vector<512x256xbf16>
    %cst_20 = arith.constant dense<0.000000e+00> : vector<34x256xf32>
    %44 = tpu.matmul %42, %43, %cst_20 {dimension_numbers = #tpu.dot_dimension_numbers<[1], [0], [0], [1], [0, 0, 1, 1], [], []>} : vector<34x512xbf16>, vector<512x256xbf16>, vector<34x256xf32> -> vector<34x256xf32>
    %c0_21 = arith.constant 0 : index
    %c0_22 = arith.constant 0 : index
    %45 = vector.load %arg8[%c0_21, %c0_22] : memref<1x256xf32, #tpu.memory_space<vmem>>, vector<1x256xf32>
    %46 = vector.broadcast %45 : vector<1x256xf32> to vector<34x256xf32>
    %47 = arith.addf %44, %46 : vector<34x256xf32>
    %48 = arith.addf %3, %47 : vector<34x256xf32>
    %c0_23 = arith.constant 0 : index
    %c0_24 = arith.constant 0 : index
    %49 = vector.load %arg9[%c0_23, %c0_24] : memref<34x256xf32, #tpu.memory_space<vmem>>, vector<34x256xf32>
    tpu.vector_store %arg9[%c0_23, %c0_24], %48 {strides = array<i32>} : memref<34x256xf32, #tpu.memory_space<vmem>>, vector<34x256xf32>,
    return
  }
  func.func @transform_0(%arg0: i32) -> (i32, i32) {
    %c0_i32 = arith.constant 0 : i32
    %c0_i32_0 = arith.constant 0 : i32
    return %arg0, %c0_i32 : i32, i32
  }
  func.func @transform_1(%arg0: i32) -> (i32, i32) {
    %c0_i32 = arith.constant 0 : i32
    %c0_i32_0 = arith.constant 0 : i32
    return %arg0, %c0_i32 : i32, i32
  }
  func.func @transform_2(%arg0: i32) -> (i32, i32) {
    %c0_i32 = arith.constant 0 : i32
    %c0_i32_0 = arith.constant 0 : i32
    %c0_i32_1 = arith.constant 0 : i32
    return %c0_i32, %c0_i32_0 : i32, i32
  }
  func.func @transform_3(%arg0: i32) -> (i32, i32) {
    %c0_i32 = arith.constant 0 : i32
    %c0_i32_0 = arith.constant 0 : i32
    %c0_i32_1 = arith.constant 0 : i32
    return %c0_i32, %c0_i32_0 : i32, i32
  }
  func.func @transform_4(%arg0: i32) -> (i32, i32) {
    %c0_i32 = arith.constant 0 : i32
    %c0_i32_0 = arith.constant 0 : i32
    %c0_i32_1 = arith.constant 0 : i32
    return %c0_i32, %c0_i32_0 : i32, i32
  }
  func.func @transform_5(%arg0: i32) -> (i32, i32) {
    %c0_i32 = arith.constant 0 : i32
    %c0_i32_0 = arith.constant 0 : i32
    %c0_i32_1 = arith.constant 0 : i32
    return %c0_i32, %c0_i32_0 : i32, i32
  }
  func.func @transform_6(%arg0: i32) -> (i32, i32) {
    %c0_i32 = arith.constant 0 : i32
    %c0_i32_0 = arith.constant 0 : i32
    %c0_i32_1 = arith.constant 0 : i32
    return %c0_i32, %c0_i32_0 : i32, i32
  }
  func.func @transform_7(%arg0: i32) -> (i32, i32) {
    %c0_i32 = arith.constant 0 : i32
    %c0_i32_0 = arith.constant 0 : i32
    %c0_i32_1 = arith.constant 0 : i32
    return %c0_i32, %c0_i32_0 : i32, i32
  }
  func.func @transform_8(%arg0: i32) -> (i32, i32) {
    %c0_i32 = arith.constant 0 : i32
    %c0_i32_0 = arith.constant 0 : i32
    return %arg0, %c0_i32 : i32, i32
  }
}

</mosaic_0001>

<llo_original>
// kernel: clip_layer_spatial.3
$region0: #{clip_layer_spatial.3}
  #allocation0 [shape = 'u32[]', space=smem, size = 0x4, offset = 0x4, fixed_abs, tag = 'smem constant byte address 0x4 - core index']
  #allocation1 [shape = 'u32[144,128]{1,0:T(1,128)}', space=vmem, size = 0x12000, scoped, tag = 'internal scratch']
  %s0 = inlined_call_operand.vmem [shape: f32[34,256], index: 0, kind: input, shape index: {}]
  %s1 = inlined_call_operand.vmem [shape: bf16[34,256], index: 1, kind: input, shape index: {}]
  %s2 = inlined_call_operand.vmem [shape: f32[1,256], index: 2, kind: input, shape index: {}]
  %s3 = inlined_call_operand.vmem [shape: f32[1,256], index: 3, kind: input, shape index: {}]
  %s4 = inlined_call_operand.vmem [shape: bf16[256,512], index: 4, kind: input, shape index: {}]
  %s5 = inlined_call_operand.vmem [shape: f32[1,512], index: 5, kind: input, shape index: {}]
  %s6 = inlined_call_operand.vmem [shape: bf16[512,256], index: 6, kind: input, shape index: {}]
  %s7 = inlined_call_operand.vmem [shape: f32[1,256], index: 7, kind: input, shape index: {}]
  %s8 = inlined_call_operand.vmem [shape: f32[34,256], index: 8, kind: output, shape index: {}]
  %s9 = sld [smem:[#allocation0]]
  $region42: #{clip_layer_spatial.3} parent=0
    _
  %s11 = ssub.s32 1, %s9
  %s12 = scalar_select 0, %s11, %s9
  // Predicated region
  $region2: #{clip_layer_spatial.3} parent=0 // pred_check
    _
  $region3: #{clip_layer_spatial.3} parent=0 // pred_check_branch
    %14 = sbr.rel (0) target = $region5
  $region4: #{clip_layer_spatial.3} parent=0 // pred_region
    _
  $region5: #{clip_layer_spatial.3} parent=0 // pred_fallthru
    _
  // Predicated region
  $region6: #{clip_layer_spatial.3} parent=0 // pred_check
    _
  $region7: #{clip_layer_spatial.3} parent=0 // pred_check_branch
    %16 = sbr.rel (0) target = $region9
  $region8: #{clip_layer_spatial.3} parent=0 // pred_region
    _
  $region9: #{clip_layer_spatial.3} parent=0 // pred_fallthru
    _
  // Predicated region
  $region10: #{clip_layer_spatial.3} parent=0 // pred_check
    _
  $region11: #{clip_layer_spatial.3} parent=0 // pred_check_branch
    %18 = sbr.rel (0) target = $region13
  $region12: #{clip_layer_spatial.3} parent=0 // pred_region
    _
  $region13: #{clip_layer_spatial.3} parent=0 // pred_fallthru
    _
  // Predicated region
  $region14: #{clip_layer_spatial.3} parent=0 // pred_check
    _
  $region15: #{clip_layer_spatial.3} parent=0 // pred_check_branch
    %20 = sbr.rel (0) target = $region17
  $region16: #{clip_layer_spatial.3} parent=0 // pred_region
    _
  $region17: #{clip_layer_spatial.3} parent=0 // pred_fallthru
    _
  // Predicated region
  $region18: #{clip_layer_spatial.3} parent=0 // pred_check
    _
  $region19: #{clip_layer_spatial.3} parent=0 // pred_check_branch
    %22 = sbr.rel (0) target = $region21
  $region20: #{clip_layer_spatial.3} parent=0 // pred_region
    _
  $region21: #{clip_layer_spatial.3} parent=0 // pred_fallthru
    _
  // Predicated region
  $region22: #{clip_layer_spatial.3} parent=0 // pred_check
    _
  $region23: #{clip_layer_spatial.3} parent=0 // pred_check_branch
    %24 = sbr.rel (0) target = $region25
  $region24: #{clip_layer_spatial.3} parent=0 // pred_region
    _
  $region25: #{clip_layer_spatial.3} parent=0 // pred_fallthru
    _
  // Predicated region
  $region26: #{clip_layer_spatial.3} parent=0 // pred_check
    _
  $region27: #{clip_layer_spatial.3} parent=0 // pred_check_branch
    %26 = sbr.rel (0) target = $region29
  $region28: #{clip_layer_spatial.3} parent=0 // pred_region
    _
  $region29: #{clip_layer_spatial.3} parent=0 // pred_fallthru
    _
  // Predicated region
  $region30: #{clip_layer_spatial.3} parent=0 // pred_check
    _
  $region31: #{clip_layer_spatial.3} parent=0 // pred_check_branch
    %28 = sbr.rel (0) target = $region33
  $region32: #{clip_layer_spatial.3} parent=0 // pred_region
    _
  $region33: #{clip_layer_spatial.3} parent=0 // pred_fallthru
    _
  %v29 = vld [vmem:[%s0] sm:$0xff]
  %v30 = vld [vmem:[%s0 + $0x8] sm:$0xff]
  %v31 = vld [vmem:[%s0 + $0x10] sm:$0xff]
  %v32 = vld [vmem:[%s0 + $0x18] sm:$0xff]
  %v33 = vld [vmem:[%s0 + $0x20] sm:$0xff]
  %v34 = vld [vmem:[%s0 + $0x28] sm:$0xff]
  %v35 = vld [vmem:[%s0 + $0x30] sm:$0xff]
  %v36 = vld [vmem:[%s0 + $0x38] sm:$0xff]
  %v37 = vld [vmem:[%s0 + $0x40] sm:$0x3]
  %v38 = vld [vmem:[%s0 + $0x48] sm:$0x3]
  %v39 = vld [vmem:[%s1] sm:$0xff]
  %v40 = vld [vmem:[%s1 + $0x8] sm:$0xff]
  %v41 = vld [vmem:[%s1 + $0x10] sm:$0xff]
  %v42 = vld [vmem:[%s1 + $0x18] sm:$0xff]
  %v43 = vld [vmem:[%s1 + $0x20] sm:$0x11]
  %v44 = vunpack.c.l.bf16 %v39
  %v45 = vunpack.c.h.bf16 %v39
  %v46 = vunpack.c.l.bf16 %v40
  %v47 = vunpack.c.h.bf16 %v40
  %v48 = vunpack.c.l.bf16 %v41
  %v49 = vunpack.c.h.bf16 %v41
  %v50 = vunpack.c.l.bf16 %v42
  %v51 = vunpack.c.h.bf16 %v42
  %v52 = vunpack.c.l.bf16 %v43
  %v53 = vunpack.c.h.bf16 %v43
  %v54 = vadd.f32 %v29, %v44
  %v55 = vadd.f32 %v30, %v45
  %v56 = vadd.f32 %v31, %v46
  %v57 = vadd.f32 %v32, %v47
  %v58 = vadd.f32 %v33, %v48
  %v59 = vadd.f32 %v34, %v49
  %v60 = vadd.f32 %v35, %v50
  %v61 = vadd.f32 %v36, %v51
  %v62 = vadd.f32 %v37, %v52
  %v63 = vadd.f32 %v38, %v53
  %v64 = vld [vmem:[%s2] sm:$0x3]
  %v65 = vld [vmem:[%s3] sm:$0x3]
  %v66 = vadd.f32 %v54, %v55
  %67 = vadd.xlane.f32.xlu0 %v66
  %v68 = vpop.xlane.xlu0 %67
  %v69 = vadd.f32 %v56, %v57
  %70 = vadd.xlane.f32.xlu0 %v69
  %v71 = vpop.xlane.xlu0 %70
  %v72 = vadd.f32 %v58, %v59
  %73 = vadd.xlane.f32.xlu0 %v72
  %v74 = vpop.xlane.xlu0 %73
  %v75 = vadd.f32 %v60, %v61
  %76 = vadd.xlane.f32.xlu0 %v75
  %v77 = vpop.xlane.xlu0 %76
  %vm78 = vcmask 1041408
  %v79 = vsel %vm78, %v62, 0.0
  %v80 = vsel %vm78, %v63, 0.0
  %v81 = vadd.f32 %v79, %v80
  %82 = vadd.xlane.f32.xlu0 %v81
  %v83 = vpop.xlane.xlu0 %82
  %v84 = vrcp.pop 256.0
  %v85 = vmul.f32 %v68, %v84
  %v86 = vmul.f32 %v71, %v84
  %v87 = vmul.f32 %v74, %v84
  %v88 = vmul.f32 %v77, %v84
  %v89 = vmul.f32 %v83, %v84
  %v90 = vsub.f32 %v54, %v85
  %v91 = vsub.f32 %v55, %v85
  %v92 = vsub.f32 %v56, %v86
  %v93 = vsub.f32 %v57, %v86
  %v94 = vsub.f32 %v58, %v87
  %v95 = vsub.f32 %v59, %v87
  %v96 = vsub.f32 %v60, %v88
  %v97 = vsub.f32 %v61, %v88
  %v98 = vsub.f32 %v62, %v89
  %v99 = vsub.f32 %v63, %v89
  %v100 = vmul.f32 %v90, %v90
  %v101 = vmul.f32 %v91, %v91
  %v102 = vmul.f32 %v92, %v92
  %v103 = vmul.f32 %v93, %v93
  %v104 = vmul.f32 %v94, %v94
  %v105 = vmul.f32 %v95, %v95
  %v106 = vmul.f32 %v96, %v96
  %v107 = vmul.f32 %v97, %v97
  %v108 = vmul.f32 %v98, %v98
  %v109 = vmul.f32 %v99, %v99
  %v110 = vadd.f32 %v100, %v101
  %111 = vadd.xlane.f32.xlu0 %v110
  %v112 = vpop.xlane.xlu0 %111
  %v113 = vadd.f32 %v102, %v103
  %114 = vadd.xlane.f32.xlu0 %v113
  %v115 = vpop.xlane.xlu0 %114
  %v116 = vadd.f32 %v104, %v105
  %117 = vadd.xlane.f32.xlu0 %v116
  %v118 = vpop.xlane.xlu0 %117
  %v119 = vadd.f32 %v106, %v107
  %120 = vadd.xlane.f32.xlu0 %v119
  %v121 = vpop.xlane.xlu0 %120
  %v122 = vsel %vm78, %v108, 0.0
  %v123 = vsel %vm78, %v109, 0.0
  %v124 = vadd.f32 %v122, %v123
  %125 = vadd.xlane.f32.xlu0 %v124
  %v126 = vpop.xlane.xlu0 %125
  %v127 = vmul.f32 %v112, %v84
  %v128 = vmul.f32 %v115, %v84
  %v129 = vmul.f32 %v118, %v84
  %v130 = vmul.f32 %v121, %v84
  %v131 = vmul.f32 %v126, %v84
  %v132 = vadd.f32 %v127, 1e-05
  %v133 = vadd.f32 %v128, 1e-05
  %v134 = vadd.f32 %v129, 1e-05
  %v135 = vadd.f32 %v130, 1e-05
  %v136 = vadd.f32 %v131, 1e-05
  %v137 = vrsqrt.pop %v132
  %v138 = vrsqrt.pop %v133
  %v139 = vrsqrt.pop %v134
  %v140 = vrsqrt.pop %v135
  %v141 = vrsqrt.pop %v136
  %v142 = vmul.f32 %v90, %v137
  %v143 = vmul.f32 %v91, %v137
  %v144 = vmul.f32 %v92, %v138
  %v145 = vmul.f32 %v93, %v138
  %v146 = vmul.f32 %v94, %v139
  %v147 = vmul.f32 %v95, %v139
  %v148 = vmul.f32 %v96, %v140
  %v149 = vmul.f32 %v97, %v140
  %v150 = vmul.f32 %v98, %v141
  %v151 = vmul.f32 %v99, %v141
  %v153 = vlaneseq
  %v154 = vshrl.u32 %v153, 7
  %v155 = vsub.s32 0, %v154
  %v156 = vrot.slane %v64, %v155
  %v157 = vlaneseq
  %v158 = vshrl.u32 %v157, 7
  %v159 = vsub.s32 1, %v158
  %v160 = vrot.slane %v64, %v159
  %v163 = vmul.f32 %v142, %v156
  %v164 = vmul.f32 %v143, %v160
  %v165 = vmul.f32 %v144, %v156
  %v166 = vmul.f32 %v145, %v160
  %v167 = vmul.f32 %v146, %v156
  %v168 = vmul.f32 %v147, %v160
  %v169 = vmul.f32 %v148, %v156
  %v170 = vmul.f32 %v149, %v160
  %v171 = vmul.f32 %v150, %v156
  %v172 = vmul.f32 %v151, %v160
  %v174 = vlaneseq
  %v175 = vshrl.u32 %v174, 7
  %v176 = vsub.s32 0, %v175
  %v177 = vrot.slane %v65, %v176
  %v178 = vlaneseq
  %v179 = vshrl.u32 %v178, 7
  %v180 = vsub.s32 1, %v179
  %v181 = vrot.slane %v65, %v180
  %v184 = vadd.f32 %v163, %v177
  %v185 = vadd.f32 %v164, %v181
  %v186 = vadd.f32 %v165, %v177
  %v187 = vadd.f32 %v166, %v181
  %v188 = vadd.f32 %v167, %v177
  %v189 = vadd.f32 %v168, %v181
  %v190 = vadd.f32 %v169, %v177
  %v191 = vadd.f32 %v170, %v181
  %v192 = vadd.f32 %v171, %v177
  %v193 = vadd.f32 %v172, %v181
  %v194 = vpack.c.bf16 %v186, %v184
  %v195 = vpack.c.bf16 %v187, %v185
  %v196 = vpack.c.bf16 %v190, %v188
  %v197 = vpack.c.bf16 %v191, %v189
  %v198 = vpack.c.bf16 %v192, %v192
  %v199 = vpack.c.bf16 %v193, %v193
  %v200 = vld [vmem:[%s4] sm:$0xff]
  %v201 = vld [vmem:[%s4 + $0x8] sm:$0xff]
  %v202 = vld [vmem:[%s4 + $0x10] sm:$0xff]
  %v203 = vld [vmem:[%s4 + $0x18] sm:$0xff]
  %v204 = vld [vmem:[%s4 + $0x20] sm:$0xff]
  %v205 = vld [vmem:[%s4 + $0x28] sm:$0xff]
  %v206 = vld [vmem:[%s4 + $0x30] sm:$0xff]
  %v207 = vld [vmem:[%s4 + $0x38] sm:$0xff]
  %v208 = vld [vmem:[%s4 + $0x40] sm:$0xff]
  %v209 = vld [vmem:[%s4 + $0x48] sm:$0xff]
  %v210 = vld [vmem:[%s4 + $0x50] sm:$0xff]
  %v211 = vld [vmem:[%s4 + $0x58] sm:$0xff]
  %v212 = vld [vmem:[%s4 + $0x60] sm:$0xff]
  %v213 = vld [vmem:[%s4 + $0x68] sm:$0xff]
  %v214 = vld [vmem:[%s4 + $0x70] sm:$0xff]
  %v215 = vld [vmem:[%s4 + $0x78] sm:$0xff]
  %v216 = vld [vmem:[%s4 + $0x80] sm:$0xff]
  %v217 = vld [vmem:[%s4 + $0x88] sm:$0xff]
  %v218 = vld [vmem:[%s4 + $0x90] sm:$0xff]
  %v219 = vld [vmem:[%s4 + $0x98] sm:$0xff]
  %v220 = vld [vmem:[%s4 + $0xa0] sm:$0xff]
  %v221 = vld [vmem:[%s4 + $0xa8] sm:$0xff]
  %v222 = vld [vmem:[%s4 + $0xb0] sm:$0xff]
  %v223 = vld [vmem:[%s4 + $0xb8] sm:$0xff]
  %v224 = vld [vmem:[%s4 + $0xc0] sm:$0xff]
  %v225 = vld [vmem:[%s4 + $0xc8] sm:$0xff]
  %v226 = vld [vmem:[%s4 + $0xd0] sm:$0xff]
  %v227 = vld [vmem:[%s4 + $0xd8] sm:$0xff]
  %v228 = vld [vmem:[%s4 + $0xe0] sm:$0xff]
  %v229 = vld [vmem:[%s4 + $0xe8] sm:$0xff]
  %v230 = vld [vmem:[%s4 + $0xf0] sm:$0xff]
  %v231 = vld [vmem:[%s4 + $0xf8] sm:$0xff]
  %v232 = vld [vmem:[%s4 + $0x100] sm:$0xff]
  %v233 = vld [vmem:[%s4 + $0x108] sm:$0xff]
  %v234 = vld [vmem:[%s4 + $0x110] sm:$0xff]
  %v235 = vld [vmem:[%s4 + $0x118] sm:$0xff]
  %v236 = vld [vmem:[%s4 + $0x120] sm:$0xff]
  %v237 = vld [vmem:[%s4 + $0x128] sm:$0xff]
  %v238 = vld [vmem:[%s4 + $0x130] sm:$0xff]
  %v239 = vld [vmem:[%s4 + $0x138] sm:$0xff]
  %v240 = vld [vmem:[%s4 + $0x140] sm:$0xff]
  %v241 = vld [vmem:[%s4 + $0x148] sm:$0xff]
  %v242 = vld [vmem:[%s4 + $0x150] sm:$0xff]
  %v243 = vld [vmem:[%s4 + $0x158] sm:$0xff]
  %v244 = vld [vmem:[%s4 + $0x160] sm:$0xff]
  %v245 = vld [vmem:[%s4 + $0x168] sm:$0xff]
  %v246 = vld [vmem:[%s4 + $0x170] sm:$0xff]
  %v247 = vld [vmem:[%s4 + $0x178] sm:$0xff]
  %v248 = vld [vmem:[%s4 + $0x180] sm:$0xff]
  %v249 = vld [vmem:[%s4 + $0x188] sm:$0xff]
  %v250 = vld [vmem:[%s4 + $0x190] sm:$0xff]
  %v251 = vld [vmem:[%s4 + $0x198] sm:$0xff]
  %v252 = vld [vmem:[%s4 + $0x1a0] sm:$0xff]
  %v253 = vld [vmem:[%s4 + $0x1a8] sm:$0xff]
  %v254 = vld [vmem:[%s4 + $0x1b0] sm:$0xff]
  %v255 = vld [vmem:[%s4 + $0x1b8] sm:$0xff]
  %v256 = vld [vmem:[%s4 + $0x1c0] sm:$0xff]
  %v257 = vld [vmem:[%s4 + $0x1c8] sm:$0xff]
  %v258 = vld [vmem:[%s4 + $0x1d0] sm:$0xff]
  %v259 = vld [vmem:[%s4 + $0x1d8] sm:$0xff]
  %v260 = vld [vmem:[%s4 + $0x1e0] sm:$0xff]
  %v261 = vld [vmem:[%s4 + $0x1e8] sm:$0xff]
  %v262 = vld [vmem:[%s4 + $0x1f0] sm:$0xff]
  %v263 = vld [vmem:[%s4 + $0x1f8] sm:$0xff]
  %v264 = vld [vmem:[%s5] sm:$0xf]
  %v266 = vlaneseq
  %v267 = vshrl.u32 %v266, 7
  %v268 = vsub.s32 0, %v267
  %v269 = vrot.slane %v264, %v268
  %v270 = vlaneseq
  %v271 = vshrl.u32 %v270, 7
  %v272 = vsub.s32 1, %v271
  %v273 = vrot.slane %v264, %v272
  %v274 = vlaneseq
  %v275 = vshrl.u32 %v274, 7
  %v276 = vsub.s32 2, %v275
  %v277 = vrot.slane %v264, %v276
  %v278 = vlaneseq
  %v279 = vshrl.u32 %v278, 7
  %v280 = vsub.s32 3, %v279
  %v281 = vrot.slane %v264, %v280
  %v350 = vunpack.c.l.b16 %v200
  %v351 = vunpack.c.h.b16 %v200
  %v352 = vunpack.c.l.b16 %v201
  %v353 = vunpack.c.h.b16 %v201
  %v354 = vunpack.c.l.b16 %v202
  %v355 = vunpack.c.h.b16 %v202
  %v356 = vunpack.c.l.b16 %v203
  %v357 = vunpack.c.h.b16 %v203
  %v358 = vunpack.c.l.b16 %v204
  %v359 = vunpack.c.h.b16 %v204
  %v360 = vunpack.c.l.b16 %v205
  %v361 = vunpack.c.h.b16 %v205
  %v362 = vunpack.c.l.b16 %v206
  %v363 = vunpack.c.h.b16 %v206
  %v364 = vunpack.c.l.b16 %v207
  %v365 = vunpack.c.h.b16 %v207
  %v366 = vunpack.c.l.b16 %v208
  %v367 = vunpack.c.h.b16 %v208
  %v368 = vunpack.c.l.b16 %v209
  %v369 = vunpack.c.h.b16 %v209
  %v370 = vunpack.c.l.b16 %v210
  %v371 = vunpack.c.h.b16 %v210
  %v372 = vunpack.c.l.b16 %v211
  %v373 = vunpack.c.h.b16 %v211
  %v374 = vunpack.c.l.b16 %v212
  %v375 = vunpack.c.h.b16 %v212
  %v376 = vunpack.c.l.b16 %v213
  %v377 = vunpack.c.h.b16 %v213
  %v378 = vunpack.c.l.b16 %v214
  %v379 = vunpack.c.h.b16 %v214
  %v380 = vunpack.c.l.b16 %v215
  %v381 = vunpack.c.h.b16 %v215
  %v382 = vunpack.c.l.b16 %v216
  %v383 = vunpack.c.h.b16 %v216
  %v384 = vunpack.c.l.b16 %v217
  %v385 = vunpack.c.h.b16 %v217
  %v386 = vunpack.c.l.b16 %v218
  %v387 = vunpack.c.h.b16 %v218
  %v388 = vunpack.c.l.b16 %v219
  %v389 = vunpack.c.h.b16 %v219
  %v390 = vunpack.c.l.b16 %v220
  %v391 = vunpack.c.h.b16 %v220
  %v392 = vunpack.c.l.b16 %v221
  %v393 = vunpack.c.h.b16 %v221
  %v394 = vunpack.c.l.b16 %v222
  %v395 = vunpack.c.h.b16 %v222
  %v396 = vunpack.c.l.b16 %v223
  %v397 = vunpack.c.h.b16 %v223
  %v398 = vunpack.c.l.b16 %v224
  %v399 = vunpack.c.h.b16 %v224
  %v400 = vunpack.c.l.b16 %v225
  %v401 = vunpack.c.h.b16 %v225
  %v402 = vunpack.c.l.b16 %v226
  %v403 = vunpack.c.h.b16 %v226
  %v404 = vunpack.c.l.b16 %v227
  %v405 = vunpack.c.h.b16 %v227
  %v406 = vunpack.c.l.b16 %v228
  %v407 = vunpack.c.h.b16 %v228
  %v408 = vunpack.c.l.b16 %v229
  %v409 = vunpack.c.h.b16 %v229
  %v410 = vunpack.c.l.b16 %v230
  %v411 = vunpack.c.h.b16 %v230
  %v412 = vunpack.c.l.b16 %v231
  %v413 = vunpack.c.h.b16 %v231
  %v414 = vunpack.c.l.b16 %v232
  %v415 = vunpack.c.h.b16 %v232
  %v416 = vunpack.c.l.b16 %v233
  %v417 = vunpack.c.h.b16 %v233
  %v418 = vunpack.c.l.b16 %v234
  %v419 = vunpack.c.h.b16 %v234
  %v420 = vunpack.c.l.b16 %v235
  %v421 = vunpack.c.h.b16 %v235
  %v422 = vunpack.c.l.b16 %v236
  %v423 = vunpack.c.h.b16 %v236
  %v424 = vunpack.c.l.b16 %v237
  %v425 = vunpack.c.h.b16 %v237
  %v426 = vunpack.c.l.b16 %v238
  %v427 = vunpack.c.h.b16 %v238
  %v428 = vunpack.c.l.b16 %v239
  %v429 = vunpack.c.h.b16 %v239
  %v430 = vunpack.c.l.b16 %v240
  %v431 = vunpack.c.h.b16 %v240
  %v432 = vunpack.c.l.b16 %v241
  %v433 = vunpack.c.h.b16 %v241
  %v434 = vunpack.c.l.b16 %v242
  %v435 = vunpack.c.h.b16 %v242
  %v436 = vunpack.c.l.b16 %v243
  %v437 = vunpack.c.h.b16 %v243
  %v438 = vunpack.c.l.b16 %v244
  %v439 = vunpack.c.h.b16 %v244
  %v440 = vunpack.c.l.b16 %v245
  %v441 = vunpack.c.h.b16 %v245
  %v442 = vunpack.c.l.b16 %v246
  %v443 = vunpack.c.h.b16 %v246
  %v444 = vunpack.c.l.b16 %v247
  %v445 = vunpack.c.h.b16 %v247
  %v446 = vunpack.c.l.b16 %v248
  %v447 = vunpack.c.h.b16 %v248
  %v448 = vunpack.c.l.b16 %v249
  %v449 = vunpack.c.h.b16 %v249
  %v450 = vunpack.c.l.b16 %v250
  %v451 = vunpack.c.h.b16 %v250
  %v452 = vunpack.c.l.b16 %v251
  %v453 = vunpack.c.h.b16 %v251
  %v454 = vunpack.c.l.b16 %v252
  %v455 = vunpack.c.h.b16 %v252
  %v456 = vunpack.c.l.b16 %v253
  %v457 = vunpack.c.h.b16 %v253
  %v458 = vunpack.c.l.b16 %v254
  %v459 = vunpack.c.h.b16 %v254
  %v460 = vunpack.c.l.b16 %v255
  %v461 = vunpack.c.h.b16 %v255
  %v462 = vunpack.c.l.b16 %v256
  %v463 = vunpack.c.h.b16 %v256
  %v464 = vunpack.c.l.b16 %v257
  %v465 = vunpack.c.h.b16 %v257
  %v466 = vunpack.c.l.b16 %v258
  %v467 = vunpack.c.h.b16 %v258
  %v468 = vunpack.c.l.b16 %v259
  %v469 = vunpack.c.h.b16 %v259
  %v470 = vunpack.c.l.b16 %v260
  %v471 = vunpack.c.h.b16 %v260
  %v472 = vunpack.c.l.b16 %v261
  %v473 = vunpack.c.h.b16 %v261
  %v474 = vunpack.c.l.b16 %v262
  %v475 = vunpack.c.h.b16 %v262
  %v476 = vunpack.c.l.b16 %v263
  %v477 = vunpack.c.h.b16 %v263
  %v478 = vpack.c.b16 %v354, %v350
  %v479 = vpack.c.b16 %v355, %v351
  %v480 = vpack.c.b16 %v356, %v352
  %v481 = vpack.c.b16 %v357, %v353
  %v482 = vpack.c.b16 %v362, %v358
  %v483 = vpack.c.b16 %v363, %v359
  %v484 = vpack.c.b16 %v364, %v360
  %v485 = vpack.c.b16 %v365, %v361
  %v486 = vpack.c.b16 %v370, %v366
  %v487 = vpack.c.b16 %v371, %v367
  %v488 = vpack.c.b16 %v372, %v368
  %v489 = vpack.c.b16 %v373, %v369
  %v490 = vpack.c.b16 %v378, %v374
  %v491 = vpack.c.b16 %v379, %v375
  %v492 = vpack.c.b16 %v380, %v376
  %v493 = vpack.c.b16 %v381, %v377
  %v494 = vpack.c.b16 %v386, %v382
  %v495 = vpack.c.b16 %v387, %v383
  %v496 = vpack.c.b16 %v388, %v384
  %v497 = vpack.c.b16 %v389, %v385
  %v498 = vpack.c.b16 %v394, %v390
  %v499 = vpack.c.b16 %v395, %v391
  %v500 = vpack.c.b16 %v396, %v392
  %v501 = vpack.c.b16 %v397, %v393
  %v502 = vpack.c.b16 %v402, %v398
  %v503 = vpack.c.b16 %v403, %v399
  %v504 = vpack.c.b16 %v404, %v400
  %v505 = vpack.c.b16 %v405, %v401
  %v506 = vpack.c.b16 %v410, %v406
  %v507 = vpack.c.b16 %v411, %v407
  %v508 = vpack.c.b16 %v412, %v408
  %v509 = vpack.c.b16 %v413, %v409
  %v510 = vpack.c.b16 %v418, %v414
  %v511 = vpack.c.b16 %v419, %v415
  %v512 = vpack.c.b16 %v420, %v416
  %v513 = vpack.c.b16 %v421, %v417
  %v514 = vpack.c.b16 %v426, %v422
  %v515 = vpack.c.b16 %v427, %v423
  %v516 = vpack.c.b16 %v428, %v424
  %v517 = vpack.c.b16 %v429, %v425
  %v518 = vpack.c.b16 %v434, %v430
  %v519 = vpack.c.b16 %v435, %v431
  %v520 = vpack.c.b16 %v436, %v432
  %v521 = vpack.c.b16 %v437, %v433
  %v522 = vpack.c.b16 %v442, %v438
  %v523 = vpack.c.b16 %v443, %v439
  %v524 = vpack.c.b16 %v444, %v440
  %v525 = vpack.c.b16 %v445, %v441
  %v526 = vpack.c.b16 %v450, %v446
  %v527 = vpack.c.b16 %v451, %v447
  %v528 = vpack.c.b16 %v452, %v448
  %v529 = vpack.c.b16 %v453, %v449
  %v530 = vpack.c.b16 %v458, %v454
  %v531 = vpack.c.b16 %v459, %v455
  %v532 = vpack.c.b16 %v460, %v456
  %v533 = vpack.c.b16 %v461, %v457
  %v534 = vpack.c.b16 %v466, %v462
  %v535 = vpack.c.b16 %v467, %v463
  %v536 = vpack.c.b16 %v468, %v464
  %v537 = vpack.c.b16 %v469, %v465
  %v538 = vpack.c.b16 %v474, %v470
  %v539 = vpack.c.b16 %v475, %v471
  %v540 = vpack.c.b16 %v476, %v472
  %v541 = vpack.c.b16 %v477, %v473
  %606 = vmatprep.subr.bf16.mxu0 %v507
  %607 = vmatpush1.bf16.msra.mxu0 %v506
  %608 = vmatprep.subr.bf16.mxu0 %v503
  %609 = vmatpush1.bf16.msra.mxu0 %v502
  %610 = vmatprep.subr.bf16.mxu0 %v499
  %611 = vmatpush1.bf16.msra.mxu0 %v498
  %612 = vmatprep.subr.bf16.mxu0 %v495
  %613 = vmatpush1.bf16.msra.mxu0 %v494
  %614 = vmatprep.subr.bf16.mxu0 %v491
  %615 = vmatpush1.bf16.msra.mxu0 %v490
  %616 = vmatprep.subr.bf16.mxu0 %v487
  %617 = vmatpush1.bf16.msra.mxu0 %v486
  %618 = vmatprep.subr.bf16.mxu0 %v483
  %619 = vmatpush1.bf16.msra.mxu0 %v482
  %620 = vmatprep.subr.bf16.mxu0 %v479
  %621 = vmatpush1.bf16.msra.mxu0 %v478
  %622 = vmatprep.subr.bf16.mxu0 %v539
  %623 = vmatpush2.bf16.msra.mxu0 %v538
  %624 = vmatprep.subr.bf16.mxu0 %v535
  %625 = vmatpush2.bf16.msra.mxu0 %v534
  %626 = vmatprep.subr.bf16.mxu0 %v531
  %627 = vmatpush2.bf16.msra.mxu0 %v530
  %628 = vmatprep.subr.bf16.mxu0 %v527
  %629 = vmatpush2.bf16.msra.mxu0 %v526
  %630 = vmatprep.subr.bf16.mxu0 %v523
  %631 = vmatpush2.bf16.msra.mxu0 %v522
  %632 = vmatprep.subr.bf16.mxu0 %v519
  %633 = vmatpush2.bf16.msra.mxu0 %v518
  %634 = vmatprep.subr.bf16.mxu0 %v515
  %635 = vmatpush2.bf16.msra.mxu0 %v514
  %636 = vmatprep.subr.bf16.mxu0 %v511
  %637 = vmatpush2.bf16.msra.mxu0 %v510
  %638 = vmatprep.mubr.bf16.mxu0 %v195
  %639 = vmatmul.mubr.bf16.gmra.mxu0 %v194
  %v640 = vpop.f32.mrf.mxu0
  %v641 = vadd.f32 %v269, %v640
  %v642 = vpop.f32.mrf.mxu0
  %v643 = vadd.f32 %v273, %v642
  %v644 = vpop.f32.mrf.mxu0
  %v645 = vadd.f32 %v269, %v644
  %v646 = vpop.f32.mrf.mxu0
  %v647 = vadd.f32 %v273, %v646
  %648 = vmatprep.mubr.bf16.mxu0 %v197
  %649 = vmatmul.mubr.bf16.gmra.mxu0 %v196
  %v650 = vpop.f32.mrf.mxu0
  %v651 = vadd.f32 %v269, %v650
  %v652 = vpop.f32.mrf.mxu0
  %v653 = vadd.f32 %v273, %v652
  %v654 = vpop.f32.mrf.mxu0
  %v655 = vadd.f32 %v269, %v654
  %v656 = vpop.f32.mrf.mxu0
  %v657 = vadd.f32 %v273, %v656
  %658 = vmatprep.mubr.bf16.mxu0 %v199
  %659 = vmatmul.mubr.bf16.gmra.mxu0 %v198
  %v660 = vpop.f32.mrf.mxu0
  %v661 = vadd.f32 %v269, %v660
  %v662 = vpop.f32.mrf.mxu0
  %v663 = vadd.f32 %v273, %v662
  %v664 = vpop.f32.mrf.mxu0
  %v665 = vpop.f32.mrf.mxu0
  %666 = vdwg.mxu0
  %667 = vmatprep.subr.bf16.mxu0 %v509
  %668 = vmatpush1.bf16.msra.mxu0 %v508
  %669 = vmatprep.subr.bf16.mxu0 %v505
  %670 = vmatpush1.bf16.msra.mxu0 %v504
  %671 = vmatprep.subr.bf16.mxu0 %v501
  %672 = vmatpush1.bf16.msra.mxu0 %v500
  %673 = vmatprep.subr.bf16.mxu0 %v497
  %674 = vmatpush1.bf16.msra.mxu0 %v496
  %675 = vmatprep.subr.bf16.mxu0 %v493
  %676 = vmatpush1.bf16.msra.mxu0 %v492
  %677 = vmatprep.subr.bf16.mxu0 %v489
  %678 = vmatpush1.bf16.msra.mxu0 %v488
  %679 = vmatprep.subr.bf16.mxu0 %v485
  %680 = vmatpush1.bf16.msra.mxu0 %v484
  %681 = vmatprep.subr.bf16.mxu0 %v481
  %682 = vmatpush1.bf16.msra.mxu0 %v480
  %683 = vmatprep.subr.bf16.mxu0 %v541
  %684 = vmatpush2.bf16.msra.mxu0 %v540
  %685 = vmatprep.subr.bf16.mxu0 %v537
  %686 = vmatpush2.bf16.msra.mxu0 %v536
  %687 = vmatprep.subr.bf16.mxu0 %v533
  %688 = vmatpush2.bf16.msra.mxu0 %v532
  %689 = vmatprep.subr.bf16.mxu0 %v529
  %690 = vmatpush2.bf16.msra.mxu0 %v528
  %691 = vmatprep.subr.bf16.mxu0 %v525
  %692 = vmatpush2.bf16.msra.mxu0 %v524
  %693 = vmatprep.subr.bf16.mxu0 %v521
  %694 = vmatpush2.bf16.msra.mxu0 %v520
  %695 = vmatprep.subr.bf16.mxu0 %v517
  %696 = vmatpush2.bf16.msra.mxu0 %v516
  %697 = vmatprep.subr.bf16.mxu0 %v513
  %698 = vmatpush2.bf16.msra.mxu0 %v512
  %699 = vmatprep.mubr.bf16.mxu0 %v195
  %700 = vmatmul.mubr.bf16.gmra.mxu0 %v194
  %v701 = vpop.f32.mrf.mxu0
  %v702 = vadd.f32 %v277, %v701
  %v703 = vpop.f32.mrf.mxu0
  %v704 = vadd.f32 %v281, %v703
  %v705 = vpop.f32.mrf.mxu0
  %v706 = vadd.f32 %v277, %v705
  %v707 = vpop.f32.mrf.mxu0
  %v708 = vadd.f32 %v281, %v707
  %709 = vmatprep.mubr.bf16.mxu0 %v197
  %710 = vmatmul.mubr.bf16.gmra.mxu0 %v196
  %v711 = vpop.f32.mrf.mxu0
  %v712 = vadd.f32 %v277, %v711
  %v713 = vpop.f32.mrf.mxu0
  %v714 = vadd.f32 %v281, %v713
  %v715 = vpop.f32.mrf.mxu0
  %v716 = vadd.f32 %v277, %v715
  %v717 = vpop.f32.mrf.mxu0
  %v718 = vadd.f32 %v281, %v717
  %719 = vmatprep.mubr.bf16.mxu0 %v199
  %720 = vmatmul.mubr.bf16.gmra.mxu0 %v198
  %v721 = vpop.f32.mrf.mxu0
  %v722 = vadd.f32 %v277, %v721
  %v723 = vpop.f32.mrf.mxu0
  %v724 = vadd.f32 %v281, %v723
  %v725 = vpop.f32.mrf.mxu0
  %v726 = vpop.f32.mrf.mxu0
  %727 = vdwg.mxu0
  %v728 = vmul.f32 %v641, 1.702
  %v729 = vmul.f32 %v643, 1.702
  %v730 = vmul.f32 %v702, 1.702
  %v731 = vmul.f32 %v704, 1.702
  %v732 = vmul.f32 %v645, 1.702
  %v733 = vmul.f32 %v647, 1.702
  %v734 = vmul.f32 %v706, 1.702
  %v735 = vmul.f32 %v708, 1.702
  %v736 = vmul.f32 %v651, 1.702
  %v737 = vmul.f32 %v653, 1.702
  %v738 = vmul.f32 %v712, 1.702
  %v739 = vmul.f32 %v714, 1.702
  %v740 = vmul.f32 %v655, 1.702
  %v741 = vmul.f32 %v657, 1.702
  %v742 = vmul.f32 %v716, 1.702
  %v743 = vmul.f32 %v718, 1.702
  %v744 = vmul.f32 %v661, 1.702
  %v745 = vmul.f32 %v663, 1.702
  %v746 = vmul.f32 %v722, 1.702
  %v747 = vmul.f32 %v724, 1.702
  %v748 = vxor.u32 %v728, 2147483648
  %v749 = vxor.u32 %v729, 2147483648
  %v750 = vxor.u32 %v730, 2147483648
  %v751 = vxor.u32 %v731, 2147483648
  %v752 = vxor.u32 %v732, 2147483648
  %v753 = vxor.u32 %v733, 2147483648
  %v754 = vxor.u32 %v734, 2147483648
  %v755 = vxor.u32 %v735, 2147483648
  %v756 = vxor.u32 %v736, 2147483648
  %v757 = vxor.u32 %v737, 2147483648
  %v758 = vxor.u32 %v738, 2147483648
  %v759 = vxor.u32 %v739, 2147483648
  %v760 = vxor.u32 %v740, 2147483648
  %v761 = vxor.u32 %v741, 2147483648
  %v762 = vxor.u32 %v742, 2147483648
  %v763 = vxor.u32 %v743, 2147483648
  %v764 = vxor.u32 %v744, 2147483648
  %v765 = vxor.u32 %v745, 2147483648
  %v766 = vxor.u32 %v746, 2147483648
  %v767 = vxor.u32 %v747, 2147483648
  %v768 = vmul.f32 %v748, 1.442695
  %v769 = vpow.pop %v768
  %v770 = vmul.f32 %v749, 1.442695
  %v771 = vpow.pop %v770
  %v772 = vmul.f32 %v750, 1.442695
  %v773 = vpow.pop %v772
  %v774 = vmul.f32 %v751, 1.442695
  %v775 = vpow.pop %v774
  %v776 = vmul.f32 %v752, 1.442695
  %v777 = vpow.pop %v776
  %v778 = vmul.f32 %v753, 1.442695
  %v779 = vpow.pop %v778
  %v780 = vmul.f32 %v754, 1.442695
  %v781 = vpow.pop %v780
  %v782 = vmul.f32 %v755, 1.442695
  %v783 = vpow.pop %v782
  %v784 = vmul.f32 %v756, 1.442695
  %v785 = vpow.pop %v784
  %v786 = vmul.f32 %v757, 1.442695
  %v787 = vpow.pop %v786
  %v788 = vmul.f32 %v758, 1.442695
  %v789 = vpow.pop %v788
  %v790 = vmul.f32 %v759, 1.442695
  %v791 = vpow.pop %v790
  %v792 = vmul.f32 %v760, 1.442695
  %v793 = vpow.pop %v792
  %v794 = vmul.f32 %v761, 1.442695
  %v795 = vpow.pop %v794
  %v796 = vmul.f32 %v762, 1.442695
  %v797 = vpow.pop %v796
  %v798 = vmul.f32 %v763, 1.442695
  %v799 = vpow.pop %v798
  %v800 = vmul.f32 %v764, 1.442695
  %v801 = vpow.pop %v800
  %v802 = vmul.f32 %v765, 1.442695
  %v803 = vpow.pop %v802
  %v804 = vmul.f32 %v766, 1.442695
  %v805 = vpow.pop %v804
  %v806 = vmul.f32 %v767, 1.442695
  %v807 = vpow.pop %v806
  %v808 = vadd.f32 %v769, 1.0
  %v809 = vadd.f32 %v771, 1.0
  %v810 = vadd.f32 %v773, 1.0
  %v811 = vadd.f32 %v775, 1.0
  %v812 = vadd.f32 %v777, 1.0
  %v813 = vadd.f32 %v779, 1.0
  %v814 = vadd.f32 %v781, 1.0
  %v815 = vadd.f32 %v783, 1.0
  %v816 = vadd.f32 %v785, 1.0
  %v817 = vadd.f32 %v787, 1.0
  %v818 = vadd.f32 %v789, 1.0
  %v819 = vadd.f32 %v791, 1.0
  %v820 = vadd.f32 %v793, 1.0
  %v821 = vadd.f32 %v795, 1.0
  %v822 = vadd.f32 %v797, 1.0
  %v823 = vadd.f32 %v799, 1.0
  %v824 = vadd.f32 %v801, 1.0
  %v825 = vadd.f32 %v803, 1.0
  %v826 = vadd.f32 %v805, 1.0
  %v827 = vadd.f32 %v807, 1.0
  %v828 = vrcp.pop %v808
  %v829 = vmul.f32 1.0, %v828
  %v830 = vrcp.pop %v809
  %v831 = vmul.f32 1.0, %v830
  %v832 = vrcp.pop %v810
  %v833 = vmul.f32 1.0, %v832
  %v834 = vrcp.pop %v811
  %v835 = vmul.f32 1.0, %v834
  %v836 = vrcp.pop %v812
  %v837 = vmul.f32 1.0, %v836
  %v838 = vrcp.pop %v813
  %v839 = vmul.f32 1.0, %v838
  %v840 = vrcp.pop %v814
  %v841 = vmul.f32 1.0, %v840
  %v842 = vrcp.pop %v815
  %v843 = vmul.f32 1.0, %v842
  %v844 = vrcp.pop %v816
  %v845 = vmul.f32 1.0, %v844
  %v846 = vrcp.pop %v817
  %v847 = vmul.f32 1.0, %v846
  %v848 = vrcp.pop %v818
  %v849 = vmul.f32 1.0, %v848
  %v850 = vrcp.pop %v819
  %v851 = vmul.f32 1.0, %v850
  %v852 = vrcp.pop %v820
  %v853 = vmul.f32 1.0, %v852
  %v854 = vrcp.pop %v821
  %v855 = vmul.f32 1.0, %v854
  %v856 = vrcp.pop %v822
  %v857 = vmul.f32 1.0, %v856
  %v858 = vrcp.pop %v823
  %v859 = vmul.f32 1.0, %v858
  %v860 = vrcp.pop %v824
  %v861 = vmul.f32 1.0, %v860
  %v862 = vrcp.pop %v825
  %v863 = vmul.f32 1.0, %v862
  %v864 = vrcp.pop %v826
  %v865 = vmul.f32 1.0, %v864
  %v866 = vrcp.pop %v827
  %v867 = vmul.f32 1.0, %v866
  %v868 = vmul.f32 %v641, %v829
  %v869 = vmul.f32 %v643, %v831
  %v870 = vmul.f32 %v702, %v833
  %v871 = vmul.f32 %v704, %v835
  %v872 = vmul.f32 %v645, %v837
  %v873 = vmul.f32 %v647, %v839
  %v874 = vmul.f32 %v706, %v841
  %v875 = vmul.f32 %v708, %v843
  %v876 = vmul.f32 %v651, %v845
  %v877 = vmul.f32 %v653, %v847
  %v878 = vmul.f32 %v712, %v849
  %v879 = vmul.f32 %v714, %v851
  %v880 = vmul.f32 %v655, %v853
  %v881 = vmul.f32 %v657, %v855
  %v882 = vmul.f32 %v716, %v857
  %v883 = vmul.f32 %v718, %v859
  %v884 = vmul.f32 %v661, %v861
  %v885 = vmul.f32 %v663, %v863
  %v886 = vmul.f32 %v722, %v865
  %v887 = vmul.f32 %v724, %v867
  %v888 = vpack.c.bf16 %v872, %v868
  %v889 = vpack.c.bf16 %v873, %v869
  %v890 = vpack.c.bf16 %v874, %v870
  %v891 = vpack.c.bf16 %v875, %v871
  %v892 = vpack.c.bf16 %v880, %v876
  %v893 = vpack.c.bf16 %v881, %v877
  %v894 = vpack.c.bf16 %v882, %v878
  %v895 = vpack.c.bf16 %v883, %v879
  %v896 = vpack.c.bf16 %v884, %v884
  %v897 = vpack.c.bf16 %v885, %v885
  %v898 = vpack.c.bf16 %v886, %v886
  %v899 = vpack.c.bf16 %v887, %v887
  %v900 = vld [vmem:[%s6] sm:$0xff]
  %v901 = vld [vmem:[%s6 + $0x8] sm:$0xff]
  %v902 = vld [vmem:[%s6 + $0x10] sm:$0xff]
  %v903 = vld [vmem:[%s6 + $0x18] sm:$0xff]
  %v904 = vld [vmem:[%s6 + $0x20] sm:$0xff]
  %v905 = vld [vmem:[%s6 + $0x28] sm:$0xff]
  %v906 = vld [vmem:[%s6 + $0x30] sm:$0xff]
  %v907 = vld [vmem:[%s6 + $0x38] sm:$0xff]
  %v908 = vld [vmem:[%s6 + $0x40] sm:$0xff]
  %v909 = vld [vmem:[%s6 + $0x48] sm:$0xff]
  %v910 = vld [vmem:[%s6 + $0x50] sm:$0xff]
  %v911 = vld [vmem:[%s6 + $0x58] sm:$0xff]
  %v912 = vld [vmem:[%s6 + $0x60] sm:$0xff]
  %v913 = vld [vmem:[%s6 + $0x68] sm:$0xff]
  %v914 = vld [vmem:[%s6 + $0x70] sm:$0xff]
  %v915 = vld [vmem:[%s6 + $0x78] sm:$0xff]
  %v916 = vld [vmem:[%s6 + $0x80] sm:$0xff]
  %v917 = vld [vmem:[%s6 + $0x88] sm:$0xff]
  %v918 = vld [vmem:[%s6 + $0x90] sm:$0xff]
  %v919 = vld [vmem:[%s6 + $0x98] sm:$0xff]
  %v920 = vld [vmem:[%s6 + $0xa0] sm:$0xff]
  %v921 = vld [vmem:[%s6 + $0xa8] sm:$0xff]
  %v922 = vld [vmem:[%s6 + $0xb0] sm:$0xff]
  %v923 = vld [vmem:[%s6 + $0xb8] sm:$0xff]
  %v924 = vld [vmem:[%s6 + $0xc0] sm:$0xff]
  %v925 = vld [vmem:[%s6 + $0xc8] sm:$0xff]
  %v926 = vld [vmem:[%s6 + $0xd0] sm:$0xff]
  %v927 = vld [vmem:[%s6 + $0xd8] sm:$0xff]
  %v928 = vld [vmem:[%s6 + $0xe0] sm:$0xff]
  %v929 = vld [vmem:[%s6 + $0xe8] sm:$0xff]
  %v930 = vld [vmem:[%s6 + $0xf0] sm:$0xff]
  %v931 = vld [vmem:[%s6 + $0xf8] sm:$0xff]
  %v932 = vld [vmem:[%s6 + $0x100] sm:$0xff]
  %v933 = vld [vmem:[%s6 + $0x108] sm:$0xff]
  %v934 = vld [vmem:[%s6 + $0x110] sm:$0xff]
  %v935 = vld [vmem:[%s6 + $0x118] sm:$0xff]
  %v936 = vld [vmem:[%s6 + $0x120] sm:$0xff]
  %v937 = vld [vmem:[%s6 + $0x128] sm:$0xff]
  %v938 = vld [vmem:[%s6 + $0x130] sm:$0xff]
  %v939 = vld [vmem:[%s6 + $0x138] sm:$0xff]
  %v940 = vld [vmem:[%s6 + $0x140] sm:$0xff]
  %v941 = vld [vmem:[%s6 + $0x148] sm:$0xff]
  %v942 = vld [vmem:[%s6 + $0x150] sm:$0xff]
  %v943 = vld [vmem:[%s6 + $0x158] sm:$0xff]
  %v944 = vld [vmem:[%s6 + $0x160] sm:$0xff]
  %v945 = vld [vmem:[%s6 + $0x168] sm:$0xff]
  %v946 = vld [vmem:[%s6 + $0x170] sm:$0xff]
  %v947 = vld [vmem:[%s6 + $0x178] sm:$0xff]
  %v948 = vld [vmem:[%s6 + $0x180] sm:$0xff]
  %v949 = vld [vmem:[%s6 + $0x188] sm:$0xff]
  %v950 = vld [vmem:[%s6 + $0x190] sm:$0xff]
  %v951 = vld [vmem:[%s6 + $0x198] sm:$0xff]
  %v952 = vld [vmem:[%s6 + $0x1a0] sm:$0xff]
  %v953 = vld [vmem:[%s6 + $0x1a8] sm:$0xff]
  %v954 = vld [vmem:[%s6 + $0x1b0] sm:$0xff]
  %v955 = vld [vmem:[%s6 + $0x1b8] sm:$0xff]
  %v956 = vld [vmem:[%s6 + $0x1c0] sm:$0xff]
  %v957 = vld [vmem:[%s6 + $0x1c8] sm:$0xff]
  %v958 = vld [vmem:[%s6 + $0x1d0] sm:$0xff]
  %v959 = vld [vmem:[%s6 + $0x1d8] sm:$0xff]
  %v960 = vld [vmem:[%s6 + $0x1e0] sm:$0xff]
  %v961 = vld [vmem:[%s6 + $0x1e8] sm:$0xff]
  %v962 = vld [vmem:[%s6 + $0x1f0] sm:$0xff]
  %v963 = vld [vmem:[%s6 + $0x1f8] sm:$0xff]
  %v964 = vld [vmem:[%s7] sm:$0x3]
  %v966 = vlaneseq
  %v967 = vshrl.u32 %v966, 7
  %v968 = vsub.s32 0, %v967
  %v969 = vrot.slane %v964, %v968
  %v970 = vlaneseq
  %v971 = vshrl.u32 %v970, 7
  %v972 = vsub.s32 1, %v971
  %v973 = vrot.slane %v964, %v972
  %v1040 = vunpack.c.l.b16 %v900
  %v1041 = vunpack.c.h.b16 %v900
  %v1042 = vunpack.c.l.b16 %v901
  %v1043 = vunpack.c.h.b16 %v901
  %v1044 = vunpack.c.l.b16 %v902
  %v1045 = vunpack.c.h.b16 %v902
  %v1046 = vunpack.c.l.b16 %v903
  %v1047 = vunpack.c.h.b16 %v903
  %v1048 = vunpack.c.l.b16 %v904
  %v1049 = vunpack.c.h.b16 %v904
  %v1050 = vunpack.c.l.b16 %v905
  %v1051 = vunpack.c.h.b16 %v905
  %v1052 = vunpack.c.l.b16 %v906
  %v1053 = vunpack.c.h.b16 %v906
  %v1054 = vunpack.c.l.b16 %v907
  %v1055 = vunpack.c.h.b16 %v907
  %v1056 = vunpack.c.l.b16 %v908
  %v1057 = vunpack.c.h.b16 %v908
  %v1058 = vunpack.c.l.b16 %v909
  %v1059 = vunpack.c.h.b16 %v909
  %v1060 = vunpack.c.l.b16 %v910
  %v1061 = vunpack.c.h.b16 %v910
  %v1062 = vunpack.c.l.b16 %v911
  %v1063 = vunpack.c.h.b16 %v911
  %v1064 = vunpack.c.l.b16 %v912
  %v1065 = vunpack.c.h.b16 %v912
  %v1066 = vunpack.c.l.b16 %v913
  %v1067 = vunpack.c.h.b16 %v913
  %v1068 = vunpack.c.l.b16 %v914
  %v1069 = vunpack.c.h.b16 %v914
  %v1070 = vunpack.c.l.b16 %v915
  %v1071 = vunpack.c.h.b16 %v915
  %v1072 = vunpack.c.l.b16 %v916
  %v1073 = vunpack.c.h.b16 %v916
  %v1074 = vunpack.c.l.b16 %v917
  %v1075 = vunpack.c.h.b16 %v917
  %v1076 = vunpack.c.l.b16 %v918
  %v1077 = vunpack.c.h.b16 %v918
  %v1078 = vunpack.c.l.b16 %v919
  %v1079 = vunpack.c.h.b16 %v919
  %v1080 = vunpack.c.l.b16 %v920
  %v1081 = vunpack.c.h.b16 %v920
  %v1082 = vunpack.c.l.b16 %v921
  %v1083 = vunpack.c.h.b16 %v921
  %v1084 = vunpack.c.l.b16 %v922
  %v1085 = vunpack.c.h.b16 %v922
  %v1086 = vunpack.c.l.b16 %v923
  %v1087 = vunpack.c.h.b16 %v923
  %v1088 = vunpack.c.l.b16 %v924
  %v1089 = vunpack.c.h.b16 %v924
  %v1090 = vunpack.c.l.b16 %v925
  %v1091 = vunpack.c.h.b16 %v925
  %v1092 = vunpack.c.l.b16 %v926
  %v1093 = vunpack.c.h.b16 %v926
  %v1094 = vunpack.c.l.b16 %v927
  %v1095 = vunpack.c.h.b16 %v927
  %v1096 = vunpack.c.l.b16 %v928
  %v1097 = vunpack.c.h.b16 %v928
  %v1098 = vunpack.c.l.b16 %v929
  %v1099 = vunpack.c.h.b16 %v929
  %v1100 = vunpack.c.l.b16 %v930
  %v1101 = vunpack.c.h.b16 %v930
  %v1102 = vunpack.c.l.b16 %v931
  %v1103 = vunpack.c.h.b16 %v931
  %v1104 = vunpack.c.l.b16 %v932
  %v1105 = vunpack.c.h.b16 %v932
  %v1106 = vunpack.c.l.b16 %v933
  %v1107 = vunpack.c.h.b16 %v933
  %v1108 = vunpack.c.l.b16 %v934
  %v1109 = vunpack.c.h.b16 %v934
  %v1110 = vunpack.c.l.b16 %v935
  %v1111 = vunpack.c.h.b16 %v935
  %v1112 = vunpack.c.l.b16 %v936
  %v1113 = vunpack.c.h.b16 %v936
  %v1114 = vunpack.c.l.b16 %v937
  %v1115 = vunpack.c.h.b16 %v937
  %v1116 = vunpack.c.l.b16 %v938
  %v1117 = vunpack.c.h.b16 %v938
  %v1118 = vunpack.c.l.b16 %v939
  %v1119 = vunpack.c.h.b16 %v939
  %v1120 = vunpack.c.l.b16 %v940
  %v1121 = vunpack.c.h.b16 %v940
  %v1122 = vunpack.c.l.b16 %v941
  %v1123 = vunpack.c.h.b16 %v941
  %v1124 = vunpack.c.l.b16 %v942
  %v1125 = vunpack.c.h.b16 %v942
  %v1126 = vunpack.c.l.b16 %v943
  %v1127 = vunpack.c.h.b16 %v943
  %v1128 = vunpack.c.l.b16 %v944
  %v1129 = vunpack.c.h.b16 %v944
  %v1130 = vunpack.c.l.b16 %v945
  %v1131 = vunpack.c.h.b16 %v945
  %v1132 = vunpack.c.l.b16 %v946
  %v1133 = vunpack.c.h.b16 %v946
  %v1134 = vunpack.c.l.b16 %v947
  %v1135 = vunpack.c.h.b16 %v947
  %v1136 = vunpack.c.l.b16 %v948
  %v1137 = vunpack.c.h.b16 %v948
  %v1138 = vunpack.c.l.b16 %v949
  %v1139 = vunpack.c.h.b16 %v949
  %v1140 = vunpack.c.l.b16 %v950
  %v1141 = vunpack.c.h.b16 %v950
  %v1142 = vunpack.c.l.b16 %v951
  %v1143 = vunpack.c.h.b16 %v951
  %v1144 = vunpack.c.l.b16 %v952
  %v1145 = vunpack.c.h.b16 %v952
  %v1146 = vunpack.c.l.b16 %v953
  %v1147 = vunpack.c.h.b16 %v953
  %v1148 = vunpack.c.l.b16 %v954
  %v1149 = vunpack.c.h.b16 %v954
  %v1150 = vunpack.c.l.b16 %v955
  %v1151 = vunpack.c.h.b16 %v955
  %v1152 = vunpack.c.l.b16 %v956
  %v1153 = vunpack.c.h.b16 %v956
  %v1154 = vunpack.c.l.b16 %v957
  %v1155 = vunpack.c.h.b16 %v957
  %v1156 = vunpack.c.l.b16 %v958
  %v1157 = vunpack.c.h.b16 %v958
  %v1158 = vunpack.c.l.b16 %v959
  %v1159 = vunpack.c.h.b16 %v959
  %v1160 = vunpack.c.l.b16 %v960
  %v1161 = vunpack.c.h.b16 %v960
  %v1162 = vunpack.c.l.b16 %v961
  %v1163 = vunpack.c.h.b16 %v961
  %v1164 = vunpack.c.l.b16 %v962
  %v1165 = vunpack.c.h.b16 %v962
  %v1166 = vunpack.c.l.b16 %v963
  %v1167 = vunpack.c.h.b16 %v963
  %v1168 = vpack.c.b16 %v1042, %v1040
  %v1169 = vpack.c.b16 %v1043, %v1041
  %v1170 = vpack.c.b16 %v1046, %v1044
  %v1171 = vpack.c.b16 %v1047, %v1045
  %v1172 = vpack.c.b16 %v1050, %v1048
  %v1173 = vpack.c.b16 %v1051, %v1049
  %v1174 = vpack.c.b16 %v1054, %v1052
  %v1175 = vpack.c.b16 %v1055, %v1053
  %v1176 = vpack.c.b16 %v1058, %v1056
  %v1177 = vpack.c.b16 %v1059, %v1057
  %v1178 = vpack.c.b16 %v1062, %v1060
  %v1179 = vpack.c.b16 %v1063, %v1061
  %v1180 = vpack.c.b16 %v1066, %v1064
  %v1181 = vpack.c.b16 %v1067, %v1065
  %v1182 = vpack.c.b16 %v1070, %v1068
  %v1183 = vpack.c.b16 %v1071, %v1069
  %v1184 = vpack.c.b16 %v1074, %v1072
  %v1185 = vpack.c.b16 %v1075, %v1073
  %v1186 = vpack.c.b16 %v1078, %v1076
  %v1187 = vpack.c.b16 %v1079, %v1077
  %v1188 = vpack.c.b16 %v1082, %v1080
  %v1189 = vpack.c.b16 %v1083, %v1081
  %v1190 = vpack.c.b16 %v1086, %v1084
  %v1191 = vpack.c.b16 %v1087, %v1085
  %v1192 = vpack.c.b16 %v1090, %v1088
  %v1193 = vpack.c.b16 %v1091, %v1089
  %v1194 = vpack.c.b16 %v1094, %v1092
  %v1195 = vpack.c.b16 %v1095, %v1093
  %v1196 = vpack.c.b16 %v1098, %v1096
  %v1197 = vpack.c.b16 %v1099, %v1097
  %v1198 = vpack.c.b16 %v1102, %v1100
  %v1199 = vpack.c.b16 %v1103, %v1101
  %v1200 = vpack.c.b16 %v1106, %v1104
  %v1201 = vpack.c.b16 %v1107, %v1105
  %v1202 = vpack.c.b16 %v1110, %v1108
  %v1203 = vpack.c.b16 %v1111, %v1109
  %v1204 = vpack.c.b16 %v1114, %v1112
  %v1205 = vpack.c.b16 %v1115, %v1113
  %v1206 = vpack.c.b16 %v1118, %v1116
  %v1207 = vpack.c.b16 %v1119, %v1117
  %v1208 = vpack.c.b16 %v1122, %v1120
  %v1209 = vpack.c.b16 %v1123, %v1121
  %v1210 = vpack.c.b16 %v1126, %v1124
  %v1211 = vpack.c.b16 %v1127, %v1125
  %v1212 = vpack.c.b16 %v1130, %v1128
  %v1213 = vpack.c.b16 %v1131, %v1129
  %v1214 = vpack.c.b16 %v1134, %v1132
  %v1215 = vpack.c.b16 %v1135, %v1133
  %v1216 = vpack.c.b16 %v1138, %v1136
  %v1217 = vpack.c.b16 %v1139, %v1137
  %v1218 = vpack.c.b16 %v1142, %v1140
  %v1219 = vpack.c.b16 %v1143, %v1141
  %v1220 = vpack.c.b16 %v1146, %v1144
  %v1221 = vpack.c.b16 %v1147, %v1145
  %v1222 = vpack.c.b16 %v1150, %v1148
  %v1223 = vpack.c.b16 %v1151, %v1149
  %v1224 = vpack.c.b16 %v1154, %v1152
  %v1225 = vpack.c.b16 %v1155, %v1153
  %v1226 = vpack.c.b16 %v1158, %v1156
  %v1227 = vpack.c.b16 %v1159, %v1157
  %v1228 = vpack.c.b16 %v1162, %v1160
  %v1229 = vpack.c.b16 %v1163, %v1161
  %v1230 = vpack.c.b16 %v1166, %v1164
  %v1231 = vpack.c.b16 %v1167, %v1165
  %1296 = vmatprep.subr.bf16.mxu0 %v1183
  %1297 = vmatpush1.bf16.msra.mxu0 %v1182
  %1298 = vmatprep.subr.bf16.mxu0 %v1181
  %1299 = vmatpush1.bf16.msra.mxu0 %v1180
  %1300 = vmatprep.subr.bf16.mxu0 %v1179
  %1301 = vmatpush1.bf16.msra.mxu0 %v1178
  %1302 = vmatprep.subr.bf16.mxu0 %v1177
  %1303 = vmatpush1.bf16.msra.mxu0 %v1176
  %1304 = vmatprep.subr.bf16.mxu0 %v1175
  %1305 = vmatpush1.bf16.msra.mxu0 %v1174
  %1306 = vmatprep.subr.bf16.mxu0 %v1173
  %1307 = vmatpush1.bf16.msra.mxu0 %v1172
  %1308 = vmatprep.subr.bf16.mxu0 %v1171
  %1309 = vmatpush1.bf16.msra.mxu0 %v1170
  %1310 = vmatprep.subr.bf16.mxu0 %v1169
  %1311 = vmatpush1.bf16.msra.mxu0 %v1168
  %1312 = vmatprep.subr.bf16.mxu0 %v1199
  %1313 = vmatpush2.bf16.msra.mxu0 %v1198
  %1314 = vmatprep.subr.bf16.mxu0 %v1197
  %1315 = vmatpush2.bf16.msra.mxu0 %v1196
  %1316 = vmatprep.subr.bf16.mxu0 %v1195
  %1317 = vmatpush2.bf16.msra.mxu0 %v1194
  %1318 = vmatprep.subr.bf16.mxu0 %v1193
  %1319 = vmatpush2.bf16.msra.mxu0 %v1192
  %1320 = vmatprep.subr.bf16.mxu0 %v1191
  %1321 = vmatpush2.bf16.msra.mxu0 %v1190
  %1322 = vmatprep.subr.bf16.mxu0 %v1189
  %1323 = vmatpush2.bf16.msra.mxu0 %v1188
  %1324 = vmatprep.subr.bf16.mxu0 %v1187
  %1325 = vmatpush2.bf16.msra.mxu0 %v1186
  %1326 = vmatprep.subr.bf16.mxu0 %v1185
  %1327 = vmatpush2.bf16.msra.mxu0 %v1184
  %1328 = vmatprep.mubr.bf16.mxu0 %v889
  %1329 = vmatmul.mubr.bf16.gmra.mxu0 %v888
  %v1330 = vpop.f32.mrf.mxu0
  %v1331 = vadd.f32 %v969, %v1330
  %v1332 = vpop.f32.mrf.mxu0
  %v1333 = vadd.f32 %v973, %v1332
  %v1334 = vpop.f32.mrf.mxu0
  %v1335 = vadd.f32 %v969, %v1334
  %v1336 = vpop.f32.mrf.mxu0
  %v1337 = vadd.f32 %v973, %v1336
  %1338 = vmatprep.mubr.bf16.mxu0 %v893
  %1339 = vmatmul.mubr.bf16.gmra.mxu0 %v892
  %v1340 = vpop.f32.mrf.mxu0
  %v1341 = vadd.f32 %v969, %v1340
  %v1342 = vpop.f32.mrf.mxu0
  %v1343 = vadd.f32 %v973, %v1342
  %v1344 = vpop.f32.mrf.mxu0
  %v1345 = vadd.f32 %v969, %v1344
  %v1346 = vpop.f32.mrf.mxu0
  %v1347 = vadd.f32 %v973, %v1346
  %1348 = vmatprep.mubr.bf16.mxu0 %v897
  %1349 = vmatmul.mubr.bf16.gmra.mxu0 %v896
  %v1350 = vpop.f32.mrf.mxu0
  %v1351 = vadd.f32 %v969, %v1350
  %v1352 = vpop.f32.mrf.mxu0
  %v1353 = vadd.f32 %v973, %v1352
  %v1354 = vpop.f32.mrf.mxu0
  %v1355 = vpop.f32.mrf.mxu0
  %1356 = vdwg.mxu0
  %1357 = vmatprep.subr.bf16.mxu0 %v1215
  %1358 = vmatpush1.bf16.msra.mxu0 %v1214
  %1359 = vmatprep.subr.bf16.mxu0 %v1213
  %1360 = vmatpush1.bf16.msra.mxu0 %v1212
  %1361 = vmatprep.subr.bf16.mxu0 %v1211
  %1362 = vmatpush1.bf16.msra.mxu0 %v1210
  %1363 = vmatprep.subr.bf16.mxu0 %v1209
  %1364 = vmatpush1.bf16.msra.mxu0 %v1208
  %1365 = vmatprep.subr.bf16.mxu0 %v1207
  %1366 = vmatpush1.bf16.msra.mxu0 %v1206
  %1367 = vmatprep.subr.bf16.mxu0 %v1205
  %1368 = vmatpush1.bf16.msra.mxu0 %v1204
  %1369 = vmatprep.subr.bf16.mxu0 %v1203
  %1370 = vmatpush1.bf16.msra.mxu0 %v1202
  %1371 = vmatprep.subr.bf16.mxu0 %v1201
  %1372 = vmatpush1.bf16.msra.mxu0 %v1200
  %1373 = vmatprep.subr.bf16.mxu0 %v1231
  %1374 = vmatpush2.bf16.msra.mxu0 %v1230
  %1375 = vmatprep.subr.bf16.mxu0 %v1229
  %1376 = vmatpush2.bf16.msra.mxu0 %v1228
  %1377 = vmatprep.subr.bf16.mxu0 %v1227
  %1378 = vmatpush2.bf16.msra.mxu0 %v1226
  %1379 = vmatprep.subr.bf16.mxu0 %v1225
  %1380 = vmatpush2.bf16.msra.mxu0 %v1224
  %1381 = vmatprep.subr.bf16.mxu0 %v1223
  %1382 = vmatpush2.bf16.msra.mxu0 %v1222
  %1383 = vmatprep.subr.bf16.mxu0 %v1221
  %1384 = vmatpush2.bf16.msra.mxu0 %v1220
  %1385 = vmatprep.subr.bf16.mxu0 %v1219
  %1386 = vmatpush2.bf16.msra.mxu0 %v1218
  %1387 = vmatprep.subr.bf16.mxu0 %v1217
  %1388 = vmatpush2.bf16.msra.mxu0 %v1216
  %1389 = vmatprep.mubr.bf16.mxu0 %v891
  %1390 = vmatmul.mubr.bf16.gmra.mxu0 %v890
  %v1391 = vpop.f32.mrf.mxu0
  %v1392 = vadd.f32 %v1331, %v1391
  %v1393 = vpop.f32.mrf.mxu0
  %v1394 = vadd.f32 %v1333, %v1393
  %v1395 = vpop.f32.mrf.mxu0
  %v1396 = vadd.f32 %v1335, %v1395
  %v1397 = vpop.f32.mrf.mxu0
  %v1398 = vadd.f32 %v1337, %v1397
  %1399 = vmatprep.mubr.bf16.mxu0 %v895
  %1400 = vmatmul.mubr.bf16.gmra.mxu0 %v894
  %v1401 = vpop.f32.mrf.mxu0
  %v1402 = vadd.f32 %v1341, %v1401
  %v1403 = vpop.f32.mrf.mxu0
  %v1404 = vadd.f32 %v1343, %v1403
  %v1405 = vpop.f32.mrf.mxu0
  %v1406 = vadd.f32 %v1345, %v1405
  %v1407 = vpop.f32.mrf.mxu0
  %v1408 = vadd.f32 %v1347, %v1407
  %1409 = vmatprep.mubr.bf16.mxu0 %v899
  %1410 = vmatmul.mubr.bf16.gmra.mxu0 %v898
  %v1411 = vpop.f32.mrf.mxu0
  %v1412 = vadd.f32 %v1351, %v1411
  %v1413 = vpop.f32.mrf.mxu0
  %v1414 = vadd.f32 %v1353, %v1413
  %v1415 = vpop.f32.mrf.mxu0
  %v1416 = vpop.f32.mrf.mxu0
  %1417 = vdwg.mxu0
  %v1418 = vadd.f32 %v54, %v1392
  %v1419 = vadd.f32 %v55, %v1394
  %v1420 = vadd.f32 %v56, %v1396
  %v1421 = vadd.f32 %v57, %v1398
  %v1422 = vadd.f32 %v58, %v1402
  %v1423 = vadd.f32 %v59, %v1404
  %v1424 = vadd.f32 %v60, %v1406
  %v1425 = vadd.f32 %v61, %v1408
  %v1426 = vadd.f32 %v62, %v1412
  %v1427 = vadd.f32 %v63, %v1414
  %1428 = vst [vmem:[%s8] sm:$0xff] %v1418
  %1429 = vst [vmem:[%s8 + $0x8] sm:$0xff] %v1419
  %1430 = vst [vmem:[%s8 + $0x10] sm:$0xff] %v1420
  %1431 = vst [vmem:[%s8 + $0x18] sm:$0xff] %v1421
  %1432 = vst [vmem:[%s8 + $0x20] sm:$0xff] %v1422
  %1433 = vst [vmem:[%s8 + $0x28] sm:$0xff] %v1423
  %1434 = vst [vmem:[%s8 + $0x30] sm:$0xff] %v1424
  %1435 = vst [vmem:[%s8 + $0x38] sm:$0xff] %v1425
  %1436 = vst [vmem:[%s8 + $0x40] sm:$0x3] %v1426
  %1437 = vst [vmem:[%s8 + $0x48] sm:$0x3] %v1427
  // Predicated region
  $region34: #{clip_layer_spatial.3} parent=0 // pred_check
    _
  $region35: #{clip_layer_spatial.3} parent=0 // pred_check_branch
    %1439 = sbr.rel (0) target = $region37
  $region36: #{clip_layer_spatial.3} parent=0 // pred_region
    _
  $region37: #{clip_layer_spatial.3} parent=0 // pred_fallthru
    _
  // Predicated region
  $region38: #{clip_layer_spatial.3} parent=0 // pred_check
    _
  $region39: #{clip_layer_spatial.3} parent=0 // pred_check_branch
    %1441 = sbr.rel (0) target = $region41
  $region40: #{clip_layer_spatial.3} parent=0 // pred_region
    _
  $region41: #{clip_layer_spatial.3} parent=0 // pred_fallthru
    _

// kernel: clip_layer_spatial.2
$region0: #{clip_layer_spatial.2}
  #allocation0 [shape = 'u32[]', space=smem, size = 0x4, offset = 0x4, fixed_abs, tag = 'smem constant byte address 0x4 - core index']
  #allocation1 [shape = 'u32[144,128]{1,0:T(1,128)}', space=vmem, size = 0x12000, scoped, tag = 'internal scratch']
  %s0 = inlined_call_operand.vmem [shape: f32[2,17,256], index: 0, kind: input, shape index: {}]
  %s1 = inlined_call_operand.vmem [shape: f32[1,256], index: 1, kind: input, shape index: {}]
  %s2 = inlined_call_operand.vmem [shape: f32[1,256], index: 2, kind: input, shape index: {}]
  %s3 = inlined_call_operand.hbm [shape: bf16[256,768], index: 3, kind: input, shape index: {}]
  %s4 = inlined_call_operand.vmem [shape: f32[1,768], index: 4, kind: input, shape index: {}]
  %s5 = inlined_call_operand.hbm [shape: bf16[256,256], index: 5, kind: input, shape index: {}]
  %s6 = inlined_call_operand.vmem [shape: f32[1,256], index: 6, kind: input, shape index: {}]
  %s7 = inlined_call_operand.vmem [shape: bf16[2,17,256], index: 7, kind: output, shape index: {}]
  %s8 = sld [smem:[#allocation0]]
  $region69: #{clip_layer_spatial.2} parent=0
    _
  %s10 = ssub.s32 1, %s8
  %s11 = scalar_select 0, %s10, %s8
  $region1: #{clip_layer_spatial.2} parent=0
    #allocation2 [shape = 'u8[393216]{0}', space=vmem, size = 0x60000, scoped, tag = 'input window, operand 3, single buffered']
    #allocation3 [shape = 's32[2]{0}', space=sflag, size = 0x8, scoped, tag = 'scoped memory for clip_layer_spatial.2']
    #allocation4 [shape = 'u8[131072]{0}', space=vmem, size = 0x20000, scoped, tag = 'input window, operand 5, single buffered']
    #allocation5 [shape = 's32[1]{0}', space=sflag, size = 0x4, scoped, tag = 'scoped memory for clip_layer_spatial.2']
    %12 = vsyncpa [#allocation3], 0
    %13 = vsyncpa [#allocation5], 0
    loop: start=0, step=1, limit=4
    $region2: #{clip_layer_spatial.2} parent=1 // loop_pre_header
      _
    $region3: #{clip_layer_spatial.2} parent=1 // loop_header
      %s15 = sphi 0, %s19
      %p16 = scmp.ge.s32.totalorder %s15, 4
      %s25 = sphi 0, %s27
      %s28 = sphi 0, %s25
      %s29 = sphi 0, %s28
      %s45 = sphi 0, %s29
      %s49 = sphi 0, %s49
      %s51 = sphi 0, %s49
      %s52 = sphi 0, %s51
      %s66 = sphi 0, %s52
      %s70 = sphi 0, %s70
      %s72 = sphi 0, %s70
      %s73 = sphi 0, %s72
      %s87 = sphi 0, %s73
      %s91 = sphi 0, %s91
      %s93 = sphi 0, %s91
      %s94 = sphi 0, %s93
      %s108 = sphi 0, %s94
      %s112 = sphi 0, %s112
      %s114 = sphi 0, %s112
      %s115 = sphi 0, %s114
      %s129 = sphi 0, %s115
      %s133 = sphi 0, %s133
      %s135 = sphi 0, %s133
      %s136 = sphi 0, %s135
      %s150 = sphi 0, %s136
      %s154 = sphi 0, %s154
      %s156 = sphi 0, %s154
      %s157 = sphi 0, %s156
      %s171 = sphi 0, %s157
      %s177 = sphi 0, %s179
      %s180 = sphi 0, %s177
      %s181 = sphi 0, %s180
      %s197 = sphi 0, %s181
    $region4: #{clip_layer_spatial.2} parent=1 // loop_header_branch
      %18 = sbr.rel (%p16) target = $region8
    $region5: #{clip_layer_spatial.2} parent=1 // loop_body
      %s20 = ssub.s32 %s15, 1
      %s21 = ssub.s32 %s15, 2
      %s22 = sadd.s32 %s15, 1
      %s23 = ssub.s32 %s15, %s22
      %p24 = scmp.eq.s32.totalorder %s23, 0
      %s26 = sadd.s32 %s25, 1
      %s27 = scalar_select %p24, %s25, %s26
      %p30 = pneg %p24
      %p31 = scmp.eq.s32.totalorder %s15, 1
      %p32 = por %p30, %p31
      %p33 = scmp.ne.s32.totalorder %s25, %s28
      %p34 = scmp.eq.s32.totalorder %s15, 0
      %p35 = por %p33, %p34
      %p36 = scmp.ne.s32.totalorder %s25, %s28
      %p37 = scmp.eq.s32.totalorder %s20, 1
      %p38 = por %p36, %p37
      %p39 = scmp.ne.s32.totalorder %s28, %s29
      %p40 = scmp.eq.s32.totalorder %s20, 0
      %p41 = por %p39, %p40
      %p42 = scmp.ne.s32.totalorder %s28, %s29
      %p43 = scmp.eq.s32.totalorder %s21, 1
      %p44 = por %p42, %p43
      %p46 = scmp.ne.s32.totalorder %s29, %s45
      %p47 = scmp.eq.s32.totalorder %s21, 0
      %p48 = por %p46, %p47
      %s50 = sadd.s32 %s49, 1
      %p53 = scmp.eq.s32.totalorder %s15, 1
      %p54 = scmp.ne.s32.totalorder %s49, %s51
      %p55 = scmp.eq.s32.totalorder %s15, 0
      %p56 = por %p54, %p55
      %p57 = scmp.ne.s32.totalorder %s49, %s51
      %p58 = scmp.eq.s32.totalorder %s20, 1
      %p59 = por %p57, %p58
      %p60 = scmp.ne.s32.totalorder %s51, %s52
      %p61 = scmp.eq.s32.totalorder %s20, 0
      %p62 = por %p60, %p61
      %p63 = scmp.ne.s32.totalorder %s51, %s52
      %p64 = scmp.eq.s32.totalorder %s21, 1
      %p65 = por %p63, %p64
      %p67 = scmp.ne.s32.totalorder %s52, %s66
      %p68 = scmp.eq.s32.totalorder %s21, 0
      %p69 = por %p67, %p68
      %s71 = sadd.s32 %s70, 1
      %p74 = scmp.eq.s32.totalorder %s15, 1
      %p75 = scmp.ne.s32.totalorder %s70, %s72
      %p76 = scmp.eq.s32.totalorder %s15, 0
      %p77 = por %p75, %p76
      %p78 = scmp.ne.s32.totalorder %s70, %s72
      %p79 = scmp.eq.s32.totalorder %s20, 1
      %p80 = por %p78, %p79
      %p81 = scmp.ne.s32.totalorder %s72, %s73
      %p82 = scmp.eq.s32.totalorder %s20, 0
      %p83 = por %p81, %p82
      %p84 = scmp.ne.s32.totalorder %s72, %s73
      %p85 = scmp.eq.s32.totalorder %s21, 1
      %p86 = por %p84, %p85
      %p88 = scmp.ne.s32.totalorder %s73, %s87
      %p89 = scmp.eq.s32.totalorder %s21, 0
      %p90 = por %p88, %p89
      %s92 = sadd.s32 %s91, 1
      %p95 = scmp.eq.s32.totalorder %s15, 1
      %p96 = scmp.ne.s32.totalorder %s91, %s93
      %p97 = scmp.eq.s32.totalorder %s15, 0
      %p98 = por %p96, %p97
      %p99 = scmp.ne.s32.totalorder %s91, %s93
      %p100 = scmp.eq.s32.totalorder %s20, 1
      %p101 = por %p99, %p100
      %p102 = scmp.ne.s32.totalorder %s93, %s94
      %p103 = scmp.eq.s32.totalorder %s20, 0
      %p104 = por %p102, %p103
      %p105 = scmp.ne.s32.totalorder %s93, %s94
      %p106 = scmp.eq.s32.totalorder %s21, 1
      %p107 = por %p105, %p106
      %p109 = scmp.ne.s32.totalorder %s94, %s108
      %p110 = scmp.eq.s32.totalorder %s21, 0
      %p111 = por %p109, %p110
      %s113 = sadd.s32 %s112, 1
      %p116 = scmp.eq.s32.totalorder %s15, 1
      %p117 = scmp.ne.s32.totalorder %s112, %s114
      %p118 = scmp.eq.s32.totalorder %s15, 0
      %p119 = por %p117, %p118
      %p120 = scmp.ne.s32.totalorder %s112, %s114
      %p121 = scmp.eq.s32.totalorder %s20, 1
      %p122 = por %p120, %p121
      %p123 = scmp.ne.s32.totalorder %s114, %s115
      %p124 = scmp.eq.s32.totalorder %s20, 0
      %p125 = por %p123, %p124
      %p126 = scmp.ne.s32.totalorder %s114, %s115
      %p127 = scmp.eq.s32.totalorder %s21, 1
      %p128 = por %p126, %p127
      %p130 = scmp.ne.s32.totalorder %s115, %s129
      %p131 = scmp.eq.s32.totalorder %s21, 0
      %p132 = por %p130, %p131
      %s134 = sadd.s32 %s133, 1
      %p137 = scmp.eq.s32.totalorder %s15, 1
      %p138 = scmp.ne.s32.totalorder %s133, %s135
      %p139 = scmp.eq.s32.totalorder %s15, 0
      %p140 = por %p138, %p139
      %p141 = scmp.ne.s32.totalorder %s133, %s135
      %p142 = scmp.eq.s32.totalorder %s20, 1
      %p143 = por %p141, %p142
      %p144 = scmp.ne.s32.totalorder %s135, %s136
      %p145 = scmp.eq.s32.totalorder %s20, 0
      %p146 = por %p144, %p145
      %p147 = scmp.ne.s32.totalorder %s135, %s136
      %p148 = scmp.eq.s32.totalorder %s21, 1
      %p149 = por %p147, %p148
      %p151 = scmp.ne.s32.totalorder %s136, %s150
      %p152 = scmp.eq.s32.totalorder %s21, 0
      %p153 = por %p151, %p152
      %s155 = sadd.s32 %s154, 1
      %p158 = scmp.eq.s32.totalorder %s15, 1
      %p159 = scmp.ne.s32.totalorder %s154, %s156
      %p160 = scmp.eq.s32.totalorder %s15, 0
      %p161 = por %p159, %p160
      %p162 = scmp.ne.s32.totalorder %s154, %s156
      %p163 = scmp.eq.s32.totalorder %s20, 1
      %p164 = por %p162, %p163
      %p165 = scmp.ne.s32.totalorder %s156, %s157
      %p166 = scmp.eq.s32.totalorder %s20, 0
      %p167 = por %p165, %p166
      %p168 = scmp.ne.s32.totalorder %s156, %s157
      %p169 = scmp.eq.s32.totalorder %s21, 1
      %p170 = por %p168, %p169
      %p172 = scmp.ne.s32.totalorder %s157, %s171
      %p173 = scmp.eq.s32.totalorder %s21, 0
      %p174 = por %p172, %p173
      %s175 = ssub.s32 %s15, %s22
      %p176 = scmp.eq.s32.totalorder %s175, 0
      %s178 = sadd.s32 %s177, 1
      %s179 = scalar_select %p176, %s177, %s178
      %p182 = pneg %p176
      %p183 = scmp.eq.s32.totalorder %s15, 1
      %p184 = por %p182, %p183
      %p185 = scmp.ne.s32.totalorder %s177, %s180
      %p186 = scmp.eq.s32.totalorder %s15, 0
      %p187 = por %p185, %p186
      %p188 = scmp.ne.s32.totalorder %s177, %s180
      %p189 = scmp.eq.s32.totalorder %s20, 1
      %p190 = por %p188, %p189
      %p191 = scmp.ne.s32.totalorder %s180, %s181
      %p192 = scmp.eq.s32.totalorder %s20, 0
      %p193 = por %p191, %p192
      %p194 = scmp.ne.s32.totalorder %s180, %s181
      %p195 = scmp.eq.s32.totalorder %s21, 1
      %p196 = por %p194, %p195
      %p198 = scmp.ne.s32.totalorder %s181, %s197
      %p199 = scmp.eq.s32.totalorder %s21, 0
      %p200 = por %p198, %p199
      %p201 = scmp.le.s32.totalorder 1, %s15
      %p202 = scmp.lt.s32.totalorder %s15, 3
      %p203 = pnand %p201, %p202
      %p204 = pneg %p203
      // Predicated region
      $region9: #{clip_layer_spatial.2} parent=5 // pred_check
        _
      $region10: #{clip_layer_spatial.2} parent=5 // pred_check_branch
        %206 = sbr.rel (%p203) target = $region12
      $region11: #{clip_layer_spatial.2} parent=5 // pred_region
        %s207 = ssub.s32 %s15, 1
        // Predicated region
        $region13: #{clip_layer_spatial.2} parent=11 // pred_check
          %p208 = pneg %p62
        $region14: #{clip_layer_spatial.2} parent=11 // pred_check_branch
          %210 = sbr.rel (%p208) target = $region16
        $region15: #{clip_layer_spatial.2} parent=11 // pred_region
          _
        $region16: #{clip_layer_spatial.2} parent=11 // pred_fallthru
          _
        // Predicated region
        $region17: #{clip_layer_spatial.2} parent=11 // pred_check
          %p211 = pneg %p83
        $region18: #{clip_layer_spatial.2} parent=11 // pred_check_branch
          %213 = sbr.rel (%p211) target = $region20
        $region19: #{clip_layer_spatial.2} parent=11 // pred_region
          _
        $region20: #{clip_layer_spatial.2} parent=11 // pred_fallthru
          _
        // Predicated region
        $region21: #{clip_layer_spatial.2} parent=11 // pred_check
          %p214 = pneg %p104
        $region22: #{clip_layer_spatial.2} parent=11 // pred_check_branch
          %216 = sbr.rel (%p214) target = $region24
        $region23: #{clip_layer_spatial.2} parent=11 // pred_region
          %s218 = ssub.s32 12288, 12288
          %219 = vsyncadd [#allocation3], %s218
          %s220 = sshll.u32 [#allocation2], 4
          %s221 = int_to_ptr.vmem [resolvable:$true] %s220
          %226 = dma.hbm_to_vmem [thread:$0]  %s3, 12288, %s221, [#allocation3], 384, 384, 24
        $region24: #{clip_layer_spatial.2} parent=11 // pred_fallthru
          _
        // Predicated region
        $region25: #{clip_layer_spatial.2} parent=11 // pred_check
          %p227 = pneg %p125
        $region26: #{clip_layer_spatial.2} parent=11 // pred_check_branch
          %229 = sbr.rel (%p227) target = $region28
        $region27: #{clip_layer_spatial.2} parent=11 // pred_region
          _
        $region28: #{clip_layer_spatial.2} parent=11 // pred_fallthru
          _
        // Predicated region
        $region29: #{clip_layer_spatial.2} parent=11 // pred_check
          %p230 = pneg %p146
        $region30: #{clip_layer_spatial.2} parent=11 // pred_check_branch
          %232 = sbr.rel (%p230) target = $region32
        $region31: #{clip_layer_spatial.2} parent=11 // pred_region
          %s234 = ssub.s32 4096, 4096
          %235 = vsyncadd [#allocation5], %s234
          %s236 = sshll.u32 [#allocation4], 4
          %s237 = int_to_ptr.vmem [resolvable:$true] %s236
          %242 = dma.hbm_to_vmem [thread:$0]  %s5, 4096, %s237, [#allocation5], 128, 128, 8
        $region32: #{clip_layer_spatial.2} parent=11 // pred_fallthru
          _
        // Predicated region
        $region33: #{clip_layer_spatial.2} parent=11 // pred_check
          %p243 = pneg %p167
        $region34: #{clip_layer_spatial.2} parent=11 // pred_check_branch
          %245 = sbr.rel (%p243) target = $region36
        $region35: #{clip_layer_spatial.2} parent=11 // pred_region
          _
        $region36: #{clip_layer_spatial.2} parent=11 // pred_fallthru
          _
      $region12: #{clip_layer_spatial.2} parent=5 // pred_fallthru
        _
      %p246 = scmp.lt.s32.totalorder %s15, 2
      // Predicated region
      $region37: #{clip_layer_spatial.2} parent=5 // pred_check
        %p247 = pneg %p246
      $region38: #{clip_layer_spatial.2} parent=5 // pred_check_branch
        %249 = sbr.rel (%p247) target = $region40
      $region39: #{clip_layer_spatial.2} parent=5 // pred_region
        // Predicated region
        $region41: #{clip_layer_spatial.2} parent=39 // pred_check
          %p250 = pneg %p35
        $region42: #{clip_layer_spatial.2} parent=39 // pred_check_branch
          %252 = sbr.rel (%p250) target = $region44
        $region43: #{clip_layer_spatial.2} parent=39 // pred_region
          %p253 = scmp.lt.s32.totalorder %s15, 1
          %s254 = scalar_select %p253, %s15, 1
          %s255 = smul.addr %s254, 6
          %s256 = smul.addr %s255, 8
          %s257 = scalar_lea.vmem %s0, %s256
        $region44: #{clip_layer_spatial.2} parent=39 // pred_fallthru
          _
      $region40: #{clip_layer_spatial.2} parent=5 // pred_fallthru
        _
      %p258 = scmp.le.s32.totalorder 1, %s15
      %p259 = scmp.lt.s32.totalorder %s15, 3
      %p260 = pnand %p258, %p259
      %p261 = pneg %p260
      // Predicated region
      $region45: #{clip_layer_spatial.2} parent=5 // pred_check
        _
      $region46: #{clip_layer_spatial.2} parent=5 // pred_check_branch
        %263 = sbr.rel (%p260) target = $region48
      $region47: #{clip_layer_spatial.2} parent=5 // pred_region
        %s264 = ssub.s32 %s15, 1
        // Predicated region
        $region49: #{clip_layer_spatial.2} parent=47 // pred_check
          %p265 = pneg %p104
        $region50: #{clip_layer_spatial.2} parent=47 // pred_check_branch
          %267 = sbr.rel (%p265) target = $region52
        $region51: #{clip_layer_spatial.2} parent=47 // pred_region
          %268 = dma.done [#allocation3], 12288
        $region52: #{clip_layer_spatial.2} parent=47 // pred_fallthru
          _
        // Predicated region
        $region53: #{clip_layer_spatial.2} parent=47 // pred_check
          %p269 = pneg %p146
        $region54: #{clip_layer_spatial.2} parent=47 // pred_check_branch
          %271 = sbr.rel (%p269) target = $region56
        $region55: #{clip_layer_spatial.2} parent=47 // pred_region
          %272 = dma.done [#allocation5], 4096
        $region56: #{clip_layer_spatial.2} parent=47 // pred_fallthru
          _
        %p273 = scmp.lt.s32.totalorder %s20, 1
        %s274 = scalar_select %p273, %s20, 1
        %s275 = smul.addr %s274, 6
        %s276 = smul.addr %s275, 8
        %s277 = scalar_lea.vmem %s0, %s276
        %p278 = pneg %p41
        %p279 = pneg %p38
        %p280 = pneg %p62
        %p281 = pneg %p59
        %p282 = pneg %p83
        %p283 = pneg %p80
        %p284 = pneg %p104
        %p285 = pneg %p101
        %p286 = pneg %p125
        %p287 = pneg %p122
        %p288 = pneg %p146
        %p289 = pneg %p143
        %p290 = pneg %p167
        %p291 = pneg %p164
        %p292 = pneg %p193
        %p293 = pneg %p190
        %p294 = scmp.lt.s32.totalorder %s20, 1
        %s295 = scalar_select %p294, %s20, 1
        %s296 = smul.addr %s295, 6
        %s297 = smul.addr %s296, 4
        %s298 = scalar_lea.vmem %s7, %s297
        %p299 = scmp.lt.s32.totalorder %s20, 1
        %s300 = scalar_select %p299, %s20, 1
        %s301 = smul.addr %s300, 6
        %s302 = smul.addr %s301, 8
        %s303 = scalar_lea.vmem %s0, %s302
        %p304 = scmp.lt.s32.totalorder %s20, 1
        %s305 = scalar_select %p304, %s20, 1
        %s306 = smul.addr %s305, 6
        %s307 = smul.addr %s306, 4
        %s308 = scalar_lea.vmem %s7, %s307
        %v310 = vld [vmem:[%s303] sm:$0xff]
        %v311 = vld [vmem:[%s303 + $0x8] sm:$0xff]
        %v312 = vld [vmem:[%s303 + $0x10] sm:$0xff]
        %v313 = vld [vmem:[%s303 + $0x18] sm:$0xff]
        %v314 = vld [vmem:[%s303 + $0x20] sm:$0x1]
        %v315 = vld [vmem:[%s303 + $0x28] sm:$0x1]
        %v322 = vcombine.low %v310, %v311
        %v323 = vcombine.high %v310, %v311
        %v325 = vunpack.c.l.s4 1983009808
        %v326 = vunpack.c.0.s8 %v325
        %v327 = vlaneseq
        %v328 = vshrl.u32 %v327, 7
        %v329 = vsub.s32 %v326, %v328
        %v330 = vrot.slane %v322, %v329
        %v332 = vunpack.c.l.s4 1983009808
        %v333 = vunpack.c.0.s8 %v332
        %v334 = vlaneseq
        %v335 = vshrl.u32 %v334, 7
        %v336 = vsub.s32 %v333, %v335
        %v337 = vrot.slane %v323, %v336
        %v338 = vcombine.high %v330, %v330
        %v339 = vcombine.high %v337, %v337
        %v340 = vcombine.low %v312, %v313
        %v341 = vcombine.high %v312, %v313
        %v343 = vunpack.c.l.s4 1983009808
        %v344 = vunpack.c.0.s8 %v343
        %v345 = vlaneseq
        %v346 = vshrl.u32 %v345, 7
        %v347 = vsub.s32 %v344, %v346
        %v348 = vrot.slane %v340, %v347
        %v350 = vunpack.c.l.s4 1983009808
        %v351 = vunpack.c.0.s8 %v350
        %v352 = vlaneseq
        %v353 = vshrl.u32 %v352, 7
        %v354 = vsub.s32 %v351, %v353
        %v355 = vrot.slane %v341, %v354
        %v356 = vcombine.high %v348, %v348
        %v357 = vcombine.high %v355, %v355
        %v358 = vcombine.low %v314, %v315
        %v360 = vunpack.c.l.s4 1983009808
        %v361 = vunpack.c.0.s8 %v360
        %v362 = vlaneseq
        %v363 = vshrl.u32 %v362, 7
        %v364 = vsub.s32 %v361, %v363
        %v365 = vrot.slane %v358, %v364
        %vm366 = vcmask 1040384
        %vm367 = vcmask 1042434
        %vm368 = vmor %vm366, %vm367
        %vm369 = vcmask 1044484
        %vm370 = vmor %vm368, %vm369
        %vm371 = vcmask 1046534
        %vm372 = vmor %vm370, %vm371
        %v373 = vrot.slane %v330, 7
        %v374 = vrot.slane %v373, 2
        %v375 = vrot.slane %v338, 7
        %v376 = vsel %vm372, %v374, %v375
        %v377 = vrot.slane %v375, 2
        %v378 = vrot.slane %v337, 7
        %v379 = vsel %vm372, %v377, %v378
        %v380 = vrot.slane %v378, 2
        %v381 = vrot.slane %v339, 7
        %v382 = vsel %vm372, %v380, %v381
        %v383 = vrot.slane %v381, 2
        %v384 = vrot.slane %v348, 7
        %v385 = vsel %vm372, %v383, %v384
        %v386 = vrot.slane %v384, 2
        %v387 = vrot.slane %v356, 7
        %v388 = vsel %vm372, %v386, %v387
        %v389 = vrot.slane %v387, 2
        %v390 = vrot.slane %v355, 7
        %v391 = vsel %vm372, %v389, %v390
        %v392 = vrot.slane %v390, 2
        %v393 = vrot.slane %v357, 7
        %v394 = vsel %vm372, %v392, %v393
        %v395 = vrot.slane %v393, 2
        %v396 = vrot.slane %v365, 7
        %v397 = vsel %vm372, %v395, %v396
        %v406 = vcombine.low %v376, %v379
        %v408 = vunpack.c.l.s4 1934713408
        %v409 = vunpack.c.0.s8 %v408
        %v410 = vlaneseq
        %v411 = vshrl.u32 %v410, 7
        %v412 = vsub.s32 %v409, %v411
        %v413 = vrot.slane %v406, %v412
        %v414 = vcombine.high %v413, 0.0
        %v415 = vcombine.low %v382, %v385
        %v417 = vunpack.c.l.s4 1934713408
        %v418 = vunpack.c.0.s8 %v417
        %v419 = vlaneseq
        %v420 = vshrl.u32 %v419, 7
        %v421 = vsub.s32 %v418, %v420
        %v422 = vrot.slane %v415, %v421
        %v423 = vcombine.high %v422, 0.0
        %v424 = vcombine.low %v388, %v391
        %v426 = vunpack.c.l.s4 1934713408
        %v427 = vunpack.c.0.s8 %v426
        %v428 = vlaneseq
        %v429 = vshrl.u32 %v428, 7
        %v430 = vsub.s32 %v427, %v429
        %v431 = vrot.slane %v424, %v430
        %v432 = vcombine.high %v431, 0.0
        %v433 = vcombine.low %v394, %v397
        %v435 = vunpack.c.l.s4 1934713408
        %v436 = vunpack.c.0.s8 %v435
        %v437 = vlaneseq
        %v438 = vshrl.u32 %v437, 7
        %v439 = vsub.s32 %v436, %v438
        %v440 = vrot.slane %v433, %v439
        %v441 = vcombine.high %v440, 0.0
        %v450 = vcombine.low %v413, %v422
        %v451 = vcombine.low %v431, %v440
        %v453 = vunpack.c.l.s4 1983009808
        %v454 = vunpack.c.0.s8 %v453
        %v455 = vlaneseq
        %v456 = vshrl.u32 %v455, 7
        %v457 = vsub.s32 %v454, %v456
        %v458 = vrot.slane %v450, %v457
        %v460 = vunpack.c.l.s4 1983009808
        %v461 = vunpack.c.0.s8 %v460
        %v462 = vlaneseq
        %v463 = vshrl.u32 %v462, 7
        %v464 = vsub.s32 %v461, %v463
        %v465 = vrot.slane %v451, %v464
        %v466 = vcombine.low %v458, %v465
        %v467 = vcombine.high %v458, %v465
        %v468 = vcombine.low %v414, %v423
        %v469 = vcombine.low %v432, %v441
        %v471 = vunpack.c.l.s4 1983009808
        %v472 = vunpack.c.0.s8 %v471
        %v473 = vlaneseq
        %v474 = vshrl.u32 %v473, 7
        %v475 = vsub.s32 %v472, %v474
        %v476 = vrot.slane %v468, %v475
        %v478 = vunpack.c.l.s4 1983009808
        %v479 = vunpack.c.0.s8 %v478
        %v480 = vlaneseq
        %v481 = vshrl.u32 %v480, 7
        %v482 = vsub.s32 %v479, %v481
        %v483 = vrot.slane %v469, %v482
        %v484 = vcombine.low %v476, %v483
        %v485 = vcombine.high %v476, %v483
        %v486 = vrot.slane %v466, 7
        %v487 = vrot.slane %v467, 7
        %v488 = vrot.slane %v484, 7
        %v489 = vrot.slane %v485, 7
        %v494 = vsel %vm366, %v310, %v486
        %v495 = vsel %vm366, %v311, %v487
        %v496 = vsel %vm366, %v310, %v488
        %v497 = vsel %vm366, %v311, %v489
        %v498 = vld [vmem:[%s1] sm:$0x3]
        %v499 = vld [vmem:[%s2] sm:$0x3]
        %v500 = vadd.f32 %v494, %v495
        %501 = vadd.xlane.f32.xlu0 %v500
        %v502 = vpop.xlane.xlu0 %501
        %v503 = vsel %vm366, %v486, 0.0
        %v504 = vsel %vm366, %v487, 0.0
        %v505 = vadd.f32 %v503, %v504
        %506 = vadd.xlane.f32.xlu0 %v505
        %v507 = vpop.xlane.xlu0 %506
        %v508 = vadd.f32 %v496, %v497
        %509 = vadd.xlane.f32.xlu0 %v508
        %v510 = vpop.xlane.xlu0 %509
        %v511 = vsel %vm366, %v488, 0.0
        %v512 = vsel %vm366, %v489, 0.0
        %v513 = vadd.f32 %v511, %v512
        %514 = vadd.xlane.f32.xlu0 %v513
        %v515 = vpop.xlane.xlu0 %514
        %v516 = vrcp.pop 256.0
        %v517 = vmul.f32 %v502, %v516
        %v518 = vmul.f32 %v507, %v516
        %v519 = vmul.f32 %v510, %v516
        %v520 = vmul.f32 %v515, %v516
        %v521 = vsub.f32 %v494, %v517
        %v522 = vsub.f32 %v495, %v517
        %v523 = vsub.f32 %v486, %v518
        %v524 = vsub.f32 %v487, %v518
        %v525 = vsub.f32 %v496, %v519
        %v526 = vsub.f32 %v497, %v519
        %v527 = vsub.f32 %v488, %v520
        %v528 = vsub.f32 %v489, %v520
        %v529 = vmul.f32 %v521, %v521
        %v530 = vmul.f32 %v522, %v522
        %v531 = vmul.f32 %v523, %v523
        %v532 = vmul.f32 %v524, %v524
        %v533 = vmul.f32 %v525, %v525
        %v534 = vmul.f32 %v526, %v526
        %v535 = vmul.f32 %v527, %v527
        %v536 = vmul.f32 %v528, %v528
        %v537 = vadd.f32 %v529, %v530
        %538 = vadd.xlane.f32.xlu0 %v537
        %v539 = vpop.xlane.xlu0 %538
        %v540 = vsel %vm366, %v531, 0.0
        %v541 = vsel %vm366, %v532, 0.0
        %v542 = vadd.f32 %v540, %v541
        %543 = vadd.xlane.f32.xlu0 %v542
        %v544 = vpop.xlane.xlu0 %543
        %v545 = vadd.f32 %v533, %v534
        %546 = vadd.xlane.f32.xlu0 %v545
        %v547 = vpop.xlane.xlu0 %546
        %v548 = vsel %vm366, %v535, 0.0
        %v549 = vsel %vm366, %v536, 0.0
        %v550 = vadd.f32 %v548, %v549
        %551 = vadd.xlane.f32.xlu0 %v550
        %v552 = vpop.xlane.xlu0 %551
        %v553 = vmul.f32 %v539, %v516
        %v554 = vmul.f32 %v544, %v516
        %v555 = vmul.f32 %v547, %v516
        %v556 = vmul.f32 %v552, %v516
        %v557 = vadd.f32 %v553, 1e-05
        %v558 = vadd.f32 %v554, 1e-05
        %v559 = vadd.f32 %v555, 1e-05
        %v560 = vadd.f32 %v556, 1e-05
        %v561 = vrsqrt.pop %v557
        %v562 = vrsqrt.pop %v558
        %v563 = vrsqrt.pop %v559
        %v564 = vrsqrt.pop %v560
        %v565 = vmul.f32 %v521, %v561
        %v566 = vmul.f32 %v522, %v561
        %v567 = vmul.f32 %v523, %v562
        %v568 = vmul.f32 %v524, %v562
        %v569 = vmul.f32 %v525, %v563
        %v570 = vmul.f32 %v526, %v563
        %v571 = vmul.f32 %v527, %v564
        %v572 = vmul.f32 %v528, %v564
        %v574 = vlaneseq
        %v575 = vshrl.u32 %v574, 7
        %v576 = vsub.s32 0, %v575
        %v577 = vrot.slane %v498, %v576
        %v578 = vlaneseq
        %v579 = vshrl.u32 %v578, 7
        %v580 = vsub.s32 1, %v579
        %v581 = vrot.slane %v498, %v580
        %v584 = vmul.f32 %v565, %v577
        %v585 = vmul.f32 %v566, %v581
        %v586 = vmul.f32 %v567, %v577
        %v587 = vmul.f32 %v568, %v581
        %v588 = vmul.f32 %v569, %v577
        %v589 = vmul.f32 %v570, %v581
        %v590 = vmul.f32 %v571, %v577
        %v591 = vmul.f32 %v572, %v581
        %v593 = vlaneseq
        %v594 = vshrl.u32 %v593, 7
        %v595 = vsub.s32 0, %v594
        %v596 = vrot.slane %v499, %v595
        %v597 = vlaneseq
        %v598 = vshrl.u32 %v597, 7
        %v599 = vsub.s32 1, %v598
        %v600 = vrot.slane %v499, %v599
        %v603 = vadd.f32 %v584, %v596
        %v604 = vadd.f32 %v585, %v600
        %v605 = vadd.f32 %v586, %v596
        %v606 = vadd.f32 %v587, %v600
        %v607 = vadd.f32 %v588, %v596
        %v608 = vadd.f32 %v589, %v600
        %v609 = vadd.f32 %v590, %v596
        %v610 = vadd.f32 %v591, %v600
        %v619 = vcombine.low %v603, %v604
        %v620 = vcombine.high %v603, %v604
        %v622 = vunpack.c.l.s4 1966171168
        %v623 = vunpack.c.0.s8 %v622
        %v624 = vlaneseq
        %v625 = vshrl.u32 %v624, 7
        %v626 = vsub.s32 %v623, %v625
        %v627 = vrot.slane %v619, %v626
        %v629 = vunpack.c.l.s4 1966171168
        %v630 = vunpack.c.0.s8 %v629
        %v631 = vlaneseq
        %v632 = vshrl.u32 %v631, 7
        %v633 = vsub.s32 %v630, %v632
        %v634 = vrot.slane %v620, %v633
        %v635 = vcombine.high %v627, %v627
        %v636 = vcombine.high %v634, %v634
        %v638 = vunpack.c.l.s4 1966171168
        %v639 = vunpack.c.0.s8 %v638
        %v640 = vlaneseq
        %v641 = vshrl.u32 %v640, 7
        %v642 = vsub.s32 %v639, %v641
        %v643 = vrot.slane %v627, %v642
        %v645 = vunpack.c.l.s4 1966171168
        %v646 = vunpack.c.0.s8 %v645
        %v647 = vlaneseq
        %v648 = vshrl.u32 %v647, 7
        %v649 = vsub.s32 %v646, %v648
        %v650 = vrot.slane %v634, %v649
        %v652 = vunpack.c.l.s4 1966171168
        %v653 = vunpack.c.0.s8 %v652
        %v654 = vlaneseq
        %v655 = vshrl.u32 %v654, 7
        %v656 = vsub.s32 %v653, %v655
        %v657 = vrot.slane %v635, %v656
        %v659 = vunpack.c.l.s4 1966171168
        %v660 = vunpack.c.0.s8 %v659
        %v661 = vlaneseq
        %v662 = vshrl.u32 %v661, 7
        %v663 = vsub.s32 %v660, %v662
        %v664 = vrot.slane %v636, %v663
        %v665 = vcombine.high %v643, %v643
        %v666 = vcombine.high %v650, %v650
        %v667 = vcombine.high %v657, %v657
        %v668 = vcombine.high %v664, %v664
        %v669 = vcombine.low %v605, %v606
        %v671 = vunpack.c.l.s4 1966171168
        %v672 = vunpack.c.0.s8 %v671
        %v673 = vlaneseq
        %v674 = vshrl.u32 %v673, 7
        %v675 = vsub.s32 %v672, %v674
        %v676 = vrot.slane %v669, %v675
        %v678 = vunpack.c.l.s4 1966171168
        %v679 = vunpack.c.0.s8 %v678
        %v680 = vlaneseq
        %v681 = vshrl.u32 %v680, 7
        %v682 = vsub.s32 %v679, %v681
        %v683 = vrot.slane %v676, %v682
        %v684 = vcombine.low %v607, %v608
        %v685 = vcombine.high %v607, %v608
        %v687 = vunpack.c.l.s4 1966171168
        %v688 = vunpack.c.0.s8 %v687
        %v689 = vlaneseq
        %v690 = vshrl.u32 %v689, 7
        %v691 = vsub.s32 %v688, %v690
        %v692 = vrot.slane %v684, %v691
        %v694 = vunpack.c.l.s4 1966171168
        %v695 = vunpack.c.0.s8 %v694
        %v696 = vlaneseq
        %v697 = vshrl.u32 %v696, 7
        %v698 = vsub.s32 %v695, %v697
        %v699 = vrot.slane %v685, %v698
        %v700 = vcombine.high %v692, %v692
        %v701 = vcombine.high %v699, %v699
        %v703 = vunpack.c.l.s4 1966171168
        %v704 = vunpack.c.0.s8 %v703
        %v705 = vlaneseq
        %v706 = vshrl.u32 %v705, 7
        %v707 = vsub.s32 %v704, %v706
        %v708 = vrot.slane %v692, %v707
        %v710 = vunpack.c.l.s4 1966171168
        %v711 = vunpack.c.0.s8 %v710
        %v712 = vlaneseq
        %v713 = vshrl.u32 %v712, 7
        %v714 = vsub.s32 %v711, %v713
        %v715 = vrot.slane %v699, %v714
        %v717 = vunpack.c.l.s4 1966171168
        %v718 = vunpack.c.0.s8 %v717
        %v719 = vlaneseq
        %v720 = vshrl.u32 %v719, 7
        %v721 = vsub.s32 %v718, %v720
        %v722 = vrot.slane %v700, %v721
        %v724 = vunpack.c.l.s4 1966171168
        %v725 = vunpack.c.0.s8 %v724
        %v726 = vlaneseq
        %v727 = vshrl.u32 %v726, 7
        %v728 = vsub.s32 %v725, %v727
        %v729 = vrot.slane %v701, %v728
        %v730 = vcombine.high %v708, %v708
        %v731 = vcombine.high %v715, %v715
        %v732 = vcombine.high %v722, %v722
        %v733 = vcombine.high %v729, %v729
        %v734 = vcombine.low %v609, %v610
        %v736 = vunpack.c.l.s4 1966171168
        %v737 = vunpack.c.0.s8 %v736
        %v738 = vlaneseq
        %v739 = vshrl.u32 %v738, 7
        %v740 = vsub.s32 %v737, %v739
        %v741 = vrot.slane %v734, %v740
        %v743 = vunpack.c.l.s4 1966171168
        %v744 = vunpack.c.0.s8 %v743
        %v745 = vlaneseq
        %v746 = vshrl.u32 %v745, 7
        %v747 = vsub.s32 %v744, %v746
        %v748 = vrot.slane %v741, %v747
        %v749 = vcombine.low %v643, %v657
        %v750 = vcombine.low %v665, %v667
        %v751 = vcombine.low %v650, %v664
        %v752 = vcombine.low %v666, %v668
        %v754 = vunpack.c.l.s4 1966171168
        %v755 = vunpack.c.0.s8 %v754
        %v756 = vlaneseq
        %v757 = vshrl.u32 %v756, 7
        %v758 = vsub.s32 %v755, %v757
        %v759 = vrot.slane %v749, %v758
        %v761 = vunpack.c.l.s4 1966171168
        %v762 = vunpack.c.0.s8 %v761
        %v763 = vlaneseq
        %v764 = vshrl.u32 %v763, 7
        %v765 = vsub.s32 %v762, %v764
        %v766 = vrot.slane %v750, %v765
        %v768 = vunpack.c.l.s4 1966171168
        %v769 = vunpack.c.0.s8 %v768
        %v770 = vlaneseq
        %v771 = vshrl.u32 %v770, 7
        %v772 = vsub.s32 %v769, %v771
        %v773 = vrot.slane %v751, %v772
        %v775 = vunpack.c.l.s4 1966171168
        %v776 = vunpack.c.0.s8 %v775
        %v777 = vlaneseq
        %v778 = vshrl.u32 %v777, 7
        %v779 = vsub.s32 %v776, %v778
        %v780 = vrot.slane %v752, %v779
        %v781 = vcombine.low %v759, %v766
        %v782 = vcombine.high %v759, %v766
        %v783 = vcombine.low %v773, %v780
        %v784 = vcombine.high %v773, %v780
        %v786 = vunpack.c.l.s4 1966171168
        %v787 = vunpack.c.0.s8 %v786
        %v788 = vlaneseq
        %v789 = vshrl.u32 %v788, 7
        %v790 = vsub.s32 %v787, %v789
        %v791 = vrot.slane %v781, %v790
        %v793 = vunpack.c.l.s4 1966171168
        %v794 = vunpack.c.0.s8 %v793
        %v795 = vlaneseq
        %v796 = vshrl.u32 %v795, 7
        %v797 = vsub.s32 %v794, %v796
        %v798 = vrot.slane %v782, %v797
        %v800 = vunpack.c.l.s4 1966171168
        %v801 = vunpack.c.0.s8 %v800
        %v802 = vlaneseq
        %v803 = vshrl.u32 %v802, 7
        %v804 = vsub.s32 %v801, %v803
        %v805 = vrot.slane %v783, %v804
        %v807 = vunpack.c.l.s4 1966171168
        %v808 = vunpack.c.0.s8 %v807
        %v809 = vlaneseq
        %v810 = vshrl.u32 %v809, 7
        %v811 = vsub.s32 %v808, %v810
        %v812 = vrot.slane %v784, %v811
        %v813 = vcombine.low %v791, %v805
        %v814 = vcombine.low %v798, %v812
        %v815 = vcombine.low %v683, %v708
        %v816 = vcombine.low %v722, %v730
        %v817 = vcombine.low %v732, %v715
        %v818 = vcombine.low %v729, %v731
        %v820 = vunpack.c.l.s4 1966171168
        %v821 = vunpack.c.0.s8 %v820
        %v822 = vlaneseq
        %v823 = vshrl.u32 %v822, 7
        %v824 = vsub.s32 %v821, %v823
        %v825 = vrot.slane %v815, %v824
        %v827 = vunpack.c.l.s4 1966171168
        %v828 = vunpack.c.0.s8 %v827
        %v829 = vlaneseq
        %v830 = vshrl.u32 %v829, 7
        %v831 = vsub.s32 %v828, %v830
        %v832 = vrot.slane %v816, %v831
        %v834 = vunpack.c.l.s4 1966171168
        %v835 = vunpack.c.0.s8 %v834
        %v836 = vlaneseq
        %v837 = vshrl.u32 %v836, 7
        %v838 = vsub.s32 %v835, %v837
        %v839 = vrot.slane %v817, %v838
        %v841 = vunpack.c.l.s4 1966171168
        %v842 = vunpack.c.0.s8 %v841
        %v843 = vlaneseq
        %v844 = vshrl.u32 %v843, 7
        %v845 = vsub.s32 %v842, %v844
        %v846 = vrot.slane %v818, %v845
        %v847 = vcombine.low %v825, %v832
        %v848 = vcombine.high %v825, %v832
        %v849 = vcombine.low %v839, %v846
        %v850 = vcombine.high %v839, %v846
        %v852 = vunpack.c.l.s4 1966171168
        %v853 = vunpack.c.0.s8 %v852
        %v854 = vlaneseq
        %v855 = vshrl.u32 %v854, 7
        %v856 = vsub.s32 %v853, %v855
        %v857 = vrot.slane %v847, %v856
        %v859 = vunpack.c.l.s4 1966171168
        %v860 = vunpack.c.0.s8 %v859
        %v861 = vlaneseq
        %v862 = vshrl.u32 %v861, 7
        %v863 = vsub.s32 %v860, %v862
        %v864 = vrot.slane %v848, %v863
        %v866 = vunpack.c.l.s4 1966171168
        %v867 = vunpack.c.0.s8 %v866
        %v868 = vlaneseq
        %v869 = vshrl.u32 %v868, 7
        %v870 = vsub.s32 %v867, %v869
        %v871 = vrot.slane %v849, %v870
        %v873 = vunpack.c.l.s4 1966171168
        %v874 = vunpack.c.0.s8 %v873
        %v875 = vlaneseq
        %v876 = vshrl.u32 %v875, 7
        %v877 = vsub.s32 %v874, %v876
        %v878 = vrot.slane %v850, %v877
        %v879 = vcombine.low %v857, %v871
        %v880 = vcombine.low %v864, %v878
        %v881 = vcombine.low %v733, %v748
        %v883 = vunpack.c.l.s4 1966171168
        %v884 = vunpack.c.0.s8 %v883
        %v885 = vlaneseq
        %v886 = vshrl.u32 %v885, 7
        %v887 = vsub.s32 %v884, %v886
        %v888 = vrot.slane %v881, %v887
        %v889 = vcombine.high %v888, %v888
        %v891 = vunpack.c.l.s4 1966171168
        %v892 = vunpack.c.0.s8 %v891
        %v893 = vlaneseq
        %v894 = vshrl.u32 %v893, 7
        %v895 = vsub.s32 %v892, %v894
        %v896 = vrot.slane %v888, %v895
        %v898 = vunpack.c.l.s4 1966171168
        %v899 = vunpack.c.0.s8 %v898
        %v900 = vlaneseq
        %v901 = vshrl.u32 %v900, 7
        %v902 = vsub.s32 %v899, %v901
        %v903 = vrot.slane %v889, %v902
        %v910 = vpack.c.bf16 %v879, %v813
        %v911 = vpack.c.bf16 %v880, %v814
        %v912 = vpack.c.bf16 %v896, %v896
        %v913 = vpack.c.bf16 %v903, %v903
        %v914 = vld [vmem:[#allocation2] sm:$0xff]
        %v915 = vld [vmem:[#allocation2 + $0x8] sm:$0xff]
        %v916 = vld [vmem:[#allocation2 + $0x10] sm:$0xff]
        %v917 = vld [vmem:[#allocation2 + $0x18] sm:$0xff]
        %v918 = vld [vmem:[#allocation2 + $0x20] sm:$0xff]
        %v919 = vld [vmem:[#allocation2 + $0x28] sm:$0xff]
        %v920 = vld [vmem:[#allocation2 + $0x30] sm:$0xff]
        %v921 = vld [vmem:[#allocation2 + $0x38] sm:$0xff]
        %v922 = vld [vmem:[#allocation2 + $0x40] sm:$0xff]
        %v923 = vld [vmem:[#allocation2 + $0x48] sm:$0xff]
        %v924 = vld [vmem:[#allocation2 + $0x50] sm:$0xff]
        %v925 = vld [vmem:[#allocation2 + $0x58] sm:$0xff]
        %v926 = vld [vmem:[#allocation2 + $0x60] sm:$0xff]
        %v927 = vld [vmem:[#allocation2 + $0x68] sm:$0xff]
        %v928 = vld [vmem:[#allocation2 + $0x70] sm:$0xff]
        %v929 = vld [vmem:[#allocation2 + $0x78] sm:$0xff]
        %v930 = vld [vmem:[#allocation2 + $0x80] sm:$0xff]
        %v931 = vld [vmem:[#allocation2 + $0x88] sm:$0xff]
        %v932 = vld [vmem:[#allocation2 + $0x90] sm:$0xff]
        %v933 = vld [vmem:[#allocation2 + $0x98] sm:$0xff]
        %v934 = vld [vmem:[#allocation2 + $0xa0] sm:$0xff]
        %v935 = vld [vmem:[#allocation2 + $0xa8] sm:$0xff]
        %v936 = vld [vmem:[#allocation2 + $0xb0] sm:$0xff]
        %v937 = vld [vmem:[#allocation2 + $0xb8] sm:$0xff]
        %v938 = vld [vmem:[#allocation2 + $0xc0] sm:$0xff]
        %v939 = vld [vmem:[#allocation2 + $0xc8] sm:$0xff]
        %v940 = vld [vmem:[#allocation2 + $0xd0] sm:$0xff]
        %v941 = vld [vmem:[#allocation2 + $0xd8] sm:$0xff]
        %v942 = vld [vmem:[#allocation2 + $0xe0] sm:$0xff]
        %v943 = vld [vmem:[#allocation2 + $0xe8] sm:$0xff]
        %v944 = vld [vmem:[#allocation2 + $0xf0] sm:$0xff]
        %v945 = vld [vmem:[#allocation2 + $0xf8] sm:$0xff]
        %v946 = vld [vmem:[#allocation2 + $0x100] sm:$0xff]
        %v947 = vld [vmem:[#allocation2 + $0x108] sm:$0xff]
        %v948 = vld [vmem:[#allocation2 + $0x110] sm:$0xff]
        %v949 = vld [vmem:[#allocation2 + $0x118] sm:$0xff]
        %v950 = vld [vmem:[#allocation2 + $0x120] sm:$0xff]
        %v951 = vld [vmem:[#allocation2 + $0x128] sm:$0xff]
        %v952 = vld [vmem:[#allocation2 + $0x130] sm:$0xff]
        %v953 = vld [vmem:[#allocation2 + $0x138] sm:$0xff]
        %v954 = vld [vmem:[#allocation2 + $0x140] sm:$0xff]
        %v955 = vld [vmem:[#allocation2 + $0x148] sm:$0xff]
        %v956 = vld [vmem:[#allocation2 + $0x150] sm:$0xff]
        %v957 = vld [vmem:[#allocation2 + $0x158] sm:$0xff]
        %v958 = vld [vmem:[#allocation2 + $0x160] sm:$0xff]
        %v959 = vld [vmem:[#allocation2 + $0x168] sm:$0xff]
        %v960 = vld [vmem:[#allocation2 + $0x170] sm:$0xff]
        %v961 = vld [vmem:[#allocation2 + $0x178] sm:$0xff]
        %v962 = vld [vmem:[#allocation2 + $0x180] sm:$0xff]
        %v963 = vld [vmem:[#allocation2 + $0x188] sm:$0xff]
        %v964 = vld [vmem:[#allocation2 + $0x190] sm:$0xff]
        %v965 = vld [vmem:[#allocation2 + $0x198] sm:$0xff]
        %v966 = vld [vmem:[#allocation2 + $0x1a0] sm:$0xff]
        %v967 = vld [vmem:[#allocation2 + $0x1a8] sm:$0xff]
        %v968 = vld [vmem:[#allocation2 + $0x1b0] sm:$0xff]
        %v969 = vld [vmem:[#allocation2 + $0x1b8] sm:$0xff]
        %v970 = vld [vmem:[#allocation2 + $0x1c0] sm:$0xff]
        %v971 = vld [vmem:[#allocation2 + $0x1c8] sm:$0xff]
        %v972 = vld [vmem:[#allocation2 + $0x1d0] sm:$0xff]
        %v973 = vld [vmem:[#allocation2 + $0x1d8] sm:$0xff]
        %v974 = vld [vmem:[#allocation2 + $0x1e0] sm:$0xff]
        %v975 = vld [vmem:[#allocation2 + $0x1e8] sm:$0xff]
        %v976 = vld [vmem:[#allocation2 + $0x1f0] sm:$0xff]
        %v977 = vld [vmem:[#allocation2 + $0x1f8] sm:$0xff]
        %v978 = vld [vmem:[#allocation2 + $0x200] sm:$0xff]
        %v979 = vld [vmem:[#allocation2 + $0x208] sm:$0xff]
        %v980 = vld [vmem:[#allocation2 + $0x210] sm:$0xff]
        %v981 = vld [vmem:[#allocation2 + $0x218] sm:$0xff]
        %v982 = vld [vmem:[#allocation2 + $0x220] sm:$0xff]
        %v983 = vld [vmem:[#allocation2 + $0x228] sm:$0xff]
        %v984 = vld [vmem:[#allocation2 + $0x230] sm:$0xff]
        %v985 = vld [vmem:[#allocation2 + $0x238] sm:$0xff]
        %v986 = vld [vmem:[#allocation2 + $0x240] sm:$0xff]
        %v987 = vld [vmem:[#allocation2 + $0x248] sm:$0xff]
        %v988 = vld [vmem:[#allocation2 + $0x250] sm:$0xff]
        %v989 = vld [vmem:[#allocation2 + $0x258] sm:$0xff]
        %v990 = vld [vmem:[#allocation2 + $0x260] sm:$0xff]
        %v991 = vld [vmem:[#allocation2 + $0x268] sm:$0xff]
        %v992 = vld [vmem:[#allocation2 + $0x270] sm:$0xff]
        %v993 = vld [vmem:[#allocation2 + $0x278] sm:$0xff]
        %v994 = vld [vmem:[#allocation2 + $0x280] sm:$0xff]
        %v995 = vld [vmem:[#allocation2 + $0x288] sm:$0xff]
        %v996 = vld [vmem:[#allocation2 + $0x290] sm:$0xff]
        %v997 = vld [vmem:[#allocation2 + $0x298] sm:$0xff]
        %v998 = vld [vmem:[#allocation2 + $0x2a0] sm:$0xff]
        %v999 = vld [vmem:[#allocation2 + $0x2a8] sm:$0xff]
        %v1000 = vld [vmem:[#allocation2 + $0x2b0] sm:$0xff]
        %v1001 = vld [vmem:[#allocation2 + $0x2b8] sm:$0xff]
        %v1002 = vld [vmem:[#allocation2 + $0x2c0] sm:$0xff]
        %v1003 = vld [vmem:[#allocation2 + $0x2c8] sm:$0xff]
        %v1004 = vld [vmem:[#allocation2 + $0x2d0] sm:$0xff]
        %v1005 = vld [vmem:[#allocation2 + $0x2d8] sm:$0xff]
        %v1006 = vld [vmem:[#allocation2 + $0x2e0] sm:$0xff]
        %v1007 = vld [vmem:[#allocation2 + $0x2e8] sm:$0xff]
        %v1008 = vld [vmem:[#allocation2 + $0x2f0] sm:$0xff]
        %v1009 = vld [vmem:[#allocation2 + $0x2f8] sm:$0xff]
        %v1010 = vld [vmem:[%s4] sm:$0x3f]
        %v1012 = vlaneseq
        %v1013 = vshrl.u32 %v1012, 7
        %v1014 = vsub.s32 0, %v1013
        %v1015 = vrot.slane %v1010, %v1014
        %v1016 = vlaneseq
        %v1017 = vshrl.u32 %v1016, 7
        %v1018 = vsub.s32 1, %v1017
        %v1019 = vrot.slane %v1010, %v1018
        %v1020 = vlaneseq
        %v1021 = vshrl.u32 %v1020, 7
        %v1022 = vsub.s32 2, %v1021
        %v1023 = vrot.slane %v1010, %v1022
        %v1024 = vlaneseq
        %v1025 = vshrl.u32 %v1024, 7
        %v1026 = vsub.s32 3, %v1025
        %v1027 = vrot.slane %v1010, %v1026
        %v1028 = vlaneseq
        %v1029 = vshrl.u32 %v1028, 7
        %v1030 = vsub.s32 4, %v1029
        %v1031 = vrot.slane %v1010, %v1030
        %v1032 = vlaneseq
        %v1033 = vshrl.u32 %v1032, 7
        %v1034 = vsub.s32 5, %v1033
        %v1035 = vrot.slane %v1010, %v1034
        %v1138 = vunpack.c.l.b16 %v914
        %v1139 = vunpack.c.h.b16 %v914
        %v1140 = vunpack.c.l.b16 %v915
        %v1141 = vunpack.c.h.b16 %v915
        %v1142 = vunpack.c.l.b16 %v916
        %v1143 = vunpack.c.h.b16 %v916
        %v1144 = vunpack.c.l.b16 %v917
        %v1145 = vunpack.c.h.b16 %v917
        %v1146 = vunpack.c.l.b16 %v918
        %v1147 = vunpack.c.h.b16 %v918
        %v1148 = vunpack.c.l.b16 %v919
        %v1149 = vunpack.c.h.b16 %v919
        %v1150 = vunpack.c.l.b16 %v920
        %v1151 = vunpack.c.h.b16 %v920
        %v1152 = vunpack.c.l.b16 %v921
        %v1153 = vunpack.c.h.b16 %v921
        %v1154 = vunpack.c.l.b16 %v922
        %v1155 = vunpack.c.h.b16 %v922
        %v1156 = vunpack.c.l.b16 %v923
        %v1157 = vunpack.c.h.b16 %v923
        %v1158 = vunpack.c.l.b16 %v924
        %v1159 = vunpack.c.h.b16 %v924
        %v1160 = vunpack.c.l.b16 %v925
        %v1161 = vunpack.c.h.b16 %v925
        %v1162 = vunpack.c.l.b16 %v926
        %v1163 = vunpack.c.h.b16 %v926
        %v1164 = vunpack.c.l.b16 %v927
        %v1165 = vunpack.c.h.b16 %v927
        %v1166 = vunpack.c.l.b16 %v928
        %v1167 = vunpack.c.h.b16 %v928
        %v1168 = vunpack.c.l.b16 %v929
        %v1169 = vunpack.c.h.b16 %v929
        %v1170 = vunpack.c.l.b16 %v930
        %v1171 = vunpack.c.h.b16 %v930
        %v1172 = vunpack.c.l.b16 %v931
        %v1173 = vunpack.c.h.b16 %v931
        %v1174 = vunpack.c.l.b16 %v932
        %v1175 = vunpack.c.h.b16 %v932
        %v1176 = vunpack.c.l.b16 %v933
        %v1177 = vunpack.c.h.b16 %v933
        %v1178 = vunpack.c.l.b16 %v934
        %v1179 = vunpack.c.h.b16 %v934
        %v1180 = vunpack.c.l.b16 %v935
        %v1181 = vunpack.c.h.b16 %v935
        %v1182 = vunpack.c.l.b16 %v936
        %v1183 = vunpack.c.h.b16 %v936
        %v1184 = vunpack.c.l.b16 %v937
        %v1185 = vunpack.c.h.b16 %v937
        %v1186 = vunpack.c.l.b16 %v938
        %v1187 = vunpack.c.h.b16 %v938
        %v1188 = vunpack.c.l.b16 %v939
        %v1189 = vunpack.c.h.b16 %v939
        %v1190 = vunpack.c.l.b16 %v940
        %v1191 = vunpack.c.h.b16 %v940
        %v1192 = vunpack.c.l.b16 %v941
        %v1193 = vunpack.c.h.b16 %v941
        %v1194 = vunpack.c.l.b16 %v942
        %v1195 = vunpack.c.h.b16 %v942
        %v1196 = vunpack.c.l.b16 %v943
        %v1197 = vunpack.c.h.b16 %v943
        %v1198 = vunpack.c.l.b16 %v944
        %v1199 = vunpack.c.h.b16 %v944
        %v1200 = vunpack.c.l.b16 %v945
        %v1201 = vunpack.c.h.b16 %v945
        %v1202 = vunpack.c.l.b16 %v946
        %v1203 = vunpack.c.h.b16 %v946
        %v1204 = vunpack.c.l.b16 %v947
        %v1205 = vunpack.c.h.b16 %v947
        %v1206 = vunpack.c.l.b16 %v948
        %v1207 = vunpack.c.h.b16 %v948
        %v1208 = vunpack.c.l.b16 %v949
        %v1209 = vunpack.c.h.b16 %v949
        %v1210 = vunpack.c.l.b16 %v950
        %v1211 = vunpack.c.h.b16 %v950
        %v1212 = vunpack.c.l.b16 %v951
        %v1213 = vunpack.c.h.b16 %v951
        %v1214 = vunpack.c.l.b16 %v952
        %v1215 = vunpack.c.h.b16 %v952
        %v1216 = vunpack.c.l.b16 %v953
        %v1217 = vunpack.c.h.b16 %v953
        %v1218 = vunpack.c.l.b16 %v954
        %v1219 = vunpack.c.h.b16 %v954
        %v1220 = vunpack.c.l.b16 %v955
        %v1221 = vunpack.c.h.b16 %v955
        %v1222 = vunpack.c.l.b16 %v956
        %v1223 = vunpack.c.h.b16 %v956
        %v1224 = vunpack.c.l.b16 %v957
        %v1225 = vunpack.c.h.b16 %v957
        %v1226 = vunpack.c.l.b16 %v958
        %v1227 = vunpack.c.h.b16 %v958
        %v1228 = vunpack.c.l.b16 %v959
        %v1229 = vunpack.c.h.b16 %v959
        %v1230 = vunpack.c.l.b16 %v960
        %v1231 = vunpack.c.h.b16 %v960
        %v1232 = vunpack.c.l.b16 %v961
        %v1233 = vunpack.c.h.b16 %v961
        %v1234 = vunpack.c.l.b16 %v962
        %v1235 = vunpack.c.h.b16 %v962
        %v1236 = vunpack.c.l.b16 %v963
        %v1237 = vunpack.c.h.b16 %v963
        %v1238 = vunpack.c.l.b16 %v964
        %v1239 = vunpack.c.h.b16 %v964
        %v1240 = vunpack.c.l.b16 %v965
        %v1241 = vunpack.c.h.b16 %v965
        %v1242 = vunpack.c.l.b16 %v966
        %v1243 = vunpack.c.h.b16 %v966
        %v1244 = vunpack.c.l.b16 %v967
        %v1245 = vunpack.c.h.b16 %v967
        %v1246 = vunpack.c.l.b16 %v968
        %v1247 = vunpack.c.h.b16 %v968
        %v1248 = vunpack.c.l.b16 %v969
        %v1249 = vunpack.c.h.b16 %v969
        %v1250 = vunpack.c.l.b16 %v970
        %v1251 = vunpack.c.h.b16 %v970
        %v1252 = vunpack.c.l.b16 %v971
        %v1253 = vunpack.c.h.b16 %v971
        %v1254 = vunpack.c.l.b16 %v972
        %v1255 = vunpack.c.h.b16 %v972
        %v1256 = vunpack.c.l.b16 %v973
        %v1257 = vunpack.c.h.b16 %v973
        %v1258 = vunpack.c.l.b16 %v974
        %v1259 = vunpack.c.h.b16 %v974
        %v1260 = vunpack.c.l.b16 %v975
        %v1261 = vunpack.c.h.b16 %v975
        %v1262 = vunpack.c.l.b16 %v976
        %v1263 = vunpack.c.h.b16 %v976
        %v1264 = vunpack.c.l.b16 %v977
        %v1265 = vunpack.c.h.b16 %v977
        %v1266 = vunpack.c.l.b16 %v978
        %v1267 = vunpack.c.h.b16 %v978
        %v1268 = vunpack.c.l.b16 %v979
        %v1269 = vunpack.c.h.b16 %v979
        %v1270 = vunpack.c.l.b16 %v980
        %v1271 = vunpack.c.h.b16 %v980
        %v1272 = vunpack.c.l.b16 %v981
        %v1273 = vunpack.c.h.b16 %v981
        %v1274 = vunpack.c.l.b16 %v982
        %v1275 = vunpack.c.h.b16 %v982
        %v1276 = vunpack.c.l.b16 %v983
        %v1277 = vunpack.c.h.b16 %v983
        %v1278 = vunpack.c.l.b16 %v984
        %v1279 = vunpack.c.h.b16 %v984
        %v1280 = vunpack.c.l.b16 %v985
        %v1281 = vunpack.c.h.b16 %v985
        %v1282 = vunpack.c.l.b16 %v986
        %v1283 = vunpack.c.h.b16 %v986
        %v1284 = vunpack.c.l.b16 %v987
        %v1285 = vunpack.c.h.b16 %v987
        %v1286 = vunpack.c.l.b16 %v988
        %v1287 = vunpack.c.h.b16 %v988
        %v1288 = vunpack.c.l.b16 %v989
        %v1289 = vunpack.c.h.b16 %v989
        %v1290 = vunpack.c.l.b16 %v990
        %v1291 = vunpack.c.h.b16 %v990
        %v1292 = vunpack.c.l.b16 %v991
        %v1293 = vunpack.c.h.b16 %v991
        %v1294 = vunpack.c.l.b16 %v992
        %v1295 = vunpack.c.h.b16 %v992
        %v1296 = vunpack.c.l.b16 %v993
        %v1297 = vunpack.c.h.b16 %v993
        %v1298 = vunpack.c.l.b16 %v994
        %v1299 = vunpack.c.h.b16 %v994
        %v1300 = vunpack.c.l.b16 %v995
        %v1301 = vunpack.c.h.b16 %v995
        %v1302 = vunpack.c.l.b16 %v996
        %v1303 = vunpack.c.h.b16 %v996
        %v1304 = vunpack.c.l.b16 %v997
        %v1305 = vunpack.c.h.b16 %v997
        %v1306 = vunpack.c.l.b16 %v998
        %v1307 = vunpack.c.h.b16 %v998
        %v1308 = vunpack.c.l.b16 %v999
        %v1309 = vunpack.c.h.b16 %v999
        %v1310 = vunpack.c.l.b16 %v1000
        %v1311 = vunpack.c.h.b16 %v1000
        %v1312 = vunpack.c.l.b16 %v1001
        %v1313 = vunpack.c.h.b16 %v1001
        %v1314 = vunpack.c.l.b16 %v1002
        %v1315 = vunpack.c.h.b16 %v1002
        %v1316 = vunpack.c.l.b16 %v1003
        %v1317 = vunpack.c.h.b16 %v1003
        %v1318 = vunpack.c.l.b16 %v1004
        %v1319 = vunpack.c.h.b16 %v1004
        %v1320 = vunpack.c.l.b16 %v1005
        %v1321 = vunpack.c.h.b16 %v1005
        %v1322 = vunpack.c.l.b16 %v1006
        %v1323 = vunpack.c.h.b16 %v1006
        %v1324 = vunpack.c.l.b16 %v1007
        %v1325 = vunpack.c.h.b16 %v1007
        %v1326 = vunpack.c.l.b16 %v1008
        %v1327 = vunpack.c.h.b16 %v1008
        %v1328 = vunpack.c.l.b16 %v1009
        %v1329 = vunpack.c.h.b16 %v1009
        %v1330 = vpack.c.b16 %v1144, %v1138
        %v1331 = vpack.c.b16 %v1145, %v1139
        %v1332 = vpack.c.b16 %v1146, %v1140
        %v1333 = vpack.c.b16 %v1147, %v1141
        %v1334 = vpack.c.b16 %v1148, %v1142
        %v1335 = vpack.c.b16 %v1149, %v1143
        %v1336 = vpack.c.b16 %v1156, %v1150
        %v1337 = vpack.c.b16 %v1157, %v1151
        %v1338 = vpack.c.b16 %v1158, %v1152
        %v1339 = vpack.c.b16 %v1159, %v1153
        %v1340 = vpack.c.b16 %v1160, %v1154
        %v1341 = vpack.c.b16 %v1161, %v1155
        %v1342 = vpack.c.b16 %v1168, %v1162
        %v1343 = vpack.c.b16 %v1169, %v1163
        %v1344 = vpack.c.b16 %v1170, %v1164
        %v1345 = vpack.c.b16 %v1171, %v1165
        %v1346 = vpack.c.b16 %v1172, %v1166
        %v1347 = vpack.c.b16 %v1173, %v1167
        %v1348 = vpack.c.b16 %v1180, %v1174
        %v1349 = vpack.c.b16 %v1181, %v1175
        %v1350 = vpack.c.b16 %v1182, %v1176
        %v1351 = vpack.c.b16 %v1183, %v1177
        %v1352 = vpack.c.b16 %v1184, %v1178
        %v1353 = vpack.c.b16 %v1185, %v1179
        %v1354 = vpack.c.b16 %v1192, %v1186
        %v1355 = vpack.c.b16 %v1193, %v1187
        %v1356 = vpack.c.b16 %v1194, %v1188
        %v1357 = vpack.c.b16 %v1195, %v1189
        %v1358 = vpack.c.b16 %v1196, %v1190
        %v1359 = vpack.c.b16 %v1197, %v1191
        %v1360 = vpack.c.b16 %v1204, %v1198
        %v1361 = vpack.c.b16 %v1205, %v1199
        %v1362 = vpack.c.b16 %v1206, %v1200
        %v1363 = vpack.c.b16 %v1207, %v1201
        %v1364 = vpack.c.b16 %v1208, %v1202
        %v1365 = vpack.c.b16 %v1209, %v1203
        %v1366 = vpack.c.b16 %v1216, %v1210
        %v1367 = vpack.c.b16 %v1217, %v1211
        %v1368 = vpack.c.b16 %v1218, %v1212
        %v1369 = vpack.c.b16 %v1219, %v1213
        %v1370 = vpack.c.b16 %v1220, %v1214
        %v1371 = vpack.c.b16 %v1221, %v1215
        %v1372 = vpack.c.b16 %v1228, %v1222
        %v1373 = vpack.c.b16 %v1229, %v1223
        %v1374 = vpack.c.b16 %v1230, %v1224
        %v1375 = vpack.c.b16 %v1231, %v1225
        %v1376 = vpack.c.b16 %v1232, %v1226
        %v1377 = vpack.c.b16 %v1233, %v1227
        %v1378 = vpack.c.b16 %v1240, %v1234
        %v1379 = vpack.c.b16 %v1241, %v1235
        %v1380 = vpack.c.b16 %v1242, %v1236
        %v1381 = vpack.c.b16 %v1243, %v1237
        %v1382 = vpack.c.b16 %v1244, %v1238
        %v1383 = vpack.c.b16 %v1245, %v1239
        %v1384 = vpack.c.b16 %v1252, %v1246
        %v1385 = vpack.c.b16 %v1253, %v1247
        %v1386 = vpack.c.b16 %v1254, %v1248
        %v1387 = vpack.c.b16 %v1255, %v1249
        %v1388 = vpack.c.b16 %v1256, %v1250
        %v1389 = vpack.c.b16 %v1257, %v1251
        %v1390 = vpack.c.b16 %v1264, %v1258
        %v1391 = vpack.c.b16 %v1265, %v1259
        %v1392 = vpack.c.b16 %v1266, %v1260
        %v1393 = vpack.c.b16 %v1267, %v1261
        %v1394 = vpack.c.b16 %v1268, %v1262
        %v1395 = vpack.c.b16 %v1269, %v1263
        %v1396 = vpack.c.b16 %v1276, %v1270
        %v1397 = vpack.c.b16 %v1277, %v1271
        %v1398 = vpack.c.b16 %v1278, %v1272
        %v1399 = vpack.c.b16 %v1279, %v1273
        %v1400 = vpack.c.b16 %v1280, %v1274
        %v1401 = vpack.c.b16 %v1281, %v1275
        %v1402 = vpack.c.b16 %v1288, %v1282
        %v1403 = vpack.c.b16 %v1289, %v1283
        %v1404 = vpack.c.b16 %v1290, %v1284
        %v1405 = vpack.c.b16 %v1291, %v1285
        %v1406 = vpack.c.b16 %v1292, %v1286
        %v1407 = vpack.c.b16 %v1293, %v1287
        %v1408 = vpack.c.b16 %v1300, %v1294
        %v1409 = vpack.c.b16 %v1301, %v1295
        %v1410 = vpack.c.b16 %v1302, %v1296
        %v1411 = vpack.c.b16 %v1303, %v1297
        %v1412 = vpack.c.b16 %v1304, %v1298
        %v1413 = vpack.c.b16 %v1305, %v1299
        %v1414 = vpack.c.b16 %v1312, %v1306
        %v1415 = vpack.c.b16 %v1313, %v1307
        %v1416 = vpack.c.b16 %v1314, %v1308
        %v1417 = vpack.c.b16 %v1315, %v1309
        %v1418 = vpack.c.b16 %v1316, %v1310
        %v1419 = vpack.c.b16 %v1317, %v1311
        %v1420 = vpack.c.b16 %v1324, %v1318
        %v1421 = vpack.c.b16 %v1325, %v1319
        %v1422 = vpack.c.b16 %v1326, %v1320
        %v1423 = vpack.c.b16 %v1327, %v1321
        %v1424 = vpack.c.b16 %v1328, %v1322
        %v1425 = vpack.c.b16 %v1329, %v1323
        %1522 = vmatprep.subr.bf16.mxu0 %v1373
        %1523 = vmatpush1.bf16.msra.mxu0 %v1372
        %1524 = vmatprep.subr.bf16.mxu0 %v1367
        %1525 = vmatpush1.bf16.msra.mxu0 %v1366
        %1526 = vmatprep.subr.bf16.mxu0 %v1361
        %1527 = vmatpush1.bf16.msra.mxu0 %v1360
        %1528 = vmatprep.subr.bf16.mxu0 %v1355
        %1529 = vmatpush1.bf16.msra.mxu0 %v1354
        %1530 = vmatprep.subr.bf16.mxu0 %v1349
        %1531 = vmatpush1.bf16.msra.mxu0 %v1348
        %1532 = vmatprep.subr.bf16.mxu0 %v1343
        %1533 = vmatpush1.bf16.msra.mxu0 %v1342
        %1534 = vmatprep.subr.bf16.mxu0 %v1337
        %1535 = vmatpush1.bf16.msra.mxu0 %v1336
        %1536 = vmatprep.subr.bf16.mxu0 %v1331
        %1537 = vmatpush1.bf16.msra.mxu0 %v1330
        %1538 = vmatprep.subr.bf16.mxu0 %v1421
        %1539 = vmatpush2.bf16.msra.mxu0 %v1420
        %1540 = vmatprep.subr.bf16.mxu0 %v1415
        %1541 = vmatpush2.bf16.msra.mxu0 %v1414
        %1542 = vmatprep.subr.bf16.mxu0 %v1409
        %1543 = vmatpush2.bf16.msra.mxu0 %v1408
        %1544 = vmatprep.subr.bf16.mxu0 %v1403
        %1545 = vmatpush2.bf16.msra.mxu0 %v1402
        %1546 = vmatprep.subr.bf16.mxu0 %v1397
        %1547 = vmatpush2.bf16.msra.mxu0 %v1396
        %1548 = vmatprep.subr.bf16.mxu0 %v1391
        %1549 = vmatpush2.bf16.msra.mxu0 %v1390
        %1550 = vmatprep.subr.bf16.mxu0 %v1385
        %1551 = vmatpush2.bf16.msra.mxu0 %v1384
        %1552 = vmatprep.subr.bf16.mxu0 %v1379
        %1553 = vmatpush2.bf16.msra.mxu0 %v1378
        %1554 = vmatprep.mubr.bf16.mxu0 %v911
        %1555 = vmatmul.mubr.bf16.gmra.mxu0 %v910
        %v1556 = vpop.f32.mrf.mxu0
        %v1557 = vadd.f32 %v1015, %v1556
        %v1558 = vpop.f32.mrf.mxu0
        %v1559 = vadd.f32 %v1019, %v1558
        %v1560 = vpop.f32.mrf.mxu0
        %v1561 = vadd.f32 %v1015, %v1560
        %v1562 = vpop.f32.mrf.mxu0
        %v1563 = vadd.f32 %v1019, %v1562
        %1564 = vmatprep.mubr.bf16.mxu0 %v913
        %1565 = vmatmul.mubr.bf16.gmra.mxu0 %v912
        %v1566 = vpop.f32.mrf.mxu0
        %v1567 = vadd.f32 %v1015, %v1566
        %v1568 = vpop.f32.mrf.mxu0
        %v1569 = vadd.f32 %v1019, %v1568
        %v1570 = vpop.f32.mrf.mxu0
        %v1571 = vpop.f32.mrf.mxu0
        %1572 = vdwg.mxu0
        %1573 = vmatprep.subr.bf16.mxu0 %v1375
        %1574 = vmatpush1.bf16.msra.mxu0 %v1374
        %1575 = vmatprep.subr.bf16.mxu0 %v1369
        %1576 = vmatpush1.bf16.msra.mxu0 %v1368
        %1577 = vmatprep.subr.bf16.mxu0 %v1363
        %1578 = vmatpush1.bf16.msra.mxu0 %v1362
        %1579 = vmatprep.subr.bf16.mxu0 %v1357
        %1580 = vmatpush1.bf16.msra.mxu0 %v1356
        %1581 = vmatprep.subr.bf16.mxu0 %v1351
        %1582 = vmatpush1.bf16.msra.mxu0 %v1350
        %1583 = vmatprep.subr.bf16.mxu0 %v1345
        %1584 = vmatpush1.bf16.msra.mxu0 %v1344
        %1585 = vmatprep.subr.bf16.mxu0 %v1339
        %1586 = vmatpush1.bf16.msra.mxu0 %v1338
        %1587 = vmatprep.subr.bf16.mxu0 %v1333
        %1588 = vmatpush1.bf16.msra.mxu0 %v1332
        %1589 = vmatprep.subr.bf16.mxu0 %v1423
        %1590 = vmatpush2.bf16.msra.mxu0 %v1422
        %1591 = vmatprep.subr.bf16.mxu0 %v1417
        %1592 = vmatpush2.bf16.msra.mxu0 %v1416
        %1593 = vmatprep.subr.bf16.mxu0 %v1411
        %1594 = vmatpush2.bf16.msra.mxu0 %v1410
        %1595 = vmatprep.subr.bf16.mxu0 %v1405
        %1596 = vmatpush2.bf16.msra.mxu0 %v1404
        %1597 = vmatprep.subr.bf16.mxu0 %v1399
        %1598 = vmatpush2.bf16.msra.mxu0 %v1398
        %1599 = vmatprep.subr.bf16.mxu0 %v1393
        %1600 = vmatpush2.bf16.msra.mxu0 %v1392
        %1601 = vmatprep.subr.bf16.mxu0 %v1387
        %1602 = vmatpush2.bf16.msra.mxu0 %v1386
        %1603 = vmatprep.subr.bf16.mxu0 %v1381
        %1604 = vmatpush2.bf16.msra.mxu0 %v1380
        %1605 = vmatprep.mubr.bf16.mxu0 %v911
        %1606 = vmatmul.mubr.bf16.gmra.mxu0 %v910
        %v1607 = vpop.f32.mrf.mxu0
        %v1608 = vadd.f32 %v1023, %v1607
        %v1609 = vpop.f32.mrf.mxu0
        %v1610 = vadd.f32 %v1027, %v1609
        %v1611 = vpop.f32.mrf.mxu0
        %v1612 = vadd.f32 %v1023, %v1611
        %v1613 = vpop.f32.mrf.mxu0
        %v1614 = vadd.f32 %v1027, %v1613
        %1615 = vmatprep.mubr.bf16.mxu0 %v913
        %1616 = vmatmul.mubr.bf16.gmra.mxu0 %v912
        %v1617 = vpop.f32.mrf.mxu0
        %v1618 = vadd.f32 %v1023, %v1617
        %v1619 = vpop.f32.mrf.mxu0
        %v1620 = vadd.f32 %v1027, %v1619
        %v1621 = vpop.f32.mrf.mxu0
        %v1622 = vpop.f32.mrf.mxu0
        %1623 = vdwg.mxu0
        %1624 = vmatprep.subr.bf16.mxu0 %v1377
        %1625 = vmatpush1.bf16.msra.mxu0 %v1376
        %1626 = vmatprep.subr.bf16.mxu0 %v1371
        %1627 = vmatpush1.bf16.msra.mxu0 %v1370
        %1628 = vmatprep.subr.bf16.mxu0 %v1365
        %1629 = vmatpush1.bf16.msra.mxu0 %v1364
        %1630 = vmatprep.subr.bf16.mxu0 %v1359
        %1631 = vmatpush1.bf16.msra.mxu0 %v1358
        %1632 = vmatprep.subr.bf16.mxu0 %v1353
        %1633 = vmatpush1.bf16.msra.mxu0 %v1352
        %1634 = vmatprep.subr.bf16.mxu0 %v1347
        %1635 = vmatpush1.bf16.msra.mxu0 %v1346
        %1636 = vmatprep.subr.bf16.mxu0 %v1341
        %1637 = vmatpush1.bf16.msra.mxu0 %v1340
        %1638 = vmatprep.subr.bf16.mxu0 %v1335
        %1639 = vmatpush1.bf16.msra.mxu0 %v1334
        %1640 = vmatprep.subr.bf16.mxu0 %v1425
        %1641 = vmatpush2.bf16.msra.mxu0 %v1424
        %1642 = vmatprep.subr.bf16.mxu0 %v1419
        %1643 = vmatpush2.bf16.msra.mxu0 %v1418
        %1644 = vmatprep.subr.bf16.mxu0 %v1413
        %1645 = vmatpush2.bf16.msra.mxu0 %v1412
        %1646 = vmatprep.subr.bf16.mxu0 %v1407
        %1647 = vmatpush2.bf16.msra.mxu0 %v1406
        %1648 = vmatprep.subr.bf16.mxu0 %v1401
        %1649 = vmatpush2.bf16.msra.mxu0 %v1400
        %1650 = vmatprep.subr.bf16.mxu0 %v1395
        %1651 = vmatpush2.bf16.msra.mxu0 %v1394
        %1652 = vmatprep.subr.bf16.mxu0 %v1389
        %1653 = vmatpush2.bf16.msra.mxu0 %v1388
        %1654 = vmatprep.subr.bf16.mxu0 %v1383
        %1655 = vmatpush2.bf16.msra.mxu0 %v1382
        %1656 = vmatprep.mubr.bf16.mxu0 %v911
        %1657 = vmatmul.mubr.bf16.gmra.mxu0 %v910
        %v1658 = vpop.f32.mrf.mxu0
        %v1659 = vadd.f32 %v1031, %v1658
        %v1660 = vpop.f32.mrf.mxu0
        %v1661 = vadd.f32 %v1035, %v1660
        %v1662 = vpop.f32.mrf.mxu0
        %v1663 = vadd.f32 %v1031, %v1662
        %v1664 = vpop.f32.mrf.mxu0
        %v1665 = vadd.f32 %v1035, %v1664
        %1666 = vmatprep.mubr.bf16.mxu0 %v913
        %1667 = vmatmul.mubr.bf16.gmra.mxu0 %v912
        %v1668 = vpop.f32.mrf.mxu0
        %v1669 = vadd.f32 %v1031, %v1668
        %v1670 = vpop.f32.mrf.mxu0
        %v1671 = vadd.f32 %v1035, %v1670
        %v1672 = vpop.f32.mrf.mxu0
        %v1673 = vpop.f32.mrf.mxu0
        %1674 = vdwg.mxu0
        %v1675 = vpack.c.bf16 %v1561, %v1557
        %v1676 = vpack.c.bf16 %v1563, %v1559
        %v1677 = vpack.c.bf16 %v1612, %v1608
        %v1678 = vpack.c.bf16 %v1614, %v1610
        %v1679 = vpack.c.bf16 %v1663, %v1659
        %v1680 = vpack.c.bf16 %v1665, %v1661
        %v1681 = vcombine.high %v1675, 0
        %v1683 = vunpack.c.l.s4 1983009808
        %v1684 = vunpack.c.0.s8 %v1683
        %v1685 = vlaneseq
        %v1686 = vshrl.u32 %v1685, 7
        %v1687 = vsub.s32 %v1684, %v1686
        %v1688 = vrot.slane %v1675, %v1687
        %v1690 = vunpack.c.l.s4 1983009808
        %v1691 = vunpack.c.0.s8 %v1690
        %v1692 = vlaneseq
        %v1693 = vshrl.u32 %v1692, 7
        %v1694 = vsub.s32 %v1691, %v1693
        %v1695 = vrot.slane %v1681, %v1694
        %v1696 = vcombine.high %v1688, 0
        %v1698 = vunpack.c.l.s4 1934713408
        %v1699 = vunpack.c.0.s8 %v1698
        %v1700 = vlaneseq
        %v1701 = vshrl.u32 %v1700, 7
        %v1702 = vsub.s32 %v1699, %v1701
        %v1703 = vrot.slane %v1688, %v1702
        %v1705 = vunpack.c.l.s4 1934713408
        %v1706 = vunpack.c.0.s8 %v1705
        %v1707 = vlaneseq
        %v1708 = vshrl.u32 %v1707, 7
        %v1709 = vsub.s32 %v1706, %v1708
        %v1710 = vrot.slane %v1696, %v1709
        %v1711 = vcombine.high %v1695, 0
        %v1713 = vunpack.c.l.s4 1934713408
        %v1714 = vunpack.c.0.s8 %v1713
        %v1715 = vlaneseq
        %v1716 = vshrl.u32 %v1715, 7
        %v1717 = vsub.s32 %v1714, %v1716
        %v1718 = vrot.slane %v1695, %v1717
        %v1720 = vunpack.c.l.s4 1934713408
        %v1721 = vunpack.c.0.s8 %v1720
        %v1722 = vlaneseq
        %v1723 = vshrl.u32 %v1722, 7
        %v1724 = vsub.s32 %v1721, %v1723
        %v1725 = vrot.slane %v1711, %v1724
        %v1726 = vcombine.high %v1703, 0
        %v1727 = vcombine.high %v1710, 0
        %v1728 = vcombine.high %v1718, 0
        %v1729 = vcombine.high %v1725, 0
        %v1730 = vcombine.high %v1676, 0
        %v1732 = vunpack.c.l.s4 1983009808
        %v1733 = vunpack.c.0.s8 %v1732
        %v1734 = vlaneseq
        %v1735 = vshrl.u32 %v1734, 7
        %v1736 = vsub.s32 %v1733, %v1735
        %v1737 = vrot.slane %v1676, %v1736
        %v1739 = vunpack.c.l.s4 1983009808
        %v1740 = vunpack.c.0.s8 %v1739
        %v1741 = vlaneseq
        %v1742 = vshrl.u32 %v1741, 7
        %v1743 = vsub.s32 %v1740, %v1742
        %v1744 = vrot.slane %v1730, %v1743
        %v1745 = vcombine.high %v1737, 0
        %v1747 = vunpack.c.l.s4 1934713408
        %v1748 = vunpack.c.0.s8 %v1747
        %v1749 = vlaneseq
        %v1750 = vshrl.u32 %v1749, 7
        %v1751 = vsub.s32 %v1748, %v1750
        %v1752 = vrot.slane %v1737, %v1751
        %v1754 = vunpack.c.l.s4 1934713408
        %v1755 = vunpack.c.0.s8 %v1754
        %v1756 = vlaneseq
        %v1757 = vshrl.u32 %v1756, 7
        %v1758 = vsub.s32 %v1755, %v1757
        %v1759 = vrot.slane %v1745, %v1758
        %v1760 = vcombine.high %v1744, 0
        %v1762 = vunpack.c.l.s4 1934713408
        %v1763 = vunpack.c.0.s8 %v1762
        %v1764 = vlaneseq
        %v1765 = vshrl.u32 %v1764, 7
        %v1766 = vsub.s32 %v1763, %v1765
        %v1767 = vrot.slane %v1744, %v1766
        %v1769 = vunpack.c.l.s4 1934713408
        %v1770 = vunpack.c.0.s8 %v1769
        %v1771 = vlaneseq
        %v1772 = vshrl.u32 %v1771, 7
        %v1773 = vsub.s32 %v1770, %v1772
        %v1774 = vrot.slane %v1760, %v1773
        %v1775 = vcombine.high %v1752, 0
        %v1776 = vcombine.high %v1759, 0
        %v1777 = vcombine.high %v1767, 0
        %v1778 = vcombine.high %v1774, 0
        %v1779 = vpack.c.bf16 %v1567, %v1567
        %v1780 = vpack.c.bf16 %v1569, %v1569
        %v1783 = vpack.i.b16 %v1752, %v1703
        %v1785 = vshrl.u32 %v1703, 16
        %v1786 = vshrl.u32 %v1752, 16
        %v1787 = vpack.i.b16 %v1786, %v1785
        %v1791 = vpack.i.b16 %v1775, %v1726
        %v1793 = vshrl.u32 %v1726, 16
        %v1794 = vshrl.u32 %v1775, 16
        %v1795 = vpack.i.b16 %v1794, %v1793
        %v1799 = vpack.i.b16 %v1759, %v1710
        %v1801 = vshrl.u32 %v1710, 16
        %v1802 = vshrl.u32 %v1759, 16
        %v1803 = vpack.i.b16 %v1802, %v1801
        %v1807 = vpack.i.b16 %v1776, %v1727
        %v1809 = vshrl.u32 %v1727, 16
        %v1810 = vshrl.u32 %v1776, 16
        %v1811 = vpack.i.b16 %v1810, %v1809
        %v1815 = vpack.i.b16 %v1767, %v1718
        %v1817 = vshrl.u32 %v1718, 16
        %v1818 = vshrl.u32 %v1767, 16
        %v1819 = vpack.i.b16 %v1818, %v1817
        %v1823 = vpack.i.b16 %v1777, %v1728
        %v1825 = vshrl.u32 %v1728, 16
        %v1826 = vshrl.u32 %v1777, 16
        %v1827 = vpack.i.b16 %v1826, %v1825
        %v1831 = vpack.i.b16 %v1774, %v1725
        %v1833 = vshrl.u32 %v1725, 16
        %v1834 = vshrl.u32 %v1774, 16
        %v1835 = vpack.i.b16 %v1834, %v1833
        %v1839 = vpack.i.b16 %v1778, %v1729
        %v1841 = vshrl.u32 %v1729, 16
        %v1842 = vshrl.u32 %v1778, 16
        %v1843 = vpack.i.b16 %v1842, %v1841
        %v1847 = vpack.i.b16 %v1780, %v1779
        %v1848 = vshrl.u32 %v1779, 16
        %v1849 = vshrl.u32 %v1780, 16
        %v1850 = vpack.i.b16 %v1849, %v1848
        %v1851 = vcombine.low %v1783, %v1799
        %v1853 = vunpack.c.l.s4 1983009808
        %v1854 = vunpack.c.0.s8 %v1853
        %v1855 = vlaneseq
        %v1856 = vshrl.u32 %v1855, 7
        %v1857 = vsub.s32 %v1854, %v1856
        %v1858 = vrot.slane %v1851, %v1857
        %v1859 = vcombine.low %v1791, %v1807
        %v1861 = vunpack.c.l.s4 1983009808
        %v1862 = vunpack.c.0.s8 %v1861
        %v1863 = vlaneseq
        %v1864 = vshrl.u32 %v1863, 7
        %v1865 = vsub.s32 %v1862, %v1864
        %v1866 = vrot.slane %v1859, %v1865
        %v1867 = vcombine.low %v1815, %v1831
        %v1869 = vunpack.c.l.s4 1983009808
        %v1870 = vunpack.c.0.s8 %v1869
        %v1871 = vlaneseq
        %v1872 = vshrl.u32 %v1871, 7
        %v1873 = vsub.s32 %v1870, %v1872
        %v1874 = vrot.slane %v1867, %v1873
        %v1875 = vcombine.low %v1823, %v1839
        %v1877 = vunpack.c.l.s4 1983009808
        %v1878 = vunpack.c.0.s8 %v1877
        %v1879 = vlaneseq
        %v1880 = vshrl.u32 %v1879, 7
        %v1881 = vsub.s32 %v1878, %v1880
        %v1882 = vrot.slane %v1875, %v1881
        %v1883 = vcombine.low %v1858, %v1866
        %v1885 = vunpack.c.l.s4 1934713408
        %v1886 = vunpack.c.0.s8 %v1885
        %v1887 = vlaneseq
        %v1888 = vshrl.u32 %v1887, 7
        %v1889 = vsub.s32 %v1886, %v1888
        %v1890 = vrot.slane %v1883, %v1889
        %v1891 = vcombine.low %v1874, %v1882
        %v1893 = vunpack.c.l.s4 1934713408
        %v1894 = vunpack.c.0.s8 %v1893
        %v1895 = vlaneseq
        %v1896 = vshrl.u32 %v1895, 7
        %v1897 = vsub.s32 %v1894, %v1896
        %v1898 = vrot.slane %v1891, %v1897
        %v1899 = vcombine.low %v1890, %v1898
        %v1900 = vcombine.low %v1787, %v1803
        %v1902 = vunpack.c.l.s4 1983009808
        %v1903 = vunpack.c.0.s8 %v1902
        %v1904 = vlaneseq
        %v1905 = vshrl.u32 %v1904, 7
        %v1906 = vsub.s32 %v1903, %v1905
        %v1907 = vrot.slane %v1900, %v1906
        %v1908 = vcombine.low %v1795, %v1811
        %v1910 = vunpack.c.l.s4 1983009808
        %v1911 = vunpack.c.0.s8 %v1910
        %v1912 = vlaneseq
        %v1913 = vshrl.u32 %v1912, 7
        %v1914 = vsub.s32 %v1911, %v1913
        %v1915 = vrot.slane %v1908, %v1914
        %v1916 = vcombine.low %v1819, %v1835
        %v1918 = vunpack.c.l.s4 1983009808
        %v1919 = vunpack.c.0.s8 %v1918
        %v1920 = vlaneseq
        %v1921 = vshrl.u32 %v1920, 7
        %v1922 = vsub.s32 %v1919, %v1921
        %v1923 = vrot.slane %v1916, %v1922
        %v1924 = vcombine.low %v1827, %v1843
        %v1926 = vunpack.c.l.s4 1983009808
        %v1927 = vunpack.c.0.s8 %v1926
        %v1928 = vlaneseq
        %v1929 = vshrl.u32 %v1928, 7
        %v1930 = vsub.s32 %v1927, %v1929
        %v1931 = vrot.slane %v1924, %v1930
        %v1932 = vcombine.low %v1907, %v1915
        %v1934 = vunpack.c.l.s4 1934713408
        %v1935 = vunpack.c.0.s8 %v1934
        %v1936 = vlaneseq
        %v1937 = vshrl.u32 %v1936, 7
        %v1938 = vsub.s32 %v1935, %v1937
        %v1939 = vrot.slane %v1932, %v1938
        %v1940 = vcombine.low %v1923, %v1931
        %v1942 = vunpack.c.l.s4 1934713408
        %v1943 = vunpack.c.0.s8 %v1942
        %v1944 = vlaneseq
        %v1945 = vshrl.u32 %v1944, 7
        %v1946 = vsub.s32 %v1943, %v1945
        %v1947 = vrot.slane %v1940, %v1946
        %v1948 = vcombine.low %v1939, %v1947
        %v1951 = vpack.i.b16 %v1948, %v1899
        %v1952 = vshrl.u32 %v1899, 16
        %v1953 = vshrl.u32 %v1948, 16
        %v1954 = vpack.i.b16 %v1953, %v1952
        %v1957 = vpack.i.b16 %v1850, %v1847
        %v1958 = vshrl.u32 %v1847, 16
        %v1959 = vshrl.u32 %v1850, 16
        %v1960 = vpack.i.b16 %v1959, %v1958
        %v1961 = vcombine.high %v1951, %v1951
        %v1963 = vunpack.c.l.s4 1966171168
        %v1964 = vunpack.c.0.s8 %v1963
        %v1965 = vlaneseq
        %v1966 = vshrl.u32 %v1965, 7
        %v1967 = vsub.s32 %v1964, %v1966
        %v1968 = vrot.slane %v1951, %v1967
        %v1970 = vunpack.c.l.s4 1966171168
        %v1971 = vunpack.c.0.s8 %v1970
        %v1972 = vlaneseq
        %v1973 = vshrl.u32 %v1972, 7
        %v1974 = vsub.s32 %v1971, %v1973
        %v1975 = vrot.slane %v1961, %v1974
        %v1976 = vcombine.high %v1968, %v1968
        %v1977 = vcombine.high %v1975, %v1975
        %v1979 = vunpack.c.l.s4 1966171168
        %v1980 = vunpack.c.0.s8 %v1979
        %v1981 = vlaneseq
        %v1982 = vshrl.u32 %v1981, 7
        %v1983 = vsub.s32 %v1980, %v1982
        %v1984 = vrot.slane %v1968, %v1983
        %v1986 = vunpack.c.l.s4 1966171168
        %v1987 = vunpack.c.0.s8 %v1986
        %v1988 = vlaneseq
        %v1989 = vshrl.u32 %v1988, 7
        %v1990 = vsub.s32 %v1987, %v1989
        %v1991 = vrot.slane %v1975, %v1990
        %v1993 = vunpack.c.l.s4 1966171168
        %v1994 = vunpack.c.0.s8 %v1993
        %v1995 = vlaneseq
        %v1996 = vshrl.u32 %v1995, 7
        %v1997 = vsub.s32 %v1994, %v1996
        %v1998 = vrot.slane %v1976, %v1997
        %v2000 = vunpack.c.l.s4 1966171168
        %v2001 = vunpack.c.0.s8 %v2000
        %v2002 = vlaneseq
        %v2003 = vshrl.u32 %v2002, 7
        %v2004 = vsub.s32 %v2001, %v2003
        %v2005 = vrot.slane %v1977, %v2004
        %v2006 = vcombine.high %v1984, %v1984
        %v2007 = vcombine.high %v1991, %v1991
        %v2008 = vcombine.high %v1998, %v1998
        %v2009 = vcombine.high %v2005, %v2005
        %v2011 = vunpack.c.l.s4 1966171168
        %v2012 = vunpack.c.0.s8 %v2011
        %v2013 = vlaneseq
        %v2014 = vshrl.u32 %v2013, 7
        %v2015 = vsub.s32 %v2012, %v2014
        %v2016 = vrot.slane %v1957, %v2015
        %v2018 = vunpack.c.l.s4 1966171168
        %v2019 = vunpack.c.0.s8 %v2018
        %v2020 = vlaneseq
        %v2021 = vshrl.u32 %v2020, 7
        %v2022 = vsub.s32 %v2019, %v2021
        %v2023 = vrot.slane %v2016, %v2022
        %v2024 = vcombine.high %v1954, %v1954
        %v2026 = vunpack.c.l.s4 1966171168
        %v2027 = vunpack.c.0.s8 %v2026
        %v2028 = vlaneseq
        %v2029 = vshrl.u32 %v2028, 7
        %v2030 = vsub.s32 %v2027, %v2029
        %v2031 = vrot.slane %v1954, %v2030
        %v2033 = vunpack.c.l.s4 1966171168
        %v2034 = vunpack.c.0.s8 %v2033
        %v2035 = vlaneseq
        %v2036 = vshrl.u32 %v2035, 7
        %v2037 = vsub.s32 %v2034, %v2036
        %v2038 = vrot.slane %v2024, %v2037
        %v2039 = vcombine.high %v2031, %v2031
        %v2040 = vcombine.high %v2038, %v2038
        %v2042 = vunpack.c.l.s4 1966171168
        %v2043 = vunpack.c.0.s8 %v2042
        %v2044 = vlaneseq
        %v2045 = vshrl.u32 %v2044, 7
        %v2046 = vsub.s32 %v2043, %v2045
        %v2047 = vrot.slane %v2031, %v2046
        %v2049 = vunpack.c.l.s4 1966171168
        %v2050 = vunpack.c.0.s8 %v2049
        %v2051 = vlaneseq
        %v2052 = vshrl.u32 %v2051, 7
        %v2053 = vsub.s32 %v2050, %v2052
        %v2054 = vrot.slane %v2038, %v2053
        %v2056 = vunpack.c.l.s4 1966171168
        %v2057 = vunpack.c.0.s8 %v2056
        %v2058 = vlaneseq
        %v2059 = vshrl.u32 %v2058, 7
        %v2060 = vsub.s32 %v2057, %v2059
        %v2061 = vrot.slane %v2039, %v2060
        %v2063 = vunpack.c.l.s4 1966171168
        %v2064 = vunpack.c.0.s8 %v2063
        %v2065 = vlaneseq
        %v2066 = vshrl.u32 %v2065, 7
        %v2067 = vsub.s32 %v2064, %v2066
        %v2068 = vrot.slane %v2040, %v2067
        %v2069 = vcombine.high %v2047, %v2047
        %v2070 = vcombine.high %v2054, %v2054
        %v2071 = vcombine.high %v2061, %v2061
        %v2072 = vcombine.high %v2068, %v2068
        %v2074 = vunpack.c.l.s4 1966171168
        %v2075 = vunpack.c.0.s8 %v2074
        %v2076 = vlaneseq
        %v2077 = vshrl.u32 %v2076, 7
        %v2078 = vsub.s32 %v2075, %v2077
        %v2079 = vrot.slane %v1960, %v2078
        %v2081 = vunpack.c.l.s4 1966171168
        %v2082 = vunpack.c.0.s8 %v2081
        %v2083 = vlaneseq
        %v2084 = vshrl.u32 %v2083, 7
        %v2085 = vsub.s32 %v2082, %v2084
        %v2086 = vrot.slane %v2079, %v2085
        %v2087 = vunpack.i.l.s16 %v1984
        %v2088 = vunpack.i.h.s16 %v1984
        %v2089 = vunpack.i.l.s16 %v1998
        %v2090 = vunpack.i.h.s16 %v1998
        %v2091 = vunpack.i.l.s16 %v2006
        %v2092 = vunpack.i.h.s16 %v2006
        %v2093 = vunpack.i.l.s16 %v2008
        %v2094 = vunpack.i.h.s16 %v2008
        %v2095 = vunpack.i.l.s16 %v1991
        %v2096 = vunpack.i.h.s16 %v1991
        %v2097 = vunpack.i.l.s16 %v2005
        %v2098 = vunpack.i.h.s16 %v2005
        %v2099 = vunpack.i.l.s16 %v2007
        %v2100 = vunpack.i.h.s16 %v2007
        %v2101 = vunpack.i.l.s16 %v2009
        %v2102 = vunpack.i.h.s16 %v2009
        %v2103 = vunpack.i.l.s16 %v2023
        %v2104 = vunpack.i.h.s16 %v2023
        %v2105 = vunpack.i.l.s16 %v2047
        %v2106 = vunpack.i.h.s16 %v2047
        %v2107 = vunpack.i.l.s16 %v2061
        %v2108 = vunpack.i.h.s16 %v2061
        %v2109 = vunpack.i.l.s16 %v2069
        %v2110 = vunpack.i.h.s16 %v2069
        %v2111 = vunpack.i.l.s16 %v2071
        %v2112 = vunpack.i.h.s16 %v2071
        %v2113 = vunpack.i.l.s16 %v2054
        %v2114 = vunpack.i.h.s16 %v2054
        %v2115 = vunpack.i.l.s16 %v2068
        %v2116 = vunpack.i.h.s16 %v2068
        %v2117 = vunpack.i.l.s16 %v2070
        %v2118 = vunpack.i.h.s16 %v2070
        %v2119 = vunpack.i.l.s16 %v2072
        %v2120 = vunpack.i.h.s16 %v2072
        %v2121 = vunpack.i.l.s16 %v2086
        %v2122 = vunpack.i.h.s16 %v2086
        %v2123 = vcombine.high %v1677, 0
        %v2125 = vunpack.c.l.s4 1983009808
        %v2126 = vunpack.c.0.s8 %v2125
        %v2127 = vlaneseq
        %v2128 = vshrl.u32 %v2127, 7
        %v2129 = vsub.s32 %v2126, %v2128
        %v2130 = vrot.slane %v1677, %v2129
        %v2132 = vunpack.c.l.s4 1983009808
        %v2133 = vunpack.c.0.s8 %v2132
        %v2134 = vlaneseq
        %v2135 = vshrl.u32 %v2134, 7
        %v2136 = vsub.s32 %v2133, %v2135
        %v2137 = vrot.slane %v2123, %v2136
        %v2138 = vcombine.high %v2130, 0
        %v2140 = vunpack.c.l.s4 1934713408
        %v2141 = vunpack.c.0.s8 %v2140
        %v2142 = vlaneseq
        %v2143 = vshrl.u32 %v2142, 7
        %v2144 = vsub.s32 %v2141, %v2143
        %v2145 = vrot.slane %v2130, %v2144
        %v2147 = vunpack.c.l.s4 1934713408
        %v2148 = vunpack.c.0.s8 %v2147
        %v2149 = vlaneseq
        %v2150 = vshrl.u32 %v2149, 7
        %v2151 = vsub.s32 %v2148, %v2150
        %v2152 = vrot.slane %v2138, %v2151
        %v2153 = vcombine.high %v2137, 0
        %v2155 = vunpack.c.l.s4 1934713408
        %v2156 = vunpack.c.0.s8 %v2155
        %v2157 = vlaneseq
        %v2158 = vshrl.u32 %v2157, 7
        %v2159 = vsub.s32 %v2156, %v2158
        %v2160 = vrot.slane %v2137, %v2159
        %v2162 = vunpack.c.l.s4 1934713408
        %v2163 = vunpack.c.0.s8 %v2162
        %v2164 = vlaneseq
        %v2165 = vshrl.u32 %v2164, 7
        %v2166 = vsub.s32 %v2163, %v2165
        %v2167 = vrot.slane %v2153, %v2166
        %v2168 = vcombine.high %v2145, 0
        %v2169 = vcombine.high %v2152, 0
        %v2170 = vcombine.high %v2160, 0
        %v2171 = vcombine.high %v2167, 0
        %v2172 = vcombine.high %v1678, 0
        %v2174 = vunpack.c.l.s4 1983009808
        %v2175 = vunpack.c.0.s8 %v2174
        %v2176 = vlaneseq
        %v2177 = vshrl.u32 %v2176, 7
        %v2178 = vsub.s32 %v2175, %v2177
        %v2179 = vrot.slane %v1678, %v2178
        %v2181 = vunpack.c.l.s4 1983009808
        %v2182 = vunpack.c.0.s8 %v2181
        %v2183 = vlaneseq
        %v2184 = vshrl.u32 %v2183, 7
        %v2185 = vsub.s32 %v2182, %v2184
        %v2186 = vrot.slane %v2172, %v2185
        %v2187 = vcombine.high %v2179, 0
        %v2189 = vunpack.c.l.s4 1934713408
        %v2190 = vunpack.c.0.s8 %v2189
        %v2191 = vlaneseq
        %v2192 = vshrl.u32 %v2191, 7
        %v2193 = vsub.s32 %v2190, %v2192
        %v2194 = vrot.slane %v2179, %v2193
        %v2196 = vunpack.c.l.s4 1934713408
        %v2197 = vunpack.c.0.s8 %v2196
        %v2198 = vlaneseq
        %v2199 = vshrl.u32 %v2198, 7
        %v2200 = vsub.s32 %v2197, %v2199
        %v2201 = vrot.slane %v2187, %v2200
        %v2202 = vcombine.high %v2186, 0
        %v2204 = vunpack.c.l.s4 1934713408
        %v2205 = vunpack.c.0.s8 %v2204
        %v2206 = vlaneseq
        %v2207 = vshrl.u32 %v2206, 7
        %v2208 = vsub.s32 %v2205, %v2207
        %v2209 = vrot.slane %v2186, %v2208
        %v2211 = vunpack.c.l.s4 1934713408
        %v2212 = vunpack.c.0.s8 %v2211
        %v2213 = vlaneseq
        %v2214 = vshrl.u32 %v2213, 7
        %v2215 = vsub.s32 %v2212, %v2214
        %v2216 = vrot.slane %v2202, %v2215
        %v2217 = vcombine.high %v2194, 0
        %v2218 = vcombine.high %v2201, 0
        %v2219 = vcombine.high %v2209, 0
        %v2220 = vcombine.high %v2216, 0
        %v2221 = vpack.c.bf16 %v1618, %v1618
        %v2222 = vpack.c.bf16 %v1620, %v1620
        %v2225 = vpack.i.b16 %v2194, %v2145
        %v2227 = vshrl.u32 %v2145, 16
        %v2228 = vshrl.u32 %v2194, 16
        %v2229 = vpack.i.b16 %v2228, %v2227
        %v2233 = vpack.i.b16 %v2217, %v2168
        %v2235 = vshrl.u32 %v2168, 16
        %v2236 = vshrl.u32 %v2217, 16
        %v2237 = vpack.i.b16 %v2236, %v2235
        %v2241 = vpack.i.b16 %v2201, %v2152
        %v2243 = vshrl.u32 %v2152, 16
        %v2244 = vshrl.u32 %v2201, 16
        %v2245 = vpack.i.b16 %v2244, %v2243
        %v2249 = vpack.i.b16 %v2218, %v2169
        %v2251 = vshrl.u32 %v2169, 16
        %v2252 = vshrl.u32 %v2218, 16
        %v2253 = vpack.i.b16 %v2252, %v2251
        %v2257 = vpack.i.b16 %v2209, %v2160
        %v2259 = vshrl.u32 %v2160, 16
        %v2260 = vshrl.u32 %v2209, 16
        %v2261 = vpack.i.b16 %v2260, %v2259
        %v2265 = vpack.i.b16 %v2219, %v2170
        %v2267 = vshrl.u32 %v2170, 16
        %v2268 = vshrl.u32 %v2219, 16
        %v2269 = vpack.i.b16 %v2268, %v2267
        %v2273 = vpack.i.b16 %v2216, %v2167
        %v2275 = vshrl.u32 %v2167, 16
        %v2276 = vshrl.u32 %v2216, 16
        %v2277 = vpack.i.b16 %v2276, %v2275
        %v2281 = vpack.i.b16 %v2220, %v2171
        %v2283 = vshrl.u32 %v2171, 16
        %v2284 = vshrl.u32 %v2220, 16
        %v2285 = vpack.i.b16 %v2284, %v2283
        %v2289 = vpack.i.b16 %v2222, %v2221
        %v2290 = vshrl.u32 %v2221, 16
        %v2291 = vshrl.u32 %v2222, 16
        %v2292 = vpack.i.b16 %v2291, %v2290
        %v2293 = vcombine.low %v2225, %v2241
        %v2295 = vunpack.c.l.s4 1983009808
        %v2296 = vunpack.c.0.s8 %v2295
        %v2297 = vlaneseq
        %v2298 = vshrl.u32 %v2297, 7
        %v2299 = vsub.s32 %v2296, %v2298
        %v2300 = vrot.slane %v2293, %v2299
        %v2301 = vcombine.low %v2233, %v2249
        %v2303 = vunpack.c.l.s4 1983009808
        %v2304 = vunpack.c.0.s8 %v2303
        %v2305 = vlaneseq
        %v2306 = vshrl.u32 %v2305, 7
        %v2307 = vsub.s32 %v2304, %v2306
        %v2308 = vrot.slane %v2301, %v2307
        %v2309 = vcombine.low %v2257, %v2273
        %v2311 = vunpack.c.l.s4 1983009808
        %v2312 = vunpack.c.0.s8 %v2311
        %v2313 = vlaneseq
        %v2314 = vshrl.u32 %v2313, 7
        %v2315 = vsub.s32 %v2312, %v2314
        %v2316 = vrot.slane %v2309, %v2315
        %v2317 = vcombine.low %v2265, %v2281
        %v2319 = vunpack.c.l.s4 1983009808
        %v2320 = vunpack.c.0.s8 %v2319
        %v2321 = vlaneseq
        %v2322 = vshrl.u32 %v2321, 7
        %v2323 = vsub.s32 %v2320, %v2322
        %v2324 = vrot.slane %v2317, %v2323
        %v2325 = vcombine.low %v2300, %v2308
        %v2327 = vunpack.c.l.s4 1934713408
        %v2328 = vunpack.c.0.s8 %v2327
        %v2329 = vlaneseq
        %v2330 = vshrl.u32 %v2329, 7
        %v2331 = vsub.s32 %v2328, %v2330
        %v2332 = vrot.slane %v2325, %v2331
        %v2333 = vcombine.low %v2316, %v2324
        %v2335 = vunpack.c.l.s4 1934713408
        %v2336 = vunpack.c.0.s8 %v2335
        %v2337 = vlaneseq
        %v2338 = vshrl.u32 %v2337, 7
        %v2339 = vsub.s32 %v2336, %v2338
        %v2340 = vrot.slane %v2333, %v2339
        %v2341 = vcombine.low %v2332, %v2340
        %v2342 = vcombine.low %v2229, %v2245
        %v2344 = vunpack.c.l.s4 1983009808
        %v2345 = vunpack.c.0.s8 %v2344
        %v2346 = vlaneseq
        %v2347 = vshrl.u32 %v2346, 7
        %v2348 = vsub.s32 %v2345, %v2347
        %v2349 = vrot.slane %v2342, %v2348
        %v2350 = vcombine.low %v2237, %v2253
        %v2352 = vunpack.c.l.s4 1983009808
        %v2353 = vunpack.c.0.s8 %v2352
        %v2354 = vlaneseq
        %v2355 = vshrl.u32 %v2354, 7
        %v2356 = vsub.s32 %v2353, %v2355
        %v2357 = vrot.slane %v2350, %v2356
        %v2358 = vcombine.low %v2261, %v2277
        %v2360 = vunpack.c.l.s4 1983009808
        %v2361 = vunpack.c.0.s8 %v2360
        %v2362 = vlaneseq
        %v2363 = vshrl.u32 %v2362, 7
        %v2364 = vsub.s32 %v2361, %v2363
        %v2365 = vrot.slane %v2358, %v2364
        %v2366 = vcombine.low %v2269, %v2285
        %v2368 = vunpack.c.l.s4 1983009808
        %v2369 = vunpack.c.0.s8 %v2368
        %v2370 = vlaneseq
        %v2371 = vshrl.u32 %v2370, 7
        %v2372 = vsub.s32 %v2369, %v2371
        %v2373 = vrot.slane %v2366, %v2372
        %v2374 = vcombine.low %v2349, %v2357
        %v2376 = vunpack.c.l.s4 1934713408
        %v2377 = vunpack.c.0.s8 %v2376
        %v2378 = vlaneseq
        %v2379 = vshrl.u32 %v2378, 7
        %v2380 = vsub.s32 %v2377, %v2379
        %v2381 = vrot.slane %v2374, %v2380
        %v2382 = vcombine.low %v2365, %v2373
        %v2384 = vunpack.c.l.s4 1934713408
        %v2385 = vunpack.c.0.s8 %v2384
        %v2386 = vlaneseq
        %v2387 = vshrl.u32 %v2386, 7
        %v2388 = vsub.s32 %v2385, %v2387
        %v2389 = vrot.slane %v2382, %v2388
        %v2390 = vcombine.low %v2381, %v2389
        %v2393 = vpack.i.b16 %v2390, %v2341
        %v2394 = vshrl.u32 %v2341, 16
        %v2395 = vshrl.u32 %v2390, 16
        %v2396 = vpack.i.b16 %v2395, %v2394
        %v2399 = vpack.i.b16 %v2292, %v2289
        %v2400 = vshrl.u32 %v2289, 16
        %v2401 = vshrl.u32 %v2292, 16
        %v2402 = vpack.i.b16 %v2401, %v2400
        %v2403 = vcombine.high %v2393, %v2393
        %v2405 = vunpack.c.l.s4 1966171168
        %v2406 = vunpack.c.0.s8 %v2405
        %v2407 = vlaneseq
        %v2408 = vshrl.u32 %v2407, 7
        %v2409 = vsub.s32 %v2406, %v2408
        %v2410 = vrot.slane %v2393, %v2409
        %v2412 = vunpack.c.l.s4 1966171168
        %v2413 = vunpack.c.0.s8 %v2412
        %v2414 = vlaneseq
        %v2415 = vshrl.u32 %v2414, 7
        %v2416 = vsub.s32 %v2413, %v2415
        %v2417 = vrot.slane %v2403, %v2416
        %v2418 = vcombine.high %v2410, %v2410
        %v2419 = vcombine.high %v2417, %v2417
        %v2421 = vunpack.c.l.s4 1966171168
        %v2422 = vunpack.c.0.s8 %v2421
        %v2423 = vlaneseq
        %v2424 = vshrl.u32 %v2423, 7
        %v2425 = vsub.s32 %v2422, %v2424
        %v2426 = vrot.slane %v2410, %v2425
        %v2428 = vunpack.c.l.s4 1966171168
        %v2429 = vunpack.c.0.s8 %v2428
        %v2430 = vlaneseq
        %v2431 = vshrl.u32 %v2430, 7
        %v2432 = vsub.s32 %v2429, %v2431
        %v2433 = vrot.slane %v2417, %v2432
        %v2435 = vunpack.c.l.s4 1966171168
        %v2436 = vunpack.c.0.s8 %v2435
        %v2437 = vlaneseq
        %v2438 = vshrl.u32 %v2437, 7
        %v2439 = vsub.s32 %v2436, %v2438
        %v2440 = vrot.slane %v2418, %v2439
        %v2442 = vunpack.c.l.s4 1966171168
        %v2443 = vunpack.c.0.s8 %v2442
        %v2444 = vlaneseq
        %v2445 = vshrl.u32 %v2444, 7
        %v2446 = vsub.s32 %v2443, %v2445
        %v2447 = vrot.slane %v2419, %v2446
        %v2448 = vcombine.high %v2426, %v2426
        %v2449 = vcombine.high %v2433, %v2433
        %v2450 = vcombine.high %v2440, %v2440
        %v2451 = vcombine.high %v2447, %v2447
        %v2453 = vunpack.c.l.s4 1966171168
        %v2454 = vunpack.c.0.s8 %v2453
        %v2455 = vlaneseq
        %v2456 = vshrl.u32 %v2455, 7
        %v2457 = vsub.s32 %v2454, %v2456
        %v2458 = vrot.slane %v2399, %v2457
        %v2460 = vunpack.c.l.s4 1966171168
        %v2461 = vunpack.c.0.s8 %v2460
        %v2462 = vlaneseq
        %v2463 = vshrl.u32 %v2462, 7
        %v2464 = vsub.s32 %v2461, %v2463
        %v2465 = vrot.slane %v2458, %v2464
        %v2466 = vcombine.high %v2396, %v2396
        %v2468 = vunpack.c.l.s4 1966171168
        %v2469 = vunpack.c.0.s8 %v2468
        %v2470 = vlaneseq
        %v2471 = vshrl.u32 %v2470, 7
        %v2472 = vsub.s32 %v2469, %v2471
        %v2473 = vrot.slane %v2396, %v2472
        %v2475 = vunpack.c.l.s4 1966171168
        %v2476 = vunpack.c.0.s8 %v2475
        %v2477 = vlaneseq
        %v2478 = vshrl.u32 %v2477, 7
        %v2479 = vsub.s32 %v2476, %v2478
        %v2480 = vrot.slane %v2466, %v2479
        %v2481 = vcombine.high %v2473, %v2473
        %v2482 = vcombine.high %v2480, %v2480
        %v2484 = vunpack.c.l.s4 1966171168
        %v2485 = vunpack.c.0.s8 %v2484
        %v2486 = vlaneseq
        %v2487 = vshrl.u32 %v2486, 7
        %v2488 = vsub.s32 %v2485, %v2487
        %v2489 = vrot.slane %v2473, %v2488
        %v2491 = vunpack.c.l.s4 1966171168
        %v2492 = vunpack.c.0.s8 %v2491
        %v2493 = vlaneseq
        %v2494 = vshrl.u32 %v2493, 7
        %v2495 = vsub.s32 %v2492, %v2494
        %v2496 = vrot.slane %v2480, %v2495
        %v2498 = vunpack.c.l.s4 1966171168
        %v2499 = vunpack.c.0.s8 %v2498
        %v2500 = vlaneseq
        %v2501 = vshrl.u32 %v2500, 7
        %v2502 = vsub.s32 %v2499, %v2501
        %v2503 = vrot.slane %v2481, %v2502
        %v2505 = vunpack.c.l.s4 1966171168
        %v2506 = vunpack.c.0.s8 %v2505
        %v2507 = vlaneseq
        %v2508 = vshrl.u32 %v2507, 7
        %v2509 = vsub.s32 %v2506, %v2508
        %v2510 = vrot.slane %v2482, %v2509
        %v2511 = vcombine.high %v2489, %v2489
        %v2512 = vcombine.high %v2496, %v2496
        %v2513 = vcombine.high %v2503, %v2503
        %v2514 = vcombine.high %v2510, %v2510
        %v2516 = vunpack.c.l.s4 1966171168
        %v2517 = vunpack.c.0.s8 %v2516
        %v2518 = vlaneseq
        %v2519 = vshrl.u32 %v2518, 7
        %v2520 = vsub.s32 %v2517, %v2519
        %v2521 = vrot.slane %v2402, %v2520
        %v2523 = vunpack.c.l.s4 1966171168
        %v2524 = vunpack.c.0.s8 %v2523
        %v2525 = vlaneseq
        %v2526 = vshrl.u32 %v2525, 7
        %v2527 = vsub.s32 %v2524, %v2526
        %v2528 = vrot.slane %v2521, %v2527
        %v2529 = vunpack.i.l.s16 %v2426
        %v2530 = vunpack.i.h.s16 %v2426
        %v2531 = vunpack.i.l.s16 %v2440
        %v2532 = vunpack.i.h.s16 %v2440
        %v2533 = vunpack.i.l.s16 %v2448
        %v2534 = vunpack.i.h.s16 %v2448
        %v2535 = vunpack.i.l.s16 %v2450
        %v2536 = vunpack.i.h.s16 %v2450
        %v2537 = vunpack.i.l.s16 %v2433
        %v2538 = vunpack.i.h.s16 %v2433
        %v2539 = vunpack.i.l.s16 %v2447
        %v2540 = vunpack.i.h.s16 %v2447
        %v2541 = vunpack.i.l.s16 %v2449
        %v2542 = vunpack.i.h.s16 %v2449
        %v2543 = vunpack.i.l.s16 %v2451
        %v2544 = vunpack.i.h.s16 %v2451
        %v2545 = vunpack.i.l.s16 %v2465
        %v2546 = vunpack.i.h.s16 %v2465
        %v2547 = vunpack.i.l.s16 %v2489
        %v2548 = vunpack.i.h.s16 %v2489
        %v2549 = vunpack.i.l.s16 %v2503
        %v2550 = vunpack.i.h.s16 %v2503
        %v2551 = vunpack.i.l.s16 %v2511
        %v2552 = vunpack.i.h.s16 %v2511
        %v2553 = vunpack.i.l.s16 %v2513
        %v2554 = vunpack.i.h.s16 %v2513
        %v2555 = vunpack.i.l.s16 %v2496
        %v2556 = vunpack.i.h.s16 %v2496
        %v2557 = vunpack.i.l.s16 %v2510
        %v2558 = vunpack.i.h.s16 %v2510
        %v2559 = vunpack.i.l.s16 %v2512
        %v2560 = vunpack.i.h.s16 %v2512
        %v2561 = vunpack.i.l.s16 %v2514
        %v2562 = vunpack.i.h.s16 %v2514
        %v2563 = vunpack.i.l.s16 %v2528
        %v2564 = vunpack.i.h.s16 %v2528
        %v2565 = vcombine.high %v1679, 0
        %v2567 = vunpack.c.l.s4 1983009808
        %v2568 = vunpack.c.0.s8 %v2567
        %v2569 = vlaneseq
        %v2570 = vshrl.u32 %v2569, 7
        %v2571 = vsub.s32 %v2568, %v2570
        %v2572 = vrot.slane %v1679, %v2571
        %v2574 = vunpack.c.l.s4 1983009808
        %v2575 = vunpack.c.0.s8 %v2574
        %v2576 = vlaneseq
        %v2577 = vshrl.u32 %v2576, 7
        %v2578 = vsub.s32 %v2575, %v2577
        %v2579 = vrot.slane %v2565, %v2578
        %v2580 = vcombine.high %v2572, 0
        %v2582 = vunpack.c.l.s4 1934713408
        %v2583 = vunpack.c.0.s8 %v2582
        %v2584 = vlaneseq
        %v2585 = vshrl.u32 %v2584, 7
        %v2586 = vsub.s32 %v2583, %v2585
        %v2587 = vrot.slane %v2572, %v2586
        %v2589 = vunpack.c.l.s4 1934713408
        %v2590 = vunpack.c.0.s8 %v2589
        %v2591 = vlaneseq
        %v2592 = vshrl.u32 %v2591, 7
        %v2593 = vsub.s32 %v2590, %v2592
        %v2594 = vrot.slane %v2580, %v2593
        %v2595 = vcombine.high %v2579, 0
        %v2597 = vunpack.c.l.s4 1934713408
        %v2598 = vunpack.c.0.s8 %v2597
        %v2599 = vlaneseq
        %v2600 = vshrl.u32 %v2599, 7
        %v2601 = vsub.s32 %v2598, %v2600
        %v2602 = vrot.slane %v2579, %v2601
        %v2604 = vunpack.c.l.s4 1934713408
        %v2605 = vunpack.c.0.s8 %v2604
        %v2606 = vlaneseq
        %v2607 = vshrl.u32 %v2606, 7
        %v2608 = vsub.s32 %v2605, %v2607
        %v2609 = vrot.slane %v2595, %v2608
        %v2610 = vcombine.high %v2587, 0
        %v2611 = vcombine.high %v2594, 0
        %v2612 = vcombine.high %v2602, 0
        %v2613 = vcombine.high %v2609, 0
        %v2614 = vcombine.high %v1680, 0
        %v2616 = vunpack.c.l.s4 1983009808
        %v2617 = vunpack.c.0.s8 %v2616
        %v2618 = vlaneseq
        %v2619 = vshrl.u32 %v2618, 7
        %v2620 = vsub.s32 %v2617, %v2619
        %v2621 = vrot.slane %v1680, %v2620
        %v2623 = vunpack.c.l.s4 1983009808
        %v2624 = vunpack.c.0.s8 %v2623
        %v2625 = vlaneseq
        %v2626 = vshrl.u32 %v2625, 7
        %v2627 = vsub.s32 %v2624, %v2626
        %v2628 = vrot.slane %v2614, %v2627
        %v2629 = vcombine.high %v2621, 0
        %v2631 = vunpack.c.l.s4 1934713408
        %v2632 = vunpack.c.0.s8 %v2631
        %v2633 = vlaneseq
        %v2634 = vshrl.u32 %v2633, 7
        %v2635 = vsub.s32 %v2632, %v2634
        %v2636 = vrot.slane %v2621, %v2635
        %v2638 = vunpack.c.l.s4 1934713408
        %v2639 = vunpack.c.0.s8 %v2638
        %v2640 = vlaneseq
        %v2641 = vshrl.u32 %v2640, 7
        %v2642 = vsub.s32 %v2639, %v2641
        %v2643 = vrot.slane %v2629, %v2642
        %v2644 = vcombine.high %v2628, 0
        %v2646 = vunpack.c.l.s4 1934713408
        %v2647 = vunpack.c.0.s8 %v2646
        %v2648 = vlaneseq
        %v2649 = vshrl.u32 %v2648, 7
        %v2650 = vsub.s32 %v2647, %v2649
        %v2651 = vrot.slane %v2628, %v2650
        %v2653 = vunpack.c.l.s4 1934713408
        %v2654 = vunpack.c.0.s8 %v2653
        %v2655 = vlaneseq
        %v2656 = vshrl.u32 %v2655, 7
        %v2657 = vsub.s32 %v2654, %v2656
        %v2658 = vrot.slane %v2644, %v2657
        %v2659 = vcombine.high %v2636, 0
        %v2660 = vcombine.high %v2643, 0
        %v2661 = vcombine.high %v2651, 0
        %v2662 = vcombine.high %v2658, 0
        %v2663 = vpack.c.bf16 %v1669, %v1669
        %v2664 = vpack.c.bf16 %v1671, %v1671
        %v2667 = vpack.i.b16 %v2636, %v2587
        %v2669 = vshrl.u32 %v2587, 16
        %v2670 = vshrl.u32 %v2636, 16
        %v2671 = vpack.i.b16 %v2670, %v2669
        %v2675 = vpack.i.b16 %v2659, %v2610
        %v2677 = vshrl.u32 %v2610, 16
        %v2678 = vshrl.u32 %v2659, 16
        %v2679 = vpack.i.b16 %v2678, %v2677
        %v2683 = vpack.i.b16 %v2643, %v2594
        %v2685 = vshrl.u32 %v2594, 16
        %v2686 = vshrl.u32 %v2643, 16
        %v2687 = vpack.i.b16 %v2686, %v2685
        %v2691 = vpack.i.b16 %v2660, %v2611
        %v2693 = vshrl.u32 %v2611, 16
        %v2694 = vshrl.u32 %v2660, 16
        %v2695 = vpack.i.b16 %v2694, %v2693
        %v2699 = vpack.i.b16 %v2651, %v2602
        %v2701 = vshrl.u32 %v2602, 16
        %v2702 = vshrl.u32 %v2651, 16
        %v2703 = vpack.i.b16 %v2702, %v2701
        %v2707 = vpack.i.b16 %v2661, %v2612
        %v2709 = vshrl.u32 %v2612, 16
        %v2710 = vshrl.u32 %v2661, 16
        %v2711 = vpack.i.b16 %v2710, %v2709
        %v2715 = vpack.i.b16 %v2658, %v2609
        %v2717 = vshrl.u32 %v2609, 16
        %v2718 = vshrl.u32 %v2658, 16
        %v2719 = vpack.i.b16 %v2718, %v2717
        %v2723 = vpack.i.b16 %v2662, %v2613
        %v2725 = vshrl.u32 %v2613, 16
        %v2726 = vshrl.u32 %v2662, 16
        %v2727 = vpack.i.b16 %v2726, %v2725
        %v2731 = vpack.i.b16 %v2664, %v2663
        %v2732 = vshrl.u32 %v2663, 16
        %v2733 = vshrl.u32 %v2664, 16
        %v2734 = vpack.i.b16 %v2733, %v2732
        %v2735 = vcombine.low %v2667, %v2683
        %v2737 = vunpack.c.l.s4 1983009808
        %v2738 = vunpack.c.0.s8 %v2737
        %v2739 = vlaneseq
        %v2740 = vshrl.u32 %v2739, 7
        %v2741 = vsub.s32 %v2738, %v2740
        %v2742 = vrot.slane %v2735, %v2741
        %v2743 = vcombine.low %v2675, %v2691
        %v2745 = vunpack.c.l.s4 1983009808
        %v2746 = vunpack.c.0.s8 %v2745
        %v2747 = vlaneseq
        %v2748 = vshrl.u32 %v2747, 7
        %v2749 = vsub.s32 %v2746, %v2748
        %v2750 = vrot.slane %v2743, %v2749
        %v2751 = vcombine.low %v2699, %v2715
        %v2753 = vunpack.c.l.s4 1983009808
        %v2754 = vunpack.c.0.s8 %v2753
        %v2755 = vlaneseq
        %v2756 = vshrl.u32 %v2755, 7
        %v2757 = vsub.s32 %v2754, %v2756
        %v2758 = vrot.slane %v2751, %v2757
        %v2759 = vcombine.low %v2707, %v2723
        %v2761 = vunpack.c.l.s4 1983009808
        %v2762 = vunpack.c.0.s8 %v2761
        %v2763 = vlaneseq
        %v2764 = vshrl.u32 %v2763, 7
        %v2765 = vsub.s32 %v2762, %v2764
        %v2766 = vrot.slane %v2759, %v2765
        %v2767 = vcombine.low %v2742, %v2750
        %v2769 = vunpack.c.l.s4 1934713408
        %v2770 = vunpack.c.0.s8 %v2769
        %v2771 = vlaneseq
        %v2772 = vshrl.u32 %v2771, 7
        %v2773 = vsub.s32 %v2770, %v2772
        %v2774 = vrot.slane %v2767, %v2773
        %v2775 = vcombine.low %v2758, %v2766
        %v2777 = vunpack.c.l.s4 1934713408
        %v2778 = vunpack.c.0.s8 %v2777
        %v2779 = vlaneseq
        %v2780 = vshrl.u32 %v2779, 7
        %v2781 = vsub.s32 %v2778, %v2780
        %v2782 = vrot.slane %v2775, %v2781
        %v2783 = vcombine.low %v2774, %v2782
        %v2784 = vcombine.low %v2671, %v2687
        %v2786 = vunpack.c.l.s4 1983009808
        %v2787 = vunpack.c.0.s8 %v2786
        %v2788 = vlaneseq
        %v2789 = vshrl.u32 %v2788, 7
        %v2790 = vsub.s32 %v2787, %v2789
        %v2791 = vrot.slane %v2784, %v2790
        %v2792 = vcombine.low %v2679, %v2695
        %v2794 = vunpack.c.l.s4 1983009808
        %v2795 = vunpack.c.0.s8 %v2794
        %v2796 = vlaneseq
        %v2797 = vshrl.u32 %v2796, 7
        %v2798 = vsub.s32 %v2795, %v2797
        %v2799 = vrot.slane %v2792, %v2798
        %v2800 = vcombine.low %v2703, %v2719
        %v2802 = vunpack.c.l.s4 1983009808
        %v2803 = vunpack.c.0.s8 %v2802
        %v2804 = vlaneseq
        %v2805 = vshrl.u32 %v2804, 7
        %v2806 = vsub.s32 %v2803, %v2805
        %v2807 = vrot.slane %v2800, %v2806
        %v2808 = vcombine.low %v2711, %v2727
        %v2810 = vunpack.c.l.s4 1983009808
        %v2811 = vunpack.c.0.s8 %v2810
        %v2812 = vlaneseq
        %v2813 = vshrl.u32 %v2812, 7
        %v2814 = vsub.s32 %v2811, %v2813
        %v2815 = vrot.slane %v2808, %v2814
        %v2816 = vcombine.low %v2791, %v2799
        %v2818 = vunpack.c.l.s4 1934713408
        %v2819 = vunpack.c.0.s8 %v2818
        %v2820 = vlaneseq
        %v2821 = vshrl.u32 %v2820, 7
        %v2822 = vsub.s32 %v2819, %v2821
        %v2823 = vrot.slane %v2816, %v2822
        %v2824 = vcombine.low %v2807, %v2815
        %v2826 = vunpack.c.l.s4 1934713408
        %v2827 = vunpack.c.0.s8 %v2826
        %v2828 = vlaneseq
        %v2829 = vshrl.u32 %v2828, 7
        %v2830 = vsub.s32 %v2827, %v2829
        %v2831 = vrot.slane %v2824, %v2830
        %v2832 = vcombine.low %v2823, %v2831
        %v2835 = vpack.i.b16 %v2832, %v2783
        %v2836 = vshrl.u32 %v2783, 16
        %v2837 = vshrl.u32 %v2832, 16
        %v2838 = vpack.i.b16 %v2837, %v2836
        %v2841 = vpack.i.b16 %v2734, %v2731
        %v2842 = vshrl.u32 %v2731, 16
        %v2843 = vshrl.u32 %v2734, 16
        %v2844 = vpack.i.b16 %v2843, %v2842
        %v2845 = vcombine.high %v2835, %v2835
        %v2847 = vunpack.c.l.s4 1966171168
        %v2848 = vunpack.c.0.s8 %v2847
        %v2849 = vlaneseq
        %v2850 = vshrl.u32 %v2849, 7
        %v2851 = vsub.s32 %v2848, %v2850
        %v2852 = vrot.slane %v2835, %v2851
        %v2854 = vunpack.c.l.s4 1966171168
        %v2855 = vunpack.c.0.s8 %v2854
        %v2856 = vlaneseq
        %v2857 = vshrl.u32 %v2856, 7
        %v2858 = vsub.s32 %v2855, %v2857
        %v2859 = vrot.slane %v2845, %v2858
        %v2860 = vcombine.high %v2852, %v2852
        %v2861 = vcombine.high %v2859, %v2859
        %v2863 = vunpack.c.l.s4 1966171168
        %v2864 = vunpack.c.0.s8 %v2863
        %v2865 = vlaneseq
        %v2866 = vshrl.u32 %v2865, 7
        %v2867 = vsub.s32 %v2864, %v2866
        %v2868 = vrot.slane %v2852, %v2867
        %v2870 = vunpack.c.l.s4 1966171168
        %v2871 = vunpack.c.0.s8 %v2870
        %v2872 = vlaneseq
        %v2873 = vshrl.u32 %v2872, 7
        %v2874 = vsub.s32 %v2871, %v2873
        %v2875 = vrot.slane %v2859, %v2874
        %v2877 = vunpack.c.l.s4 1966171168
        %v2878 = vunpack.c.0.s8 %v2877
        %v2879 = vlaneseq
        %v2880 = vshrl.u32 %v2879, 7
        %v2881 = vsub.s32 %v2878, %v2880
        %v2882 = vrot.slane %v2860, %v2881
        %v2884 = vunpack.c.l.s4 1966171168
        %v2885 = vunpack.c.0.s8 %v2884
        %v2886 = vlaneseq
        %v2887 = vshrl.u32 %v2886, 7
        %v2888 = vsub.s32 %v2885, %v2887
        %v2889 = vrot.slane %v2861, %v2888
        %v2890 = vcombine.high %v2868, %v2868
        %v2891 = vcombine.high %v2875, %v2875
        %v2892 = vcombine.high %v2882, %v2882
        %v2893 = vcombine.high %v2889, %v2889
        %v2895 = vunpack.c.l.s4 1966171168
        %v2896 = vunpack.c.0.s8 %v2895
        %v2897 = vlaneseq
        %v2898 = vshrl.u32 %v2897, 7
        %v2899 = vsub.s32 %v2896, %v2898
        %v2900 = vrot.slane %v2841, %v2899
        %v2902 = vunpack.c.l.s4 1966171168
        %v2903 = vunpack.c.0.s8 %v2902
        %v2904 = vlaneseq
        %v2905 = vshrl.u32 %v2904, 7
        %v2906 = vsub.s32 %v2903, %v2905
        %v2907 = vrot.slane %v2900, %v2906
        %v2908 = vcombine.high %v2838, %v2838
        %v2910 = vunpack.c.l.s4 1966171168
        %v2911 = vunpack.c.0.s8 %v2910
        %v2912 = vlaneseq
        %v2913 = vshrl.u32 %v2912, 7
        %v2914 = vsub.s32 %v2911, %v2913
        %v2915 = vrot.slane %v2838, %v2914
        %v2917 = vunpack.c.l.s4 1966171168
        %v2918 = vunpack.c.0.s8 %v2917
        %v2919 = vlaneseq
        %v2920 = vshrl.u32 %v2919, 7
        %v2921 = vsub.s32 %v2918, %v2920
        %v2922 = vrot.slane %v2908, %v2921
        %v2923 = vcombine.high %v2915, %v2915
        %v2924 = vcombine.high %v2922, %v2922
        %v2926 = vunpack.c.l.s4 1966171168
        %v2927 = vunpack.c.0.s8 %v2926
        %v2928 = vlaneseq
        %v2929 = vshrl.u32 %v2928, 7
        %v2930 = vsub.s32 %v2927, %v2929
        %v2931 = vrot.slane %v2915, %v2930
        %v2933 = vunpack.c.l.s4 1966171168
        %v2934 = vunpack.c.0.s8 %v2933
        %v2935 = vlaneseq
        %v2936 = vshrl.u32 %v2935, 7
        %v2937 = vsub.s32 %v2934, %v2936
        %v2938 = vrot.slane %v2922, %v2937
        %v2940 = vunpack.c.l.s4 1966171168
        %v2941 = vunpack.c.0.s8 %v2940
        %v2942 = vlaneseq
        %v2943 = vshrl.u32 %v2942, 7
        %v2944 = vsub.s32 %v2941, %v2943
        %v2945 = vrot.slane %v2923, %v2944
        %v2947 = vunpack.c.l.s4 1966171168
        %v2948 = vunpack.c.0.s8 %v2947
        %v2949 = vlaneseq
        %v2950 = vshrl.u32 %v2949, 7
        %v2951 = vsub.s32 %v2948, %v2950
        %v2952 = vrot.slane %v2924, %v2951
        %v2953 = vcombine.high %v2931, %v2931
        %v2954 = vcombine.high %v2938, %v2938
        %v2955 = vcombine.high %v2945, %v2945
        %v2956 = vcombine.high %v2952, %v2952
        %v2958 = vunpack.c.l.s4 1966171168
        %v2959 = vunpack.c.0.s8 %v2958
        %v2960 = vlaneseq
        %v2961 = vshrl.u32 %v2960, 7
        %v2962 = vsub.s32 %v2959, %v2961
        %v2963 = vrot.slane %v2844, %v2962
        %v2965 = vunpack.c.l.s4 1966171168
        %v2966 = vunpack.c.0.s8 %v2965
        %v2967 = vlaneseq
        %v2968 = vshrl.u32 %v2967, 7
        %v2969 = vsub.s32 %v2966, %v2968
        %v2970 = vrot.slane %v2963, %v2969
        %v2971 = vunpack.i.l.s16 %v2868
        %v2972 = vunpack.i.h.s16 %v2868
        %v2973 = vunpack.i.l.s16 %v2882
        %v2974 = vunpack.i.h.s16 %v2882
        %v2975 = vunpack.i.l.s16 %v2890
        %v2976 = vunpack.i.h.s16 %v2890
        %v2977 = vunpack.i.l.s16 %v2892
        %v2978 = vunpack.i.h.s16 %v2892
        %v2979 = vunpack.i.l.s16 %v2875
        %v2980 = vunpack.i.h.s16 %v2875
        %v2981 = vunpack.i.l.s16 %v2889
        %v2982 = vunpack.i.h.s16 %v2889
        %v2983 = vunpack.i.l.s16 %v2891
        %v2984 = vunpack.i.h.s16 %v2891
        %v2985 = vunpack.i.l.s16 %v2893
        %v2986 = vunpack.i.h.s16 %v2893
        %v2987 = vunpack.i.l.s16 %v2907
        %v2988 = vunpack.i.h.s16 %v2907
        %v2989 = vunpack.i.l.s16 %v2931
        %v2990 = vunpack.i.h.s16 %v2931
        %v2991 = vunpack.i.l.s16 %v2945
        %v2992 = vunpack.i.h.s16 %v2945
        %v2993 = vunpack.i.l.s16 %v2953
        %v2994 = vunpack.i.h.s16 %v2953
        %v2995 = vunpack.i.l.s16 %v2955
        %v2996 = vunpack.i.h.s16 %v2955
        %v2997 = vunpack.i.l.s16 %v2938
        %v2998 = vunpack.i.h.s16 %v2938
        %v2999 = vunpack.i.l.s16 %v2952
        %v3000 = vunpack.i.h.s16 %v2952
        %v3001 = vunpack.i.l.s16 %v2954
        %v3002 = vunpack.i.h.s16 %v2954
        %v3003 = vunpack.i.l.s16 %v2956
        %v3004 = vunpack.i.h.s16 %v2956
        %v3005 = vunpack.i.l.s16 %v2970
        %v3006 = vunpack.i.h.s16 %v2970
        %v3007 = vpack.i.b16 %v2088, %v2087
        %v3008 = vpack.i.b16 %v2090, %v2089
        %v3009 = vpack.i.b16 %v2092, %v2091
        %v3010 = vpack.i.b16 %v2094, %v2093
        %v3012 = vcombine.low %v3007, %v3008
        %v3013 = vcombine.low %v3009, %v3010
        %v3015 = vunpack.c.l.s4 1966171168
        %v3016 = vunpack.c.0.s8 %v3015
        %v3017 = vlaneseq
        %v3018 = vshrl.u32 %v3017, 7
        %v3019 = vsub.s32 %v3016, %v3018
        %v3020 = vrot.slane %v3012, %v3019
        %v3022 = vunpack.c.l.s4 1966171168
        %v3023 = vunpack.c.0.s8 %v3022
        %v3024 = vlaneseq
        %v3025 = vshrl.u32 %v3024, 7
        %v3026 = vsub.s32 %v3023, %v3025
        %v3027 = vrot.slane %v3013, %v3026
        %v3029 = vunpack.c.l.s4 1966171168
        %v3030 = vunpack.c.0.s8 %v3029
        %v3031 = vlaneseq
        %v3032 = vshrl.u32 %v3031, 7
        %v3033 = vsub.s32 %v3030, %v3032
        %v3034 = vrot.slane %v2095, %v3033
        %v3035 = vcombine.low %v3020, %v3027
        %v3037 = vunpack.c.l.s4 1966171168
        %v3038 = vunpack.c.0.s8 %v3037
        %v3039 = vlaneseq
        %v3040 = vshrl.u32 %v3039, 7
        %v3041 = vsub.s32 %v3038, %v3040
        %v3042 = vrot.slane %v3035, %v3041
        %v3044 = vunpack.c.l.s4 1966171168
        %v3045 = vunpack.c.0.s8 %v3044
        %v3046 = vlaneseq
        %v3047 = vshrl.u32 %v3046, 7
        %v3048 = vsub.s32 %v3045, %v3047
        %v3049 = vrot.slane %v3034, %v3048
        %v3050 = vcombine.low %v3042, %v3049
        %v3052 = vpack.i.b16 %v2530, %v2529
        %v3053 = vpack.i.b16 %v2532, %v2531
        %v3054 = vpack.i.b16 %v2534, %v2533
        %v3055 = vpack.i.b16 %v2536, %v2535
        %v3057 = vcombine.low %v3052, %v3053
        %v3058 = vcombine.low %v3054, %v3055
        %v3060 = vunpack.c.l.s4 1966171168
        %v3061 = vunpack.c.0.s8 %v3060
        %v3062 = vlaneseq
        %v3063 = vshrl.u32 %v3062, 7
        %v3064 = vsub.s32 %v3061, %v3063
        %v3065 = vrot.slane %v3057, %v3064
        %v3067 = vunpack.c.l.s4 1966171168
        %v3068 = vunpack.c.0.s8 %v3067
        %v3069 = vlaneseq
        %v3070 = vshrl.u32 %v3069, 7
        %v3071 = vsub.s32 %v3068, %v3070
        %v3072 = vrot.slane %v3058, %v3071
        %v3074 = vunpack.c.l.s4 1966171168
        %v3075 = vunpack.c.0.s8 %v3074
        %v3076 = vlaneseq
        %v3077 = vshrl.u32 %v3076, 7
        %v3078 = vsub.s32 %v3075, %v3077
        %v3079 = vrot.slane %v2537, %v3078
        %v3080 = vcombine.low %v3065, %v3072
        %v3082 = vunpack.c.l.s4 1966171168
        %v3083 = vunpack.c.0.s8 %v3082
        %v3084 = vlaneseq
        %v3085 = vshrl.u32 %v3084, 7
        %v3086 = vsub.s32 %v3083, %v3085
        %v3087 = vrot.slane %v3080, %v3086
        %v3089 = vunpack.c.l.s4 1966171168
        %v3090 = vunpack.c.0.s8 %v3089
        %v3091 = vlaneseq
        %v3092 = vshrl.u32 %v3091, 7
        %v3093 = vsub.s32 %v3090, %v3092
        %v3094 = vrot.slane %v3079, %v3093
        %v3095 = vcombine.low %v3087, %v3094
        %3097 = vmatprep.subr.bf16.mxu0 0
        %3098 = vmatpush1.bf16.xpose.msra.mxu0 0
        %3099 = vmatprep.subr.bf16.mxu0 0
        %3100 = vmatpush1.bf16.xpose.msra.mxu0 0
        %3101 = vmatprep.subr.bf16.mxu0 0
        %3102 = vmatpush1.bf16.xpose.msra.mxu0 0
        %3103 = vmatprep.subr.bf16.mxu0 0
        %3104 = vmatpush1.bf16.xpose.msra.mxu0 0
        %3105 = vmatprep.subr.bf16.mxu0 0
        %3106 = vmatpush1.bf16.xpose.msra.mxu0 0
        %3107 = vmatprep.subr.bf16.mxu0 0
        %3108 = vmatpush1.bf16.xpose.msra.mxu0 0
        %3109 = vmatprep.subr.bf16.mxu0 0
        %3110 = vmatpush1.bf16.xpose.msra.mxu0 0
        %3111 = vmatprep.subr.bf16.mxu0 0
        %3112 = vmatpush1.bf16.xpose.msra.mxu0 %v3095
        %3113 = vmatprep.subr.bf16.mxu0 0
        %3114 = vmatpush2.bf16.xpose.msra.mxu0 0
        %3115 = vmatprep.subr.bf16.mxu0 0
        %3116 = vmatpush2.bf16.xpose.msra.mxu0 0
        %3117 = vmatprep.subr.bf16.mxu0 0
        %3118 = vmatpush2.bf16.xpose.msra.mxu0 0
        %3119 = vmatprep.subr.bf16.mxu0 0
        %3120 = vmatpush2.bf16.xpose.msra.mxu0 0
        %3121 = vmatprep.subr.bf16.mxu0 0
        %3122 = vmatpush2.bf16.xpose.msra.mxu0 0
        %3123 = vmatprep.subr.bf16.mxu0 0
        %3124 = vmatpush2.bf16.xpose.msra.mxu0 0
        %3125 = vmatprep.subr.bf16.mxu0 0
        %3126 = vmatpush2.bf16.xpose.msra.mxu0 0
        %3127 = vmatprep.subr.bf16.mxu0 0
        %3128 = vmatpush2.bf16.xpose.msra.mxu0 0
        %3129 = vmatprep.mubr.bf16.mxu0 0
        %3130 = vmatmul.mubr.bf16.gmra.mxu0 %v3050
        %v3131 = vpop.f32.mrf.mxu0
        %v3132 = vadd.f32 0.0, %v3131
        %v3133 = vpop.f32.mrf.mxu0
        %v3134 = vpop.f32.mrf.mxu0
        %v3135 = vadd.f32 0.0, %v3134
        %v3136 = vpop.f32.mrf.mxu0
        %3137 = vdwg.mxu0
        %v3138 = vpack.i.b16 %v2097, %v2096
        %v3139 = vpack.i.b16 %v2099, %v2098
        %v3140 = vpack.i.b16 %v2101, %v2100
        %v3141 = vpack.i.b16 %v2103, %v2102
        %v3143 = vcombine.low %v3138, %v3139
        %v3144 = vcombine.low %v3140, %v3141
        %v3146 = vunpack.c.l.s4 1966171168
        %v3147 = vunpack.c.0.s8 %v3146
        %v3148 = vlaneseq
        %v3149 = vshrl.u32 %v3148, 7
        %v3150 = vsub.s32 %v3147, %v3149
        %v3151 = vrot.slane %v3143, %v3150
        %v3153 = vunpack.c.l.s4 1966171168
        %v3154 = vunpack.c.0.s8 %v3153
        %v3155 = vlaneseq
        %v3156 = vshrl.u32 %v3155, 7
        %v3157 = vsub.s32 %v3154, %v3156
        %v3158 = vrot.slane %v3144, %v3157
        %v3160 = vunpack.c.l.s4 1966171168
        %v3161 = vunpack.c.0.s8 %v3160
        %v3162 = vlaneseq
        %v3163 = vshrl.u32 %v3162, 7
        %v3164 = vsub.s32 %v3161, %v3163
        %v3165 = vrot.slane %v2104, %v3164
        %v3166 = vcombine.low %v3151, %v3158
        %v3168 = vunpack.c.l.s4 1966171168
        %v3169 = vunpack.c.0.s8 %v3168
        %v3170 = vlaneseq
        %v3171 = vshrl.u32 %v3170, 7
        %v3172 = vsub.s32 %v3169, %v3171
        %v3173 = vrot.slane %v3166, %v3172
        %v3175 = vunpack.c.l.s4 1966171168
        %v3176 = vunpack.c.0.s8 %v3175
        %v3177 = vlaneseq
        %v3178 = vshrl.u32 %v3177, 7
        %v3179 = vsub.s32 %v3176, %v3178
        %v3180 = vrot.slane %v3165, %v3179
        %v3181 = vcombine.low %v3173, %v3180
        %v3183 = vpack.i.b16 %v2539, %v2538
        %v3184 = vpack.i.b16 %v2541, %v2540
        %v3185 = vpack.i.b16 %v2543, %v2542
        %v3186 = vpack.i.b16 %v2545, %v2544
        %v3188 = vcombine.low %v3183, %v3184
        %v3189 = vcombine.low %v3185, %v3186
        %v3191 = vunpack.c.l.s4 1966171168
        %v3192 = vunpack.c.0.s8 %v3191
        %v3193 = vlaneseq
        %v3194 = vshrl.u32 %v3193, 7
        %v3195 = vsub.s32 %v3192, %v3194
        %v3196 = vrot.slane %v3188, %v3195
        %v3198 = vunpack.c.l.s4 1966171168
        %v3199 = vunpack.c.0.s8 %v3198
        %v3200 = vlaneseq
        %v3201 = vshrl.u32 %v3200, 7
        %v3202 = vsub.s32 %v3199, %v3201
        %v3203 = vrot.slane %v3189, %v3202
        %v3205 = vunpack.c.l.s4 1966171168
        %v3206 = vunpack.c.0.s8 %v3205
        %v3207 = vlaneseq
        %v3208 = vshrl.u32 %v3207, 7
        %v3209 = vsub.s32 %v3206, %v3208
        %v3210 = vrot.slane %v2546, %v3209
        %v3211 = vcombine.low %v3196, %v3203
        %v3213 = vunpack.c.l.s4 1966171168
        %v3214 = vunpack.c.0.s8 %v3213
        %v3215 = vlaneseq
        %v3216 = vshrl.u32 %v3215, 7
        %v3217 = vsub.s32 %v3214, %v3216
        %v3218 = vrot.slane %v3211, %v3217
        %v3220 = vunpack.c.l.s4 1966171168
        %v3221 = vunpack.c.0.s8 %v3220
        %v3222 = vlaneseq
        %v3223 = vshrl.u32 %v3222, 7
        %v3224 = vsub.s32 %v3221, %v3223
        %v3225 = vrot.slane %v3210, %v3224
        %v3226 = vcombine.low %v3218, %v3225
        %3228 = vmatprep.subr.bf16.mxu0 0
        %3229 = vmatpush1.bf16.xpose.msra.mxu0 0
        %3230 = vmatprep.subr.bf16.mxu0 0
        %3231 = vmatpush1.bf16.xpose.msra.mxu0 0
        %3232 = vmatprep.subr.bf16.mxu0 0
        %3233 = vmatpush1.bf16.xpose.msra.mxu0 0
        %3234 = vmatprep.subr.bf16.mxu0 0
        %3235 = vmatpush1.bf16.xpose.msra.mxu0 0
        %3236 = vmatprep.subr.bf16.mxu0 0
        %3237 = vmatpush1.bf16.xpose.msra.mxu0 0
        %3238 = vmatprep.subr.bf16.mxu0 0
        %3239 = vmatpush1.bf16.xpose.msra.mxu0 0
        %3240 = vmatprep.subr.bf16.mxu0 0
        %3241 = vmatpush1.bf16.xpose.msra.mxu0 0
        %3242 = vmatprep.subr.bf16.mxu0 0
        %3243 = vmatpush1.bf16.xpose.msra.mxu0 %v3226
        %3244 = vmatprep.subr.bf16.mxu0 0
        %3245 = vmatpush2.bf16.xpose.msra.mxu0 0
        %3246 = vmatprep.subr.bf16.mxu0 0
        %3247 = vmatpush2.bf16.xpose.msra.mxu0 0
        %3248 = vmatprep.subr.bf16.mxu0 0
        %3249 = vmatpush2.bf16.xpose.msra.mxu0 0
        %3250 = vmatprep.subr.bf16.mxu0 0
        %3251 = vmatpush2.bf16.xpose.msra.mxu0 0
        %3252 = vmatprep.subr.bf16.mxu0 0
        %3253 = vmatpush2.bf16.xpose.msra.mxu0 0
        %3254 = vmatprep.subr.bf16.mxu0 0
        %3255 = vmatpush2.bf16.xpose.msra.mxu0 0
        %3256 = vmatprep.subr.bf16.mxu0 0
        %3257 = vmatpush2.bf16.xpose.msra.mxu0 0
        %3258 = vmatprep.subr.bf16.mxu0 0
        %3259 = vmatpush2.bf16.xpose.msra.mxu0 0
        %3260 = vmatprep.mubr.bf16.mxu0 0
        %3261 = vmatmul.mubr.bf16.gmra.mxu0 %v3181
        %v3262 = vpop.f32.mrf.mxu0
        %v3263 = vadd.f32 0.0, %v3262
        %v3264 = vpop.f32.mrf.mxu0
        %v3265 = vpop.f32.mrf.mxu0
        %v3266 = vadd.f32 0.0, %v3265
        %v3267 = vpop.f32.mrf.mxu0
        %3268 = vdwg.mxu0
        %v3269 = vpack.i.b16 %v2106, %v2105
        %v3270 = vpack.i.b16 %v2108, %v2107
        %v3271 = vpack.i.b16 %v2110, %v2109
        %v3272 = vpack.i.b16 %v2112, %v2111
        %v3274 = vcombine.low %v3269, %v3270
        %v3275 = vcombine.low %v3271, %v3272
        %v3277 = vunpack.c.l.s4 1966171168
        %v3278 = vunpack.c.0.s8 %v3277
        %v3279 = vlaneseq
        %v3280 = vshrl.u32 %v3279, 7
        %v3281 = vsub.s32 %v3278, %v3280
        %v3282 = vrot.slane %v3274, %v3281
        %v3284 = vunpack.c.l.s4 1966171168
        %v3285 = vunpack.c.0.s8 %v3284
        %v3286 = vlaneseq
        %v3287 = vshrl.u32 %v3286, 7
        %v3288 = vsub.s32 %v3285, %v3287
        %v3289 = vrot.slane %v3275, %v3288
        %v3291 = vunpack.c.l.s4 1966171168
        %v3292 = vunpack.c.0.s8 %v3291
        %v3293 = vlaneseq
        %v3294 = vshrl.u32 %v3293, 7
        %v3295 = vsub.s32 %v3292, %v3294
        %v3296 = vrot.slane %v2113, %v3295
        %v3297 = vcombine.low %v3282, %v3289
        %v3299 = vunpack.c.l.s4 1966171168
        %v3300 = vunpack.c.0.s8 %v3299
        %v3301 = vlaneseq
        %v3302 = vshrl.u32 %v3301, 7
        %v3303 = vsub.s32 %v3300, %v3302
        %v3304 = vrot.slane %v3297, %v3303
        %v3306 = vunpack.c.l.s4 1966171168
        %v3307 = vunpack.c.0.s8 %v3306
        %v3308 = vlaneseq
        %v3309 = vshrl.u32 %v3308, 7
        %v3310 = vsub.s32 %v3307, %v3309
        %v3311 = vrot.slane %v3296, %v3310
        %v3312 = vcombine.low %v3304, %v3311
        %v3314 = vpack.i.b16 %v2548, %v2547
        %v3315 = vpack.i.b16 %v2550, %v2549
        %v3316 = vpack.i.b16 %v2552, %v2551
        %v3317 = vpack.i.b16 %v2554, %v2553
        %v3319 = vcombine.low %v3314, %v3315
        %v3320 = vcombine.low %v3316, %v3317
        %v3322 = vunpack.c.l.s4 1966171168
        %v3323 = vunpack.c.0.s8 %v3322
        %v3324 = vlaneseq
        %v3325 = vshrl.u32 %v3324, 7
        %v3326 = vsub.s32 %v3323, %v3325
        %v3327 = vrot.slane %v3319, %v3326
        %v3329 = vunpack.c.l.s4 1966171168
        %v3330 = vunpack.c.0.s8 %v3329
        %v3331 = vlaneseq
        %v3332 = vshrl.u32 %v3331, 7
        %v3333 = vsub.s32 %v3330, %v3332
        %v3334 = vrot.slane %v3320, %v3333
        %v3336 = vunpack.c.l.s4 1966171168
        %v3337 = vunpack.c.0.s8 %v3336
        %v3338 = vlaneseq
        %v3339 = vshrl.u32 %v3338, 7
        %v3340 = vsub.s32 %v3337, %v3339
        %v3341 = vrot.slane %v2555, %v3340
        %v3342 = vcombine.low %v3327, %v3334
        %v3344 = vunpack.c.l.s4 1966171168
        %v3345 = vunpack.c.0.s8 %v3344
        %v3346 = vlaneseq
        %v3347 = vshrl.u32 %v3346, 7
        %v3348 = vsub.s32 %v3345, %v3347
        %v3349 = vrot.slane %v3342, %v3348
        %v3351 = vunpack.c.l.s4 1966171168
        %v3352 = vunpack.c.0.s8 %v3351
        %v3353 = vlaneseq
        %v3354 = vshrl.u32 %v3353, 7
        %v3355 = vsub.s32 %v3352, %v3354
        %v3356 = vrot.slane %v3341, %v3355
        %v3357 = vcombine.low %v3349, %v3356
        %3359 = vmatprep.subr.bf16.mxu0 0
        %3360 = vmatpush1.bf16.xpose.msra.mxu0 0
        %3361 = vmatprep.subr.bf16.mxu0 0
        %3362 = vmatpush1.bf16.xpose.msra.mxu0 0
        %3363 = vmatprep.subr.bf16.mxu0 0
        %3364 = vmatpush1.bf16.xpose.msra.mxu0 0
        %3365 = vmatprep.subr.bf16.mxu0 0
        %3366 = vmatpush1.bf16.xpose.msra.mxu0 0
        %3367 = vmatprep.subr.bf16.mxu0 0
        %3368 = vmatpush1.bf16.xpose.msra.mxu0 0
        %3369 = vmatprep.subr.bf16.mxu0 0
        %3370 = vmatpush1.bf16.xpose.msra.mxu0 0
        %3371 = vmatprep.subr.bf16.mxu0 0
        %3372 = vmatpush1.bf16.xpose.msra.mxu0 0
        %3373 = vmatprep.subr.bf16.mxu0 0
        %3374 = vmatpush1.bf16.xpose.msra.mxu0 %v3357
        %3375 = vmatprep.subr.bf16.mxu0 0
        %3376 = vmatpush2.bf16.xpose.msra.mxu0 0
        %3377 = vmatprep.subr.bf16.mxu0 0
        %3378 = vmatpush2.bf16.xpose.msra.mxu0 0
        %3379 = vmatprep.subr.bf16.mxu0 0
        %3380 = vmatpush2.bf16.xpose.msra.mxu0 0
        %3381 = vmatprep.subr.bf16.mxu0 0
        %3382 = vmatpush2.bf16.xpose.msra.mxu0 0
        %3383 = vmatprep.subr.bf16.mxu0 0
        %3384 = vmatpush2.bf16.xpose.msra.mxu0 0
        %3385 = vmatprep.subr.bf16.mxu0 0
        %3386 = vmatpush2.bf16.xpose.msra.mxu0 0
        %3387 = vmatprep.subr.bf16.mxu0 0
        %3388 = vmatpush2.bf16.xpose.msra.mxu0 0
        %3389 = vmatprep.subr.bf16.mxu0 0
        %3390 = vmatpush2.bf16.xpose.msra.mxu0 0
        %3391 = vmatprep.mubr.bf16.mxu0 0
        %3392 = vmatmul.mubr.bf16.gmra.mxu0 %v3312
        %v3393 = vpop.f32.mrf.mxu0
        %v3394 = vadd.f32 0.0, %v3393
        %v3395 = vpop.f32.mrf.mxu0
        %v3396 = vpop.f32.mrf.mxu0
        %v3397 = vadd.f32 0.0, %v3396
        %v3398 = vpop.f32.mrf.mxu0
        %3399 = vdwg.mxu0
        %v3400 = vpack.i.b16 %v2115, %v2114
        %v3401 = vpack.i.b16 %v2117, %v2116
        %v3402 = vpack.i.b16 %v2119, %v2118
        %v3403 = vpack.i.b16 %v2121, %v2120
        %v3405 = vcombine.low %v3400, %v3401
        %v3406 = vcombine.low %v3402, %v3403
        %v3408 = vunpack.c.l.s4 1966171168
        %v3409 = vunpack.c.0.s8 %v3408
        %v3410 = vlaneseq
        %v3411 = vshrl.u32 %v3410, 7
        %v3412 = vsub.s32 %v3409, %v3411
        %v3413 = vrot.slane %v3405, %v3412
        %v3415 = vunpack.c.l.s4 1966171168
        %v3416 = vunpack.c.0.s8 %v3415
        %v3417 = vlaneseq
        %v3418 = vshrl.u32 %v3417, 7
        %v3419 = vsub.s32 %v3416, %v3418
        %v3420 = vrot.slane %v3406, %v3419
        %v3422 = vunpack.c.l.s4 1966171168
        %v3423 = vunpack.c.0.s8 %v3422
        %v3424 = vlaneseq
        %v3425 = vshrl.u32 %v3424, 7
        %v3426 = vsub.s32 %v3423, %v3425
        %v3427 = vrot.slane %v2122, %v3426
        %v3428 = vcombine.low %v3413, %v3420
        %v3430 = vunpack.c.l.s4 1966171168
        %v3431 = vunpack.c.0.s8 %v3430
        %v3432 = vlaneseq
        %v3433 = vshrl.u32 %v3432, 7
        %v3434 = vsub.s32 %v3431, %v3433
        %v3435 = vrot.slane %v3428, %v3434
        %v3437 = vunpack.c.l.s4 1966171168
        %v3438 = vunpack.c.0.s8 %v3437
        %v3439 = vlaneseq
        %v3440 = vshrl.u32 %v3439, 7
        %v3441 = vsub.s32 %v3438, %v3440
        %v3442 = vrot.slane %v3427, %v3441
        %v3443 = vcombine.low %v3435, %v3442
        %v3445 = vpack.i.b16 %v2557, %v2556
        %v3446 = vpack.i.b16 %v2559, %v2558
        %v3447 = vpack.i.b16 %v2561, %v2560
        %v3448 = vpack.i.b16 %v2563, %v2562
        %v3450 = vcombine.low %v3445, %v3446
        %v3451 = vcombine.low %v3447, %v3448
        %v3453 = vunpack.c.l.s4 1966171168
        %v3454 = vunpack.c.0.s8 %v3453
        %v3455 = vlaneseq
        %v3456 = vshrl.u32 %v3455, 7
        %v3457 = vsub.s32 %v3454, %v3456
        %v3458 = vrot.slane %v3450, %v3457
        %v3460 = vunpack.c.l.s4 1966171168
        %v3461 = vunpack.c.0.s8 %v3460
        %v3462 = vlaneseq
        %v3463 = vshrl.u32 %v3462, 7
        %v3464 = vsub.s32 %v3461, %v3463
        %v3465 = vrot.slane %v3451, %v3464
        %v3467 = vunpack.c.l.s4 1966171168
        %v3468 = vunpack.c.0.s8 %v3467
        %v3469 = vlaneseq
        %v3470 = vshrl.u32 %v3469, 7
        %v3471 = vsub.s32 %v3468, %v3470
        %v3472 = vrot.slane %v2564, %v3471
        %v3473 = vcombine.low %v3458, %v3465
        %v3475 = vunpack.c.l.s4 1966171168
        %v3476 = vunpack.c.0.s8 %v3475
        %v3477 = vlaneseq
        %v3478 = vshrl.u32 %v3477, 7
        %v3479 = vsub.s32 %v3476, %v3478
        %v3480 = vrot.slane %v3473, %v3479
        %v3482 = vunpack.c.l.s4 1966171168
        %v3483 = vunpack.c.0.s8 %v3482
        %v3484 = vlaneseq
        %v3485 = vshrl.u32 %v3484, 7
        %v3486 = vsub.s32 %v3483, %v3485
        %v3487 = vrot.slane %v3472, %v3486
        %v3488 = vcombine.low %v3480, %v3487
        %3490 = vmatprep.subr.bf16.mxu0 0
        %3491 = vmatpush1.bf16.xpose.msra.mxu0 0
        %3492 = vmatprep.subr.bf16.mxu0 0
        %3493 = vmatpush1.bf16.xpose.msra.mxu0 0
        %3494 = vmatprep.subr.bf16.mxu0 0
        %3495 = vmatpush1.bf16.xpose.msra.mxu0 0
        %3496 = vmatprep.subr.bf16.mxu0 0
        %3497 = vmatpush1.bf16.xpose.msra.mxu0 0
        %3498 = vmatprep.subr.bf16.mxu0 0
        %3499 = vmatpush1.bf16.xpose.msra.mxu0 0
        %3500 = vmatprep.subr.bf16.mxu0 0
        %3501 = vmatpush1.bf16.xpose.msra.mxu0 0
        %3502 = vmatprep.subr.bf16.mxu0 0
        %3503 = vmatpush1.bf16.xpose.msra.mxu0 0
        %3504 = vmatprep.subr.bf16.mxu0 0
        %3505 = vmatpush1.bf16.xpose.msra.mxu0 %v3488
        %3506 = vmatprep.subr.bf16.mxu0 0
        %3507 = vmatpush2.bf16.xpose.msra.mxu0 0
        %3508 = vmatprep.subr.bf16.mxu0 0
        %3509 = vmatpush2.bf16.xpose.msra.mxu0 0
        %3510 = vmatprep.subr.bf16.mxu0 0
        %3511 = vmatpush2.bf16.xpose.msra.mxu0 0
        %3512 = vmatprep.subr.bf16.mxu0 0
        %3513 = vmatpush2.bf16.xpose.msra.mxu0 0
        %3514 = vmatprep.subr.bf16.mxu0 0
        %3515 = vmatpush2.bf16.xpose.msra.mxu0 0
        %3516 = vmatprep.subr.bf16.mxu0 0
        %3517 = vmatpush2.bf16.xpose.msra.mxu0 0
        %3518 = vmatprep.subr.bf16.mxu0 0
        %3519 = vmatpush2.bf16.xpose.msra.mxu0 0
        %3520 = vmatprep.subr.bf16.mxu0 0
        %3521 = vmatpush2.bf16.xpose.msra.mxu0 0
        %3522 = vmatprep.mubr.bf16.mxu0 0
        %3523 = vmatmul.mubr.bf16.gmra.mxu0 %v3443
        %v3524 = vpop.f32.mrf.mxu0
        %v3525 = vadd.f32 0.0, %v3524
        %v3526 = vpop.f32.mrf.mxu0
        %v3527 = vpop.f32.mrf.mxu0
        %v3528 = vadd.f32 0.0, %v3527
        %v3529 = vpop.f32.mrf.mxu0
        %3530 = vdwg.mxu0
        %vm3531 = vcmask 72704
        %v3532 = vsel %vm3531, %v3132, -inf
        %3533 = vmax.xlane.f32.xlu0 %v3532
        %v3534 = vpop.xlane.xlu0 %3533
        %vm3535 = vcmask 65536
        %v3536 = vsel %vm3535, %v3135, -inf
        %3537 = vmax.xlane.f32.xlu0 %v3536
        %v3538 = vpop.xlane.xlu0 %3537
        %v3539 = vsel %vm3531, %v3263, -inf
        %3540 = vmax.xlane.f32.xlu0 %v3539
        %v3541 = vpop.xlane.xlu0 %3540
        %v3542 = vsel %vm3535, %v3266, -inf
        %3543 = vmax.xlane.f32.xlu0 %v3542
        %v3544 = vpop.xlane.xlu0 %3543
        %v3545 = vsel %vm3531, %v3394, -inf
        %3546 = vmax.xlane.f32.xlu0 %v3545
        %v3547 = vpop.xlane.xlu0 %3546
        %v3548 = vsel %vm3535, %v3397, -inf
        %3549 = vmax.xlane.f32.xlu0 %v3548
        %v3550 = vpop.xlane.xlu0 %3549
        %v3551 = vsel %vm3531, %v3525, -inf
        %3552 = vmax.xlane.f32.xlu0 %v3551
        %v3553 = vpop.xlane.xlu0 %3552
        %v3554 = vsel %vm3535, %v3528, -inf
        %3555 = vmax.xlane.f32.xlu0 %v3554
        %v3556 = vpop.xlane.xlu0 %3555
        %v3557 = vsub.f32 %v3132, %v3534
        %v3558 = vsub.f32 %v3135, %v3538
        %v3559 = vsub.f32 %v3263, %v3541
        %v3560 = vsub.f32 %v3266, %v3544
        %v3561 = vsub.f32 %v3394, %v3547
        %v3562 = vsub.f32 %v3397, %v3550
        %v3563 = vsub.f32 %v3525, %v3553
        %v3564 = vsub.f32 %v3528, %v3556
        %v3565 = vmul.f32 %v3557, 1.442695
        %v3566 = vpow.pop %v3565
        %v3567 = vmul.f32 %v3558, 1.442695
        %v3568 = vpow.pop %v3567
        %v3569 = vmul.f32 %v3559, 1.442695
        %v3570 = vpow.pop %v3569
        %v3571 = vmul.f32 %v3560, 1.442695
        %v3572 = vpow.pop %v3571
        %v3573 = vmul.f32 %v3561, 1.442695
        %v3574 = vpow.pop %v3573
        %v3575 = vmul.f32 %v3562, 1.442695
        %v3576 = vpow.pop %v3575
        %v3577 = vmul.f32 %v3563, 1.442695
        %v3578 = vpow.pop %v3577
        %v3579 = vmul.f32 %v3564, 1.442695
        %v3580 = vpow.pop %v3579
        %v3581 = vsel %vm3531, %v3566, 0.0
        %3582 = vadd.xlane.f32.xlu0 %v3581
        %v3583 = vpop.xlane.xlu0 %3582
        %v3584 = vsel %vm3535, %v3568, 0.0
        %3585 = vadd.xlane.f32.xlu0 %v3584
        %v3586 = vpop.xlane.xlu0 %3585
        %v3587 = vsel %vm3531, %v3570, 0.0
        %3588 = vadd.xlane.f32.xlu0 %v3587
        %v3589 = vpop.xlane.xlu0 %3588
        %v3590 = vsel %vm3535, %v3572, 0.0
        %3591 = vadd.xlane.f32.xlu0 %v3590
        %v3592 = vpop.xlane.xlu0 %3591
        %v3593 = vsel %vm3531, %v3574, 0.0
        %3594 = vadd.xlane.f32.xlu0 %v3593
        %v3595 = vpop.xlane.xlu0 %3594
        %v3596 = vsel %vm3535, %v3576, 0.0
        %3597 = vadd.xlane.f32.xlu0 %v3596
        %v3598 = vpop.xlane.xlu0 %3597
        %v3599 = vsel %vm3531, %v3578, 0.0
        %3600 = vadd.xlane.f32.xlu0 %v3599
        %v3601 = vpop.xlane.xlu0 %3600
        %v3602 = vsel %vm3535, %v3580, 0.0
        %3603 = vadd.xlane.f32.xlu0 %v3602
        %v3604 = vpop.xlane.xlu0 %3603
        %v3605 = vrcp.pop %v3583
        %v3606 = vrcp.pop %v3586
        %v3607 = vrcp.pop %v3589
        %v3608 = vrcp.pop %v3592
        %v3609 = vrcp.pop %v3595
        %v3610 = vrcp.pop %v3598
        %v3611 = vrcp.pop %v3601
        %v3612 = vrcp.pop %v3604
        %v3613 = vmul.f32 %v3566, %v3605
        %v3614 = vmul.f32 %v3568, %v3606
        %v3615 = vmul.f32 %v3570, %v3607
        %v3616 = vmul.f32 %v3572, %v3608
        %v3617 = vmul.f32 %v3574, %v3609
        %v3618 = vmul.f32 %v3576, %v3610
        %v3619 = vmul.f32 %v3578, %v3611
        %v3620 = vmul.f32 %v3580, %v3612
        %v3621 = vpack.c.bf16 %v3614, %v3613
        %v3622 = vpack.c.bf16 %v3616, %v3615
        %v3623 = vpack.c.bf16 %v3618, %v3617
        %v3624 = vpack.c.bf16 %v3620, %v3619
        %v3625 = vpack.i.b16 %v2972, %v2971
        %v3626 = vpack.i.b16 %v2974, %v2973
        %v3627 = vpack.i.b16 %v2976, %v2975
        %v3628 = vpack.i.b16 %v2978, %v2977
        %v3630 = vcombine.low %v3625, %v3626
        %v3631 = vcombine.low %v3627, %v3628
        %v3633 = vunpack.c.l.s4 1966171168
        %v3634 = vunpack.c.0.s8 %v3633
        %v3635 = vlaneseq
        %v3636 = vshrl.u32 %v3635, 7
        %v3637 = vsub.s32 %v3634, %v3636
        %v3638 = vrot.slane %v3630, %v3637
        %v3640 = vunpack.c.l.s4 1966171168
        %v3641 = vunpack.c.0.s8 %v3640
        %v3642 = vlaneseq
        %v3643 = vshrl.u32 %v3642, 7
        %v3644 = vsub.s32 %v3641, %v3643
        %v3645 = vrot.slane %v3631, %v3644
        %v3647 = vunpack.c.l.s4 1966171168
        %v3648 = vunpack.c.0.s8 %v3647
        %v3649 = vlaneseq
        %v3650 = vshrl.u32 %v3649, 7
        %v3651 = vsub.s32 %v3648, %v3650
        %v3652 = vrot.slane %v2979, %v3651
        %v3653 = vcombine.low %v3638, %v3645
        %v3655 = vunpack.c.l.s4 1966171168
        %v3656 = vunpack.c.0.s8 %v3655
        %v3657 = vlaneseq
        %v3658 = vshrl.u32 %v3657, 7
        %v3659 = vsub.s32 %v3656, %v3658
        %v3660 = vrot.slane %v3653, %v3659
        %v3662 = vunpack.c.l.s4 1966171168
        %v3663 = vunpack.c.0.s8 %v3662
        %v3664 = vlaneseq
        %v3665 = vshrl.u32 %v3664, 7
        %v3666 = vsub.s32 %v3663, %v3665
        %v3667 = vrot.slane %v3652, %v3666
        %v3668 = vcombine.low %v3660, %v3667
        %v3670 = vsel %vm3531, %v3621, 0
        %vm3672 = vcmask 1043456
        %vm3673 = vcmask 1044480
        %v3674 = vsel %vm3672, 4294967295, 65535
        %v3675 = vsel %vm3673, %v3674, 0
        %v3677 = vand.u32 %v3668, %v3675
        %3679 = vmatprep.subr.bf16.mxu0 0
        %3680 = vmatpush1.bf16.msra.mxu0 0
        %3681 = vmatprep.subr.bf16.mxu0 0
        %3682 = vmatpush1.bf16.msra.mxu0 0
        %3683 = vmatprep.subr.bf16.mxu0 0
        %3684 = vmatpush1.bf16.msra.mxu0 0
        %3685 = vmatprep.subr.bf16.mxu0 0
        %3686 = vmatpush1.bf16.msra.mxu0 0
        %3687 = vmatprep.subr.bf16.mxu0 0
        %3688 = vmatpush1.bf16.msra.mxu0 0
        %3689 = vmatprep.subr.bf16.mxu0 0
        %3690 = vmatpush1.bf16.msra.mxu0 0
        %3691 = vmatprep.subr.bf16.mxu0 0
        %3692 = vmatpush1.bf16.msra.mxu0 0
        %3693 = vmatprep.subr.bf16.mxu0 0
        %3694 = vmatpush1.bf16.msra.mxu0 %v3677
        %3695 = vmatprep.subr.bf16.mxu0 0
        %3696 = vmatpush2.bf16.msra.mxu0 0
        %3697 = vmatprep.subr.bf16.mxu0 0
        %3698 = vmatpush2.bf16.msra.mxu0 0
        %3699 = vmatprep.subr.bf16.mxu0 0
        %3700 = vmatpush2.bf16.msra.mxu0 0
        %3701 = vmatprep.subr.bf16.mxu0 0
        %3702 = vmatpush2.bf16.msra.mxu0 0
        %3703 = vmatprep.subr.bf16.mxu0 0
        %3704 = vmatpush2.bf16.msra.mxu0 0
        %3705 = vmatprep.subr.bf16.mxu0 0
        %3706 = vmatpush2.bf16.msra.mxu0 0
        %3707 = vmatprep.subr.bf16.mxu0 0
        %3708 = vmatpush2.bf16.msra.mxu0 0
        %3709 = vmatprep.subr.bf16.mxu0 0
        %3710 = vmatpush2.bf16.msra.mxu0 0
        %3711 = vmatprep.mubr.bf16.mxu0 0
        %3712 = vmatmul.mubr.bf16.gmra.mxu0 %v3670
        %v3713 = vpop.f32.mrf.mxu0
        %v3714 = vadd.f32 0.0, %v3713
        %v3715 = vpop.f32.mrf.mxu0
        %v3716 = vpop.f32.mrf.mxu0
        %v3717 = vadd.f32 0.0, %v3716
        %v3718 = vpop.f32.mrf.mxu0
        %3719 = vdwg.mxu0
        %v3720 = vpack.i.b16 %v2981, %v2980
        %v3721 = vpack.i.b16 %v2983, %v2982
        %v3722 = vpack.i.b16 %v2985, %v2984
        %v3723 = vpack.i.b16 %v2987, %v2986
        %v3725 = vcombine.low %v3720, %v3721
        %v3726 = vcombine.low %v3722, %v3723
        %v3728 = vunpack.c.l.s4 1966171168
        %v3729 = vunpack.c.0.s8 %v3728
        %v3730 = vlaneseq
        %v3731 = vshrl.u32 %v3730, 7
        %v3732 = vsub.s32 %v3729, %v3731
        %v3733 = vrot.slane %v3725, %v3732
        %v3735 = vunpack.c.l.s4 1966171168
        %v3736 = vunpack.c.0.s8 %v3735
        %v3737 = vlaneseq
        %v3738 = vshrl.u32 %v3737, 7
        %v3739 = vsub.s32 %v3736, %v3738
        %v3740 = vrot.slane %v3726, %v3739
        %v3742 = vunpack.c.l.s4 1966171168
        %v3743 = vunpack.c.0.s8 %v3742
        %v3744 = vlaneseq
        %v3745 = vshrl.u32 %v3744, 7
        %v3746 = vsub.s32 %v3743, %v3745
        %v3747 = vrot.slane %v2988, %v3746
        %v3748 = vcombine.low %v3733, %v3740
        %v3750 = vunpack.c.l.s4 1966171168
        %v3751 = vunpack.c.0.s8 %v3750
        %v3752 = vlaneseq
        %v3753 = vshrl.u32 %v3752, 7
        %v3754 = vsub.s32 %v3751, %v3753
        %v3755 = vrot.slane %v3748, %v3754
        %v3757 = vunpack.c.l.s4 1966171168
        %v3758 = vunpack.c.0.s8 %v3757
        %v3759 = vlaneseq
        %v3760 = vshrl.u32 %v3759, 7
        %v3761 = vsub.s32 %v3758, %v3760
        %v3762 = vrot.slane %v3747, %v3761
        %v3763 = vcombine.low %v3755, %v3762
        %v3765 = vsel %vm3531, %v3622, 0
        %v3768 = vand.u32 %v3763, %v3675
        %3770 = vmatprep.subr.bf16.mxu0 0
        %3771 = vmatpush1.bf16.msra.mxu0 0
        %3772 = vmatprep.subr.bf16.mxu0 0
        %3773 = vmatpush1.bf16.msra.mxu0 0
        %3774 = vmatprep.subr.bf16.mxu0 0
        %3775 = vmatpush1.bf16.msra.mxu0 0
        %3776 = vmatprep.subr.bf16.mxu0 0
        %3777 = vmatpush1.bf16.msra.mxu0 0
        %3778 = vmatprep.subr.bf16.mxu0 0
        %3779 = vmatpush1.bf16.msra.mxu0 0
        %3780 = vmatprep.subr.bf16.mxu0 0
        %3781 = vmatpush1.bf16.msra.mxu0 0
        %3782 = vmatprep.subr.bf16.mxu0 0
        %3783 = vmatpush1.bf16.msra.mxu0 0
        %3784 = vmatprep.subr.bf16.mxu0 0
        %3785 = vmatpush1.bf16.msra.mxu0 %v3768
        %3786 = vmatprep.subr.bf16.mxu0 0
        %3787 = vmatpush2.bf16.msra.mxu0 0
        %3788 = vmatprep.subr.bf16.mxu0 0
        %3789 = vmatpush2.bf16.msra.mxu0 0
        %3790 = vmatprep.subr.bf16.mxu0 0
        %3791 = vmatpush2.bf16.msra.mxu0 0
        %3792 = vmatprep.subr.bf16.mxu0 0
        %3793 = vmatpush2.bf16.msra.mxu0 0
        %3794 = vmatprep.subr.bf16.mxu0 0
        %3795 = vmatpush2.bf16.msra.mxu0 0
        %3796 = vmatprep.subr.bf16.mxu0 0
        %3797 = vmatpush2.bf16.msra.mxu0 0
        %3798 = vmatprep.subr.bf16.mxu0 0
        %3799 = vmatpush2.bf16.msra.mxu0 0
        %3800 = vmatprep.subr.bf16.mxu0 0
        %3801 = vmatpush2.bf16.msra.mxu0 0
        %3802 = vmatprep.mubr.bf16.mxu0 0
        %3803 = vmatmul.mubr.bf16.gmra.mxu0 %v3765
        %v3804 = vpop.f32.mrf.mxu0
        %v3805 = vadd.f32 0.0, %v3804
        %v3806 = vpop.f32.mrf.mxu0
        %v3807 = vpop.f32.mrf.mxu0
        %v3808 = vadd.f32 0.0, %v3807
        %v3809 = vpop.f32.mrf.mxu0
        %3810 = vdwg.mxu0
        %v3811 = vpack.i.b16 %v2990, %v2989
        %v3812 = vpack.i.b16 %v2992, %v2991
        %v3813 = vpack.i.b16 %v2994, %v2993
        %v3814 = vpack.i.b16 %v2996, %v2995
        %v3816 = vcombine.low %v3811, %v3812
        %v3817 = vcombine.low %v3813, %v3814
        %v3819 = vunpack.c.l.s4 1966171168
        %v3820 = vunpack.c.0.s8 %v3819
        %v3821 = vlaneseq
        %v3822 = vshrl.u32 %v3821, 7
        %v3823 = vsub.s32 %v3820, %v3822
        %v3824 = vrot.slane %v3816, %v3823
        %v3826 = vunpack.c.l.s4 1966171168
        %v3827 = vunpack.c.0.s8 %v3826
        %v3828 = vlaneseq
        %v3829 = vshrl.u32 %v3828, 7
        %v3830 = vsub.s32 %v3827, %v3829
        %v3831 = vrot.slane %v3817, %v3830
        %v3833 = vunpack.c.l.s4 1966171168
        %v3834 = vunpack.c.0.s8 %v3833
        %v3835 = vlaneseq
        %v3836 = vshrl.u32 %v3835, 7
        %v3837 = vsub.s32 %v3834, %v3836
        %v3838 = vrot.slane %v2997, %v3837
        %v3839 = vcombine.low %v3824, %v3831
        %v3841 = vunpack.c.l.s4 1966171168
        %v3842 = vunpack.c.0.s8 %v3841
        %v3843 = vlaneseq
        %v3844 = vshrl.u32 %v3843, 7
        %v3845 = vsub.s32 %v3842, %v3844
        %v3846 = vrot.slane %v3839, %v3845
        %v3848 = vunpack.c.l.s4 1966171168
        %v3849 = vunpack.c.0.s8 %v3848
        %v3850 = vlaneseq
        %v3851 = vshrl.u32 %v3850, 7
        %v3852 = vsub.s32 %v3849, %v3851
        %v3853 = vrot.slane %v3838, %v3852
        %v3854 = vcombine.low %v3846, %v3853
        %v3856 = vsel %vm3531, %v3623, 0
        %v3859 = vand.u32 %v3854, %v3675
        %3861 = vmatprep.subr.bf16.mxu0 0
        %3862 = vmatpush1.bf16.msra.mxu0 0
        %3863 = vmatprep.subr.bf16.mxu0 0
        %3864 = vmatpush1.bf16.msra.mxu0 0
        %3865 = vmatprep.subr.bf16.mxu0 0
        %3866 = vmatpush1.bf16.msra.mxu0 0
        %3867 = vmatprep.subr.bf16.mxu0 0
        %3868 = vmatpush1.bf16.msra.mxu0 0
        %3869 = vmatprep.subr.bf16.mxu0 0
        %3870 = vmatpush1.bf16.msra.mxu0 0
        %3871 = vmatprep.subr.bf16.mxu0 0
        %3872 = vmatpush1.bf16.msra.mxu0 0
        %3873 = vmatprep.subr.bf16.mxu0 0
        %3874 = vmatpush1.bf16.msra.mxu0 0
        %3875 = vmatprep.subr.bf16.mxu0 0
        %3876 = vmatpush1.bf16.msra.mxu0 %v3859
        %3877 = vmatprep.subr.bf16.mxu0 0
        %3878 = vmatpush2.bf16.msra.mxu0 0
        %3879 = vmatprep.subr.bf16.mxu0 0
        %3880 = vmatpush2.bf16.msra.mxu0 0
        %3881 = vmatprep.subr.bf16.mxu0 0
        %3882 = vmatpush2.bf16.msra.mxu0 0
        %3883 = vmatprep.subr.bf16.mxu0 0
        %3884 = vmatpush2.bf16.msra.mxu0 0
        %3885 = vmatprep.subr.bf16.mxu0 0
        %3886 = vmatpush2.bf16.msra.mxu0 0
        %3887 = vmatprep.subr.bf16.mxu0 0
        %3888 = vmatpush2.bf16.msra.mxu0 0
        %3889 = vmatprep.subr.bf16.mxu0 0
        %3890 = vmatpush2.bf16.msra.mxu0 0
        %3891 = vmatprep.subr.bf16.mxu0 0
        %3892 = vmatpush2.bf16.msra.mxu0 0
        %3893 = vmatprep.mubr.bf16.mxu0 0
        %3894 = vmatmul.mubr.bf16.gmra.mxu0 %v3856
        %v3895 = vpop.f32.mrf.mxu0
        %v3896 = vadd.f32 0.0, %v3895
        %v3897 = vpop.f32.mrf.mxu0
        %v3898 = vpop.f32.mrf.mxu0
        %v3899 = vadd.f32 0.0, %v3898
        %v3900 = vpop.f32.mrf.mxu0
        %3901 = vdwg.mxu0
        %v3902 = vpack.i.b16 %v2999, %v2998
        %v3903 = vpack.i.b16 %v3001, %v3000
        %v3904 = vpack.i.b16 %v3003, %v3002
        %v3905 = vpack.i.b16 %v3005, %v3004
        %v3907 = vcombine.low %v3902, %v3903
        %v3908 = vcombine.low %v3904, %v3905
        %v3910 = vunpack.c.l.s4 1966171168
        %v3911 = vunpack.c.0.s8 %v3910
        %v3912 = vlaneseq
        %v3913 = vshrl.u32 %v3912, 7
        %v3914 = vsub.s32 %v3911, %v3913
        %v3915 = vrot.slane %v3907, %v3914
        %v3917 = vunpack.c.l.s4 1966171168
        %v3918 = vunpack.c.0.s8 %v3917
        %v3919 = vlaneseq
        %v3920 = vshrl.u32 %v3919, 7
        %v3921 = vsub.s32 %v3918, %v3920
        %v3922 = vrot.slane %v3908, %v3921
        %v3924 = vunpack.c.l.s4 1966171168
        %v3925 = vunpack.c.0.s8 %v3924
        %v3926 = vlaneseq
        %v3927 = vshrl.u32 %v3926, 7
        %v3928 = vsub.s32 %v3925, %v3927
        %v3929 = vrot.slane %v3006, %v3928
        %v3930 = vcombine.low %v3915, %v3922
        %v3932 = vunpack.c.l.s4 1966171168
        %v3933 = vunpack.c.0.s8 %v3932
        %v3934 = vlaneseq
        %v3935 = vshrl.u32 %v3934, 7
        %v3936 = vsub.s32 %v3933, %v3935
        %v3937 = vrot.slane %v3930, %v3936
        %v3939 = vunpack.c.l.s4 1966171168
        %v3940 = vunpack.c.0.s8 %v3939
        %v3941 = vlaneseq
        %v3942 = vshrl.u32 %v3941, 7
        %v3943 = vsub.s32 %v3940, %v3942
        %v3944 = vrot.slane %v3929, %v3943
        %v3945 = vcombine.low %v3937, %v3944
        %v3947 = vsel %vm3531, %v3624, 0
        %v3950 = vand.u32 %v3945, %v3675
        %3952 = vmatprep.subr.bf16.mxu0 0
        %3953 = vmatpush1.bf16.msra.mxu0 0
        %3954 = vmatprep.subr.bf16.mxu0 0
        %3955 = vmatpush1.bf16.msra.mxu0 0
        %3956 = vmatprep.subr.bf16.mxu0 0
        %3957 = vmatpush1.bf16.msra.mxu0 0
        %3958 = vmatprep.subr.bf16.mxu0 0
        %3959 = vmatpush1.bf16.msra.mxu0 0
        %3960 = vmatprep.subr.bf16.mxu0 0
        %3961 = vmatpush1.bf16.msra.mxu0 0
        %3962 = vmatprep.subr.bf16.mxu0 0
        %3963 = vmatpush1.bf16.msra.mxu0 0
        %3964 = vmatprep.subr.bf16.mxu0 0
        %3965 = vmatpush1.bf16.msra.mxu0 0
        %3966 = vmatprep.subr.bf16.mxu0 0
        %3967 = vmatpush1.bf16.msra.mxu0 %v3950
        %3968 = vmatprep.subr.bf16.mxu0 0
        %3969 = vmatpush2.bf16.msra.mxu0 0
        %3970 = vmatprep.subr.bf16.mxu0 0
        %3971 = vmatpush2.bf16.msra.mxu0 0
        %3972 = vmatprep.subr.bf16.mxu0 0
        %3973 = vmatpush2.bf16.msra.mxu0 0
        %3974 = vmatprep.subr.bf16.mxu0 0
        %3975 = vmatpush2.bf16.msra.mxu0 0
        %3976 = vmatprep.subr.bf16.mxu0 0
        %3977 = vmatpush2.bf16.msra.mxu0 0
        %3978 = vmatprep.subr.bf16.mxu0 0
        %3979 = vmatpush2.bf16.msra.mxu0 0
        %3980 = vmatprep.subr.bf16.mxu0 0
        %3981 = vmatpush2.bf16.msra.mxu0 0
        %3982 = vmatprep.subr.bf16.mxu0 0
        %3983 = vmatpush2.bf16.msra.mxu0 0
        %3984 = vmatprep.mubr.bf16.mxu0 0
        %3985 = vmatmul.mubr.bf16.gmra.mxu0 %v3947
        %v3986 = vpop.f32.mrf.mxu0
        %v3987 = vadd.f32 0.0, %v3986
        %v3988 = vpop.f32.mrf.mxu0
        %v3989 = vpop.f32.mrf.mxu0
        %v3990 = vadd.f32 0.0, %v3989
        %v3991 = vpop.f32.mrf.mxu0
        %3992 = vdwg.mxu0
        %v3993 = vpack.c.bf16 %v3717, %v3714
        %v3994 = vpack.c.bf16 %v3808, %v3805
        %v3995 = vpack.c.bf16 %v3899, %v3896
        %v3996 = vpack.c.bf16 %v3990, %v3987
        %v4001 = vcombine.high %v3993, %v3993
        %v4003 = vunpack.c.l.s4 1966171168
        %v4004 = vunpack.c.0.s8 %v4003
        %v4005 = vlaneseq
        %v4006 = vshrl.u32 %v4005, 7
        %v4007 = vsub.s32 %v4004, %v4006
        %v4008 = vrot.slane %v3993, %v4007
        %v4010 = vunpack.c.l.s4 1966171168
        %v4011 = vunpack.c.0.s8 %v4010
        %v4012 = vlaneseq
        %v4013 = vshrl.u32 %v4012, 7
        %v4014 = vsub.s32 %v4011, %v4013
        %v4015 = vrot.slane %v4001, %v4014
        %v4016 = vcombine.high %v4008, %v4008
        %v4018 = vunpack.c.l.s4 1966171168
        %v4019 = vunpack.c.0.s8 %v4018
        %v4020 = vlaneseq
        %v4021 = vshrl.u32 %v4020, 7
        %v4022 = vsub.s32 %v4019, %v4021
        %v4023 = vrot.slane %v4008, %v4022
        %v4025 = vunpack.c.l.s4 1966171168
        %v4026 = vunpack.c.0.s8 %v4025
        %v4027 = vlaneseq
        %v4028 = vshrl.u32 %v4027, 7
        %v4029 = vsub.s32 %v4026, %v4028
        %v4030 = vrot.slane %v4015, %v4029
        %v4032 = vunpack.c.l.s4 1966171168
        %v4033 = vunpack.c.0.s8 %v4032
        %v4034 = vlaneseq
        %v4035 = vshrl.u32 %v4034, 7
        %v4036 = vsub.s32 %v4033, %v4035
        %v4037 = vrot.slane %v4016, %v4036
        %v4038 = vcombine.high %v4023, %v4023
        %v4039 = vcombine.high %v4037, %v4037
        %v4040 = vcombine.high %v3994, %v3994
        %v4042 = vunpack.c.l.s4 1966171168
        %v4043 = vunpack.c.0.s8 %v4042
        %v4044 = vlaneseq
        %v4045 = vshrl.u32 %v4044, 7
        %v4046 = vsub.s32 %v4043, %v4045
        %v4047 = vrot.slane %v3994, %v4046
        %v4049 = vunpack.c.l.s4 1966171168
        %v4050 = vunpack.c.0.s8 %v4049
        %v4051 = vlaneseq
        %v4052 = vshrl.u32 %v4051, 7
        %v4053 = vsub.s32 %v4050, %v4052
        %v4054 = vrot.slane %v4040, %v4053
        %v4055 = vcombine.high %v4047, %v4047
        %v4057 = vunpack.c.l.s4 1966171168
        %v4058 = vunpack.c.0.s8 %v4057
        %v4059 = vlaneseq
        %v4060 = vshrl.u32 %v4059, 7
        %v4061 = vsub.s32 %v4058, %v4060
        %v4062 = vrot.slane %v4047, %v4061
        %v4064 = vunpack.c.l.s4 1966171168
        %v4065 = vunpack.c.0.s8 %v4064
        %v4066 = vlaneseq
        %v4067 = vshrl.u32 %v4066, 7
        %v4068 = vsub.s32 %v4065, %v4067
        %v4069 = vrot.slane %v4054, %v4068
        %v4071 = vunpack.c.l.s4 1966171168
        %v4072 = vunpack.c.0.s8 %v4071
        %v4073 = vlaneseq
        %v4074 = vshrl.u32 %v4073, 7
        %v4075 = vsub.s32 %v4072, %v4074
        %v4076 = vrot.slane %v4055, %v4075
        %v4077 = vcombine.high %v4062, %v4062
        %v4078 = vcombine.high %v4076, %v4076
        %v4079 = vcombine.high %v3995, %v3995
        %v4081 = vunpack.c.l.s4 1966171168
        %v4082 = vunpack.c.0.s8 %v4081
        %v4083 = vlaneseq
        %v4084 = vshrl.u32 %v4083, 7
        %v4085 = vsub.s32 %v4082, %v4084
        %v4086 = vrot.slane %v3995, %v4085
        %v4088 = vunpack.c.l.s4 1966171168
        %v4089 = vunpack.c.0.s8 %v4088
        %v4090 = vlaneseq
        %v4091 = vshrl.u32 %v4090, 7
        %v4092 = vsub.s32 %v4089, %v4091
        %v4093 = vrot.slane %v4079, %v4092
        %v4094 = vcombine.high %v4086, %v4086
        %v4096 = vunpack.c.l.s4 1966171168
        %v4097 = vunpack.c.0.s8 %v4096
        %v4098 = vlaneseq
        %v4099 = vshrl.u32 %v4098, 7
        %v4100 = vsub.s32 %v4097, %v4099
        %v4101 = vrot.slane %v4086, %v4100
        %v4103 = vunpack.c.l.s4 1966171168
        %v4104 = vunpack.c.0.s8 %v4103
        %v4105 = vlaneseq
        %v4106 = vshrl.u32 %v4105, 7
        %v4107 = vsub.s32 %v4104, %v4106
        %v4108 = vrot.slane %v4093, %v4107
        %v4110 = vunpack.c.l.s4 1966171168
        %v4111 = vunpack.c.0.s8 %v4110
        %v4112 = vlaneseq
        %v4113 = vshrl.u32 %v4112, 7
        %v4114 = vsub.s32 %v4111, %v4113
        %v4115 = vrot.slane %v4094, %v4114
        %v4116 = vcombine.high %v4101, %v4101
        %v4117 = vcombine.high %v4115, %v4115
        %v4118 = vcombine.high %v3996, %v3996
        %v4120 = vunpack.c.l.s4 1966171168
        %v4121 = vunpack.c.0.s8 %v4120
        %v4122 = vlaneseq
        %v4123 = vshrl.u32 %v4122, 7
        %v4124 = vsub.s32 %v4121, %v4123
        %v4125 = vrot.slane %v3996, %v4124
        %v4127 = vunpack.c.l.s4 1966171168
        %v4128 = vunpack.c.0.s8 %v4127
        %v4129 = vlaneseq
        %v4130 = vshrl.u32 %v4129, 7
        %v4131 = vsub.s32 %v4128, %v4130
        %v4132 = vrot.slane %v4118, %v4131
        %v4133 = vcombine.high %v4125, %v4125
        %v4135 = vunpack.c.l.s4 1966171168
        %v4136 = vunpack.c.0.s8 %v4135
        %v4137 = vlaneseq
        %v4138 = vshrl.u32 %v4137, 7
        %v4139 = vsub.s32 %v4136, %v4138
        %v4140 = vrot.slane %v4125, %v4139
        %v4142 = vunpack.c.l.s4 1966171168
        %v4143 = vunpack.c.0.s8 %v4142
        %v4144 = vlaneseq
        %v4145 = vshrl.u32 %v4144, 7
        %v4146 = vsub.s32 %v4143, %v4145
        %v4147 = vrot.slane %v4132, %v4146
        %v4149 = vunpack.c.l.s4 1966171168
        %v4150 = vunpack.c.0.s8 %v4149
        %v4151 = vlaneseq
        %v4152 = vshrl.u32 %v4151, 7
        %v4153 = vsub.s32 %v4150, %v4152
        %v4154 = vrot.slane %v4133, %v4153
        %v4155 = vcombine.high %v4140, %v4140
        %v4156 = vcombine.high %v4154, %v4154
        %v4157 = vunpack.i.l.s16 %v4023
        %v4158 = vunpack.i.h.s16 %v4023
        %v4159 = vunpack.i.l.s16 %v4037
        %v4160 = vunpack.i.h.s16 %v4037
        %v4161 = vunpack.i.l.s16 %v4038
        %v4162 = vunpack.i.h.s16 %v4038
        %v4163 = vunpack.i.l.s16 %v4039
        %v4164 = vunpack.i.h.s16 %v4039
        %v4165 = vunpack.i.l.s16 %v4030
        %v4166 = vunpack.i.l.s16 %v4062
        %v4167 = vunpack.i.h.s16 %v4062
        %v4168 = vunpack.i.l.s16 %v4076
        %v4169 = vunpack.i.h.s16 %v4076
        %v4170 = vunpack.i.l.s16 %v4077
        %v4171 = vunpack.i.h.s16 %v4077
        %v4172 = vunpack.i.l.s16 %v4078
        %v4173 = vunpack.i.h.s16 %v4078
        %v4174 = vunpack.i.l.s16 %v4069
        %v4175 = vunpack.i.l.s16 %v4101
        %v4176 = vunpack.i.h.s16 %v4101
        %v4177 = vunpack.i.l.s16 %v4115
        %v4178 = vunpack.i.h.s16 %v4115
        %v4179 = vunpack.i.l.s16 %v4116
        %v4180 = vunpack.i.h.s16 %v4116
        %v4181 = vunpack.i.l.s16 %v4117
        %v4182 = vunpack.i.h.s16 %v4117
        %v4183 = vunpack.i.l.s16 %v4108
        %v4184 = vunpack.i.l.s16 %v4140
        %v4185 = vunpack.i.h.s16 %v4140
        %v4186 = vunpack.i.l.s16 %v4154
        %v4187 = vunpack.i.h.s16 %v4154
        %v4188 = vunpack.i.l.s16 %v4155
        %v4189 = vunpack.i.h.s16 %v4155
        %v4190 = vunpack.i.l.s16 %v4156
        %v4191 = vunpack.i.h.s16 %v4156
        %v4192 = vunpack.i.l.s16 %v4147
        %v4193 = vpack.i.b16 %v4158, %v4157
        %v4194 = vpack.i.b16 %v4160, %v4159
        %v4195 = vpack.i.b16 %v4162, %v4161
        %v4196 = vpack.i.b16 %v4164, %v4163
        %v4197 = vpack.i.b16 %v4166, %v4165
        %v4198 = vpack.i.b16 %v4168, %v4167
        %v4199 = vpack.i.b16 %v4170, %v4169
        %v4200 = vpack.i.b16 %v4172, %v4171
        %v4201 = vpack.i.b16 %v4174, %v4173
        %v4202 = vcombine.low %v4193, %v4194
        %v4203 = vcombine.low %v4195, %v4196
        %v4204 = vcombine.low %v4197, %v4198
        %v4205 = vcombine.low %v4199, %v4200
        %v4207 = vunpack.c.l.s4 1966171168
        %v4208 = vunpack.c.0.s8 %v4207
        %v4209 = vlaneseq
        %v4210 = vshrl.u32 %v4209, 7
        %v4211 = vsub.s32 %v4208, %v4210
        %v4212 = vrot.slane %v4202, %v4211
        %v4214 = vunpack.c.l.s4 1966171168
        %v4215 = vunpack.c.0.s8 %v4214
        %v4216 = vlaneseq
        %v4217 = vshrl.u32 %v4216, 7
        %v4218 = vsub.s32 %v4215, %v4217
        %v4219 = vrot.slane %v4203, %v4218
        %v4221 = vunpack.c.l.s4 1966171168
        %v4222 = vunpack.c.0.s8 %v4221
        %v4223 = vlaneseq
        %v4224 = vshrl.u32 %v4223, 7
        %v4225 = vsub.s32 %v4222, %v4224
        %v4226 = vrot.slane %v4204, %v4225
        %v4228 = vunpack.c.l.s4 1966171168
        %v4229 = vunpack.c.0.s8 %v4228
        %v4230 = vlaneseq
        %v4231 = vshrl.u32 %v4230, 7
        %v4232 = vsub.s32 %v4229, %v4231
        %v4233 = vrot.slane %v4205, %v4232
        %v4234 = vcombine.low %v4212, %v4219
        %v4235 = vcombine.low %v4226, %v4233
        %v4237 = vunpack.c.l.s4 1966171168
        %v4238 = vunpack.c.0.s8 %v4237
        %v4239 = vlaneseq
        %v4240 = vshrl.u32 %v4239, 7
        %v4241 = vsub.s32 %v4238, %v4240
        %v4242 = vrot.slane %v4234, %v4241
        %v4244 = vunpack.c.l.s4 1966171168
        %v4245 = vunpack.c.0.s8 %v4244
        %v4246 = vlaneseq
        %v4247 = vshrl.u32 %v4246, 7
        %v4248 = vsub.s32 %v4245, %v4247
        %v4249 = vrot.slane %v4235, %v4248
        %v4250 = vcombine.low %v4242, %v4249
        %v4252 = vunpack.c.l.s4 1966171168
        %v4253 = vunpack.c.0.s8 %v4252
        %v4254 = vlaneseq
        %v4255 = vshrl.u32 %v4254, 7
        %v4256 = vsub.s32 %v4253, %v4255
        %v4257 = vrot.slane %v4201, %v4256
        %v4259 = vunpack.c.l.s4 1966171168
        %v4260 = vunpack.c.0.s8 %v4259
        %v4261 = vlaneseq
        %v4262 = vshrl.u32 %v4261, 7
        %v4263 = vsub.s32 %v4260, %v4262
        %v4264 = vrot.slane %v4257, %v4263
        %v4267 = vpack.i.b16 %v4176, %v4175
        %v4268 = vpack.i.b16 %v4178, %v4177
        %v4269 = vpack.i.b16 %v4180, %v4179
        %v4270 = vpack.i.b16 %v4182, %v4181
        %v4271 = vpack.i.b16 %v4184, %v4183
        %v4272 = vpack.i.b16 %v4186, %v4185
        %v4273 = vpack.i.b16 %v4188, %v4187
        %v4274 = vpack.i.b16 %v4190, %v4189
        %v4275 = vpack.i.b16 %v4192, %v4191
        %v4276 = vcombine.low %v4267, %v4268
        %v4277 = vcombine.low %v4269, %v4270
        %v4278 = vcombine.low %v4271, %v4272
        %v4279 = vcombine.low %v4273, %v4274
        %v4281 = vunpack.c.l.s4 1966171168
        %v4282 = vunpack.c.0.s8 %v4281
        %v4283 = vlaneseq
        %v4284 = vshrl.u32 %v4283, 7
        %v4285 = vsub.s32 %v4282, %v4284
        %v4286 = vrot.slane %v4276, %v4285
        %v4288 = vunpack.c.l.s4 1966171168
        %v4289 = vunpack.c.0.s8 %v4288
        %v4290 = vlaneseq
        %v4291 = vshrl.u32 %v4290, 7
        %v4292 = vsub.s32 %v4289, %v4291
        %v4293 = vrot.slane %v4277, %v4292
        %v4295 = vunpack.c.l.s4 1966171168
        %v4296 = vunpack.c.0.s8 %v4295
        %v4297 = vlaneseq
        %v4298 = vshrl.u32 %v4297, 7
        %v4299 = vsub.s32 %v4296, %v4298
        %v4300 = vrot.slane %v4278, %v4299
        %v4302 = vunpack.c.l.s4 1966171168
        %v4303 = vunpack.c.0.s8 %v4302
        %v4304 = vlaneseq
        %v4305 = vshrl.u32 %v4304, 7
        %v4306 = vsub.s32 %v4303, %v4305
        %v4307 = vrot.slane %v4279, %v4306
        %v4308 = vcombine.low %v4286, %v4293
        %v4309 = vcombine.low %v4300, %v4307
        %v4311 = vunpack.c.l.s4 1966171168
        %v4312 = vunpack.c.0.s8 %v4311
        %v4313 = vlaneseq
        %v4314 = vshrl.u32 %v4313, 7
        %v4315 = vsub.s32 %v4312, %v4314
        %v4316 = vrot.slane %v4308, %v4315
        %v4318 = vunpack.c.l.s4 1966171168
        %v4319 = vunpack.c.0.s8 %v4318
        %v4320 = vlaneseq
        %v4321 = vshrl.u32 %v4320, 7
        %v4322 = vsub.s32 %v4319, %v4321
        %v4323 = vrot.slane %v4309, %v4322
        %v4324 = vcombine.low %v4316, %v4323
        %v4326 = vunpack.c.l.s4 1966171168
        %v4327 = vunpack.c.0.s8 %v4326
        %v4328 = vlaneseq
        %v4329 = vshrl.u32 %v4328, 7
        %v4330 = vsub.s32 %v4327, %v4329
        %v4331 = vrot.slane %v4275, %v4330
        %v4333 = vunpack.c.l.s4 1966171168
        %v4334 = vunpack.c.0.s8 %v4333
        %v4335 = vlaneseq
        %v4336 = vshrl.u32 %v4335, 7
        %v4337 = vsub.s32 %v4334, %v4336
        %v4338 = vrot.slane %v4331, %v4337
        %v4341 = vld [vmem:[#allocation4] sm:$0xff]
        %v4342 = vld [vmem:[#allocation4 + $0x8] sm:$0xff]
        %v4343 = vld [vmem:[#allocation4 + $0x10] sm:$0xff]
        %v4344 = vld [vmem:[#allocation4 + $0x18] sm:$0xff]
        %v4345 = vld [vmem:[#allocation4 + $0x20] sm:$0xff]
        %v4346 = vld [vmem:[#allocation4 + $0x28] sm:$0xff]
        %v4347 = vld [vmem:[#allocation4 + $0x30] sm:$0xff]
        %v4348 = vld [vmem:[#allocation4 + $0x38] sm:$0xff]
        %v4349 = vld [vmem:[#allocation4 + $0x40] sm:$0xff]
        %v4350 = vld [vmem:[#allocation4 + $0x48] sm:$0xff]
        %v4351 = vld [vmem:[#allocation4 + $0x50] sm:$0xff]
        %v4352 = vld [vmem:[#allocation4 + $0x58] sm:$0xff]
        %v4353 = vld [vmem:[#allocation4 + $0x60] sm:$0xff]
        %v4354 = vld [vmem:[#allocation4 + $0x68] sm:$0xff]
        %v4355 = vld [vmem:[#allocation4 + $0x70] sm:$0xff]
        %v4356 = vld [vmem:[#allocation4 + $0x78] sm:$0xff]
        %v4357 = vld [vmem:[#allocation4 + $0x80] sm:$0xff]
        %v4358 = vld [vmem:[#allocation4 + $0x88] sm:$0xff]
        %v4359 = vld [vmem:[#allocation4 + $0x90] sm:$0xff]
        %v4360 = vld [vmem:[#allocation4 + $0x98] sm:$0xff]
        %v4361 = vld [vmem:[#allocation4 + $0xa0] sm:$0xff]
        %v4362 = vld [vmem:[#allocation4 + $0xa8] sm:$0xff]
        %v4363 = vld [vmem:[#allocation4 + $0xb0] sm:$0xff]
        %v4364 = vld [vmem:[#allocation4 + $0xb8] sm:$0xff]
        %v4365 = vld [vmem:[#allocation4 + $0xc0] sm:$0xff]
        %v4366 = vld [vmem:[#allocation4 + $0xc8] sm:$0xff]
        %v4367 = vld [vmem:[#allocation4 + $0xd0] sm:$0xff]
        %v4368 = vld [vmem:[#allocation4 + $0xd8] sm:$0xff]
        %v4369 = vld [vmem:[#allocation4 + $0xe0] sm:$0xff]
        %v4370 = vld [vmem:[#allocation4 + $0xe8] sm:$0xff]
        %v4371 = vld [vmem:[#allocation4 + $0xf0] sm:$0xff]
        %v4372 = vld [vmem:[#allocation4 + $0xf8] sm:$0xff]
        %v4373 = vld [vmem:[%s6] sm:$0x3]
        %v4375 = vlaneseq
        %v4376 = vshrl.u32 %v4375, 7
        %v4377 = vsub.s32 0, %v4376
        %v4378 = vrot.slane %v4373, %v4377
        %v4379 = vlaneseq
        %v4380 = vshrl.u32 %v4379, 7
        %v4381 = vsub.s32 1, %v4380
        %v4382 = vrot.slane %v4373, %v4381
        %v4417 = vunpack.c.l.b16 %v4341
        %v4418 = vunpack.c.h.b16 %v4341
        %v4419 = vunpack.c.l.b16 %v4342
        %v4420 = vunpack.c.h.b16 %v4342
        %v4421 = vunpack.c.l.b16 %v4343
        %v4422 = vunpack.c.h.b16 %v4343
        %v4423 = vunpack.c.l.b16 %v4344
        %v4424 = vunpack.c.h.b16 %v4344
        %v4425 = vunpack.c.l.b16 %v4345
        %v4426 = vunpack.c.h.b16 %v4345
        %v4427 = vunpack.c.l.b16 %v4346
        %v4428 = vunpack.c.h.b16 %v4346
        %v4429 = vunpack.c.l.b16 %v4347
        %v4430 = vunpack.c.h.b16 %v4347
        %v4431 = vunpack.c.l.b16 %v4348
        %v4432 = vunpack.c.h.b16 %v4348
        %v4433 = vunpack.c.l.b16 %v4349
        %v4434 = vunpack.c.h.b16 %v4349
        %v4435 = vunpack.c.l.b16 %v4350
        %v4436 = vunpack.c.h.b16 %v4350
        %v4437 = vunpack.c.l.b16 %v4351
        %v4438 = vunpack.c.h.b16 %v4351
        %v4439 = vunpack.c.l.b16 %v4352
        %v4440 = vunpack.c.h.b16 %v4352
        %v4441 = vunpack.c.l.b16 %v4353
        %v4442 = vunpack.c.h.b16 %v4353
        %v4443 = vunpack.c.l.b16 %v4354
        %v4444 = vunpack.c.h.b16 %v4354
        %v4445 = vunpack.c.l.b16 %v4355
        %v4446 = vunpack.c.h.b16 %v4355
        %v4447 = vunpack.c.l.b16 %v4356
        %v4448 = vunpack.c.h.b16 %v4356
        %v4449 = vunpack.c.l.b16 %v4357
        %v4450 = vunpack.c.h.b16 %v4357
        %v4451 = vunpack.c.l.b16 %v4358
        %v4452 = vunpack.c.h.b16 %v4358
        %v4453 = vunpack.c.l.b16 %v4359
        %v4454 = vunpack.c.h.b16 %v4359
        %v4455 = vunpack.c.l.b16 %v4360
        %v4456 = vunpack.c.h.b16 %v4360
        %v4457 = vunpack.c.l.b16 %v4361
        %v4458 = vunpack.c.h.b16 %v4361
        %v4459 = vunpack.c.l.b16 %v4362
        %v4460 = vunpack.c.h.b16 %v4362
        %v4461 = vunpack.c.l.b16 %v4363
        %v4462 = vunpack.c.h.b16 %v4363
        %v4463 = vunpack.c.l.b16 %v4364
        %v4464 = vunpack.c.h.b16 %v4364
        %v4465 = vunpack.c.l.b16 %v4365
        %v4466 = vunpack.c.h.b16 %v4365
        %v4467 = vunpack.c.l.b16 %v4366
        %v4468 = vunpack.c.h.b16 %v4366
        %v4469 = vunpack.c.l.b16 %v4367
        %v4470 = vunpack.c.h.b16 %v4367
        %v4471 = vunpack.c.l.b16 %v4368
        %v4472 = vunpack.c.h.b16 %v4368
        %v4473 = vunpack.c.l.b16 %v4369
        %v4474 = vunpack.c.h.b16 %v4369
        %v4475 = vunpack.c.l.b16 %v4370
        %v4476 = vunpack.c.h.b16 %v4370
        %v4477 = vunpack.c.l.b16 %v4371
        %v4478 = vunpack.c.h.b16 %v4371
        %v4479 = vunpack.c.l.b16 %v4372
        %v4480 = vunpack.c.h.b16 %v4372
        %v4481 = vpack.c.b16 %v4419, %v4417
        %v4482 = vpack.c.b16 %v4420, %v4418
        %v4483 = vpack.c.b16 %v4423, %v4421
        %v4484 = vpack.c.b16 %v4424, %v4422
        %v4485 = vpack.c.b16 %v4427, %v4425
        %v4486 = vpack.c.b16 %v4428, %v4426
        %v4487 = vpack.c.b16 %v4431, %v4429
        %v4488 = vpack.c.b16 %v4432, %v4430
        %v4489 = vpack.c.b16 %v4435, %v4433
        %v4490 = vpack.c.b16 %v4436, %v4434
        %v4491 = vpack.c.b16 %v4439, %v4437
        %v4492 = vpack.c.b16 %v4440, %v4438
        %v4493 = vpack.c.b16 %v4443, %v4441
        %v4494 = vpack.c.b16 %v4444, %v4442
        %v4495 = vpack.c.b16 %v4447, %v4445
        %v4496 = vpack.c.b16 %v4448, %v4446
        %v4497 = vpack.c.b16 %v4451, %v4449
        %v4498 = vpack.c.b16 %v4452, %v4450
        %v4499 = vpack.c.b16 %v4455, %v4453
        %v4500 = vpack.c.b16 %v4456, %v4454
        %v4501 = vpack.c.b16 %v4459, %v4457
        %v4502 = vpack.c.b16 %v4460, %v4458
        %v4503 = vpack.c.b16 %v4463, %v4461
        %v4504 = vpack.c.b16 %v4464, %v4462
        %v4505 = vpack.c.b16 %v4467, %v4465
        %v4506 = vpack.c.b16 %v4468, %v4466
        %v4507 = vpack.c.b16 %v4471, %v4469
        %v4508 = vpack.c.b16 %v4472, %v4470
        %v4509 = vpack.c.b16 %v4475, %v4473
        %v4510 = vpack.c.b16 %v4476, %v4474
        %v4511 = vpack.c.b16 %v4479, %v4477
        %v4512 = vpack.c.b16 %v4480, %v4478
        %4545 = vmatprep.subr.bf16.mxu0 %v4496
        %4546 = vmatpush1.bf16.msra.mxu0 %v4495
        %4547 = vmatprep.subr.bf16.mxu0 %v4494
        %4548 = vmatpush1.bf16.msra.mxu0 %v4493
        %4549 = vmatprep.subr.bf16.mxu0 %v4492
        %4550 = vmatpush1.bf16.msra.mxu0 %v4491
        %4551 = vmatprep.subr.bf16.mxu0 %v4490
        %4552 = vmatpush1.bf16.msra.mxu0 %v4489
        %4553 = vmatprep.subr.bf16.mxu0 %v4488
        %4554 = vmatpush1.bf16.msra.mxu0 %v4487
        %4555 = vmatprep.subr.bf16.mxu0 %v4486
        %4556 = vmatpush1.bf16.msra.mxu0 %v4485
        %4557 = vmatprep.subr.bf16.mxu0 %v4484
        %4558 = vmatpush1.bf16.msra.mxu0 %v4483
        %4559 = vmatprep.subr.bf16.mxu0 %v4482
        %4560 = vmatpush1.bf16.msra.mxu0 %v4481
        %4561 = vmatprep.subr.bf16.mxu0 %v4512
        %4562 = vmatpush2.bf16.msra.mxu0 %v4511
        %4563 = vmatprep.subr.bf16.mxu0 %v4510
        %4564 = vmatpush2.bf16.msra.mxu0 %v4509
        %4565 = vmatprep.subr.bf16.mxu0 %v4508
        %4566 = vmatpush2.bf16.msra.mxu0 %v4507
        %4567 = vmatprep.subr.bf16.mxu0 %v4506
        %4568 = vmatpush2.bf16.msra.mxu0 %v4505
        %4569 = vmatprep.subr.bf16.mxu0 %v4504
        %4570 = vmatpush2.bf16.msra.mxu0 %v4503
        %4571 = vmatprep.subr.bf16.mxu0 %v4502
        %4572 = vmatpush2.bf16.msra.mxu0 %v4501
        %4573 = vmatprep.subr.bf16.mxu0 %v4500
        %4574 = vmatpush2.bf16.msra.mxu0 %v4499
        %4575 = vmatprep.subr.bf16.mxu0 %v4498
        %4576 = vmatpush2.bf16.msra.mxu0 %v4497
        %4577 = vmatprep.mubr.bf16.mxu0 %v4324
        %4578 = vmatmul.mubr.bf16.gmra.mxu0 %v4250
        %v4579 = vpop.f32.mrf.mxu0
        %v4580 = vadd.f32 %v4378, %v4579
        %v4581 = vpop.f32.mrf.mxu0
        %v4582 = vadd.f32 %v4382, %v4581
        %v4583 = vpop.f32.mrf.mxu0
        %v4584 = vadd.f32 %v4378, %v4583
        %v4585 = vpop.f32.mrf.mxu0
        %v4586 = vadd.f32 %v4382, %v4585
        %4587 = vmatprep.mubr.bf16.mxu0 %v4338
        %4588 = vmatmul.mubr.bf16.gmra.mxu0 %v4264
        %v4589 = vpop.f32.mrf.mxu0
        %v4590 = vadd.f32 %v4378, %v4589
        %v4591 = vpop.f32.mrf.mxu0
        %v4592 = vadd.f32 %v4382, %v4591
        %v4593 = vpop.f32.mrf.mxu0
        %v4594 = vpop.f32.mrf.mxu0
        %4595 = vdwg.mxu0
        %v4602 = vcombine.low %v4580, %v4582
        %v4603 = vcombine.high %v4580, %v4582
        %v4605 = vunpack.c.l.s4 1966171168
        %v4606 = vunpack.c.0.s8 %v4605
        %v4607 = vlaneseq
        %v4608 = vshrl.u32 %v4607, 7
        %v4609 = vsub.s32 %v4606, %v4608
        %v4610 = vrot.slane %v4602, %v4609
        %v4612 = vunpack.c.l.s4 1966171168
        %v4613 = vunpack.c.0.s8 %v4612
        %v4614 = vlaneseq
        %v4615 = vshrl.u32 %v4614, 7
        %v4616 = vsub.s32 %v4613, %v4615
        %v4617 = vrot.slane %v4603, %v4616
        %v4618 = vcombine.high %v4610, %v4610
        %v4619 = vcombine.high %v4617, %v4617
        %v4621 = vunpack.c.l.s4 1966171168
        %v4622 = vunpack.c.0.s8 %v4621
        %v4623 = vlaneseq
        %v4624 = vshrl.u32 %v4623, 7
        %v4625 = vsub.s32 %v4622, %v4624
        %v4626 = vrot.slane %v4610, %v4625
        %v4628 = vunpack.c.l.s4 1966171168
        %v4629 = vunpack.c.0.s8 %v4628
        %v4630 = vlaneseq
        %v4631 = vshrl.u32 %v4630, 7
        %v4632 = vsub.s32 %v4629, %v4631
        %v4633 = vrot.slane %v4617, %v4632
        %v4635 = vunpack.c.l.s4 1966171168
        %v4636 = vunpack.c.0.s8 %v4635
        %v4637 = vlaneseq
        %v4638 = vshrl.u32 %v4637, 7
        %v4639 = vsub.s32 %v4636, %v4638
        %v4640 = vrot.slane %v4618, %v4639
        %v4642 = vunpack.c.l.s4 1966171168
        %v4643 = vunpack.c.0.s8 %v4642
        %v4644 = vlaneseq
        %v4645 = vshrl.u32 %v4644, 7
        %v4646 = vsub.s32 %v4643, %v4645
        %v4647 = vrot.slane %v4619, %v4646
        %v4648 = vcombine.high %v4626, %v4626
        %v4649 = vcombine.high %v4633, %v4633
        %v4650 = vcombine.high %v4640, %v4640
        %v4651 = vcombine.high %v4647, %v4647
        %v4652 = vcombine.low %v4584, %v4586
        %v4653 = vcombine.high %v4584, %v4586
        %v4655 = vunpack.c.l.s4 1966171168
        %v4656 = vunpack.c.0.s8 %v4655
        %v4657 = vlaneseq
        %v4658 = vshrl.u32 %v4657, 7
        %v4659 = vsub.s32 %v4656, %v4658
        %v4660 = vrot.slane %v4652, %v4659
        %v4662 = vunpack.c.l.s4 1966171168
        %v4663 = vunpack.c.0.s8 %v4662
        %v4664 = vlaneseq
        %v4665 = vshrl.u32 %v4664, 7
        %v4666 = vsub.s32 %v4663, %v4665
        %v4667 = vrot.slane %v4653, %v4666
        %v4668 = vcombine.high %v4660, %v4660
        %v4669 = vcombine.high %v4667, %v4667
        %v4671 = vunpack.c.l.s4 1966171168
        %v4672 = vunpack.c.0.s8 %v4671
        %v4673 = vlaneseq
        %v4674 = vshrl.u32 %v4673, 7
        %v4675 = vsub.s32 %v4672, %v4674
        %v4676 = vrot.slane %v4660, %v4675
        %v4678 = vunpack.c.l.s4 1966171168
        %v4679 = vunpack.c.0.s8 %v4678
        %v4680 = vlaneseq
        %v4681 = vshrl.u32 %v4680, 7
        %v4682 = vsub.s32 %v4679, %v4681
        %v4683 = vrot.slane %v4667, %v4682
        %v4685 = vunpack.c.l.s4 1966171168
        %v4686 = vunpack.c.0.s8 %v4685
        %v4687 = vlaneseq
        %v4688 = vshrl.u32 %v4687, 7
        %v4689 = vsub.s32 %v4686, %v4688
        %v4690 = vrot.slane %v4668, %v4689
        %v4692 = vunpack.c.l.s4 1966171168
        %v4693 = vunpack.c.0.s8 %v4692
        %v4694 = vlaneseq
        %v4695 = vshrl.u32 %v4694, 7
        %v4696 = vsub.s32 %v4693, %v4695
        %v4697 = vrot.slane %v4669, %v4696
        %v4698 = vcombine.high %v4676, %v4676
        %v4699 = vcombine.high %v4683, %v4683
        %v4700 = vcombine.high %v4690, %v4690
        %v4701 = vcombine.high %v4697, %v4697
        %v4702 = vcombine.low %v4590, %v4592
        %v4704 = vunpack.c.l.s4 1966171168
        %v4705 = vunpack.c.0.s8 %v4704
        %v4706 = vlaneseq
        %v4707 = vshrl.u32 %v4706, 7
        %v4708 = vsub.s32 %v4705, %v4707
        %v4709 = vrot.slane %v4702, %v4708
        %v4710 = vcombine.high %v4709, %v4709
        %v4712 = vunpack.c.l.s4 1966171168
        %v4713 = vunpack.c.0.s8 %v4712
        %v4714 = vlaneseq
        %v4715 = vshrl.u32 %v4714, 7
        %v4716 = vsub.s32 %v4713, %v4715
        %v4717 = vrot.slane %v4709, %v4716
        %v4719 = vunpack.c.l.s4 1966171168
        %v4720 = vunpack.c.0.s8 %v4719
        %v4721 = vlaneseq
        %v4722 = vshrl.u32 %v4721, 7
        %v4723 = vsub.s32 %v4720, %v4722
        %v4724 = vrot.slane %v4710, %v4723
        %v4725 = vlaneseq
        %v4726 = vshrl.u32 %v4725, 7
        %v4727 = vsub.s32 0, %v4726
        %v4728 = vrot.slane %v4626, %v4727
        %v4729 = vlaneseq
        %v4730 = vshrl.u32 %v4729, 7
        %v4731 = vsub.s32 1, %v4730
        %v4732 = vrot.slane %v4626, %v4731
        %v4733 = vlaneseq
        %v4734 = vshrl.u32 %v4733, 7
        %v4735 = vsub.s32 0, %v4734
        %v4736 = vrot.slane %v4690, %v4735
        %v4737 = vlaneseq
        %v4738 = vshrl.u32 %v4737, 7
        %v4739 = vsub.s32 1, %v4738
        %v4740 = vrot.slane %v4690, %v4739
        %v4745 = vsel %vm366, %v4728, 0.0
        %v4746 = vsel %vm366, %v4736, 0.0
        %v4747 = vadd.f32 %v4745, %v4746
        %v4748 = vsel %vm366, %v4732, 0.0
        %v4749 = vsel %vm366, %v4740, 0.0
        %v4750 = vadd.f32 %v4748, %v4749
        %v4751 = vrcp.pop 2.0
        %v4752 = vmul.f32 %v4747, %v4751
        %v4753 = vmul.f32 %v4750, %v4751
        %v4754 = vcombine.low %v4640, %v4640
        %v4755 = vcombine.low %v4698, %v4648
        %v4756 = vcombine.low %v4700, %v4650
        %v4757 = vcombine.low %v4683, %v4633
        %v4759 = vunpack.c.l.s4 1966171168
        %v4760 = vunpack.c.0.s8 %v4759
        %v4761 = vlaneseq
        %v4762 = vshrl.u32 %v4761, 7
        %v4763 = vsub.s32 %v4760, %v4762
        %v4764 = vrot.slane %v4754, %v4763
        %v4766 = vunpack.c.l.s4 1966171168
        %v4767 = vunpack.c.0.s8 %v4766
        %v4768 = vlaneseq
        %v4769 = vshrl.u32 %v4768, 7
        %v4770 = vsub.s32 %v4767, %v4769
        %v4771 = vrot.slane %v4755, %v4770
        %v4773 = vunpack.c.l.s4 1966171168
        %v4774 = vunpack.c.0.s8 %v4773
        %v4775 = vlaneseq
        %v4776 = vshrl.u32 %v4775, 7
        %v4777 = vsub.s32 %v4774, %v4776
        %v4778 = vrot.slane %v4756, %v4777
        %v4780 = vunpack.c.l.s4 1966171168
        %v4781 = vunpack.c.0.s8 %v4780
        %v4782 = vlaneseq
        %v4783 = vshrl.u32 %v4782, 7
        %v4784 = vsub.s32 %v4781, %v4783
        %v4785 = vrot.slane %v4757, %v4784
        %v4786 = vcombine.low %v4764, %v4771
        %v4787 = vcombine.high %v4764, %v4771
        %v4788 = vcombine.low %v4778, %v4785
        %v4789 = vcombine.high %v4778, %v4785
        %v4791 = vunpack.c.l.s4 1966171168
        %v4792 = vunpack.c.0.s8 %v4791
        %v4793 = vlaneseq
        %v4794 = vshrl.u32 %v4793, 7
        %v4795 = vsub.s32 %v4792, %v4794
        %v4796 = vrot.slane %v4786, %v4795
        %v4798 = vunpack.c.l.s4 1966171168
        %v4799 = vunpack.c.0.s8 %v4798
        %v4800 = vlaneseq
        %v4801 = vshrl.u32 %v4800, 7
        %v4802 = vsub.s32 %v4799, %v4801
        %v4803 = vrot.slane %v4787, %v4802
        %v4805 = vunpack.c.l.s4 1966171168
        %v4806 = vunpack.c.0.s8 %v4805
        %v4807 = vlaneseq
        %v4808 = vshrl.u32 %v4807, 7
        %v4809 = vsub.s32 %v4806, %v4808
        %v4810 = vrot.slane %v4788, %v4809
        %v4812 = vunpack.c.l.s4 1966171168
        %v4813 = vunpack.c.0.s8 %v4812
        %v4814 = vlaneseq
        %v4815 = vshrl.u32 %v4814, 7
        %v4816 = vsub.s32 %v4813, %v4815
        %v4817 = vrot.slane %v4789, %v4816
        %v4818 = vcombine.low %v4796, %v4810
        %v4819 = vcombine.low %v4803, %v4817
        %v4820 = vcombine.low %v4697, %v4647
        %v4821 = vcombine.low %v4699, %v4649
        %v4822 = vcombine.low %v4701, %v4651
        %v4823 = vcombine.low %v4717, %v4676
        %v4825 = vunpack.c.l.s4 1966171168
        %v4826 = vunpack.c.0.s8 %v4825
        %v4827 = vlaneseq
        %v4828 = vshrl.u32 %v4827, 7
        %v4829 = vsub.s32 %v4826, %v4828
        %v4830 = vrot.slane %v4820, %v4829
        %v4832 = vunpack.c.l.s4 1966171168
        %v4833 = vunpack.c.0.s8 %v4832
        %v4834 = vlaneseq
        %v4835 = vshrl.u32 %v4834, 7
        %v4836 = vsub.s32 %v4833, %v4835
        %v4837 = vrot.slane %v4821, %v4836
        %v4839 = vunpack.c.l.s4 1966171168
        %v4840 = vunpack.c.0.s8 %v4839
        %v4841 = vlaneseq
        %v4842 = vshrl.u32 %v4841, 7
        %v4843 = vsub.s32 %v4840, %v4842
        %v4844 = vrot.slane %v4822, %v4843
        %v4846 = vunpack.c.l.s4 1966171168
        %v4847 = vunpack.c.0.s8 %v4846
        %v4848 = vlaneseq
        %v4849 = vshrl.u32 %v4848, 7
        %v4850 = vsub.s32 %v4847, %v4849
        %v4851 = vrot.slane %v4823, %v4850
        %v4852 = vcombine.low %v4830, %v4837
        %v4853 = vcombine.high %v4830, %v4837
        %v4854 = vcombine.low %v4844, %v4851
        %v4855 = vcombine.high %v4844, %v4851
        %v4857 = vunpack.c.l.s4 1966171168
        %v4858 = vunpack.c.0.s8 %v4857
        %v4859 = vlaneseq
        %v4860 = vshrl.u32 %v4859, 7
        %v4861 = vsub.s32 %v4858, %v4860
        %v4862 = vrot.slane %v4852, %v4861
        %v4864 = vunpack.c.l.s4 1966171168
        %v4865 = vunpack.c.0.s8 %v4864
        %v4866 = vlaneseq
        %v4867 = vshrl.u32 %v4866, 7
        %v4868 = vsub.s32 %v4865, %v4867
        %v4869 = vrot.slane %v4853, %v4868
        %v4871 = vunpack.c.l.s4 1966171168
        %v4872 = vunpack.c.0.s8 %v4871
        %v4873 = vlaneseq
        %v4874 = vshrl.u32 %v4873, 7
        %v4875 = vsub.s32 %v4872, %v4874
        %v4876 = vrot.slane %v4854, %v4875
        %v4878 = vunpack.c.l.s4 1966171168
        %v4879 = vunpack.c.0.s8 %v4878
        %v4880 = vlaneseq
        %v4881 = vshrl.u32 %v4880, 7
        %v4882 = vsub.s32 %v4879, %v4881
        %v4883 = vrot.slane %v4855, %v4882
        %v4884 = vcombine.low %v4862, %v4876
        %v4885 = vcombine.low %v4869, %v4883
        %v4887 = vunpack.c.l.s4 1966171168
        %v4888 = vunpack.c.0.s8 %v4887
        %v4889 = vlaneseq
        %v4890 = vshrl.u32 %v4889, 7
        %v4891 = vsub.s32 %v4888, %v4890
        %v4892 = vrot.slane %v4724, %v4891
        %v4893 = vcombine.high %v4892, %v4892
        %v4895 = vunpack.c.l.s4 1966171168
        %v4896 = vunpack.c.0.s8 %v4895
        %v4897 = vlaneseq
        %v4898 = vshrl.u32 %v4897, 7
        %v4899 = vsub.s32 %v4896, %v4898
        %v4900 = vrot.slane %v4892, %v4899
        %v4902 = vunpack.c.l.s4 1966171168
        %v4903 = vunpack.c.0.s8 %v4902
        %v4904 = vlaneseq
        %v4905 = vshrl.u32 %v4904, 7
        %v4906 = vsub.s32 %v4903, %v4905
        %v4907 = vrot.slane %v4893, %v4906
        %v4914 = vsel %vm366, %v4752, %v4818
        %v4915 = vsel %vm366, %v4753, %v4819
        %v4916 = vpack.c.bf16 %v4884, %v4914
        %v4917 = vpack.c.bf16 %v4885, %v4915
        %v4918 = vpack.c.bf16 %v4900, %v4900
        %v4919 = vpack.c.bf16 %v4907, %v4907
        %v4924 = vunpack.c.l.b16 %v4916
        %v4925 = vunpack.c.l.b16 %v4917
        %v4926 = vunpack.c.h.b16 %v4916
        %v4927 = vunpack.c.h.b16 %v4917
        %v4928 = vunpack.c.l.b16 %v4918
        %v4929 = vunpack.c.l.b16 %v4919
        %v4930 = vpack.c.b16 %v4925, %v4924
        %v4931 = vpack.c.b16 %v4927, %v4926
        %v4932 = vpack.c.b16 %v4929, %v4928
        %4936 = vst [vmem:[%s308] sm:$0xff] %v4930
        %4937 = vst [vmem:[%s308 + $0x8] sm:$0xff] %v4931
        %vm4938 = vcmask 1040384
        %vm4939 = vsmask.f32 256
        %vm4940 = vmand %vm4938, %vm4939
        %vm4941 = vcmask 1044484
        %vm4942 = vsmask.f32 4352
        %vm4943 = vmand %vm4941, %vm4942
        %vm4944 = vmor %vm4943, %vm4940
        %v4945 = vld [vmem:[%s308 + $0x10] sm:$0x11]
        %v4946 = vsel %vm4944, %v4932, %v4945
        %4947 = vst [vmem:[%s308 + $0x10] sm:$0x11] %v4946
        %p4948 = scmp.lt.s32.totalorder %s20, 1
        %s4949 = scalar_select %p4948, %s20, 1
        %s4950 = smul.addr %s4949, 6
        %s4951 = smul.addr %s4950, 4
        %s4952 = scalar_lea.vmem %s7, %s4951
        // Predicated region
        $region57: #{clip_layer_spatial.2} parent=47 // pred_check
          %p4953 = pneg %p190
        $region58: #{clip_layer_spatial.2} parent=47 // pred_check_branch
          %4955 = sbr.rel (%p4953) target = $region60
        $region59: #{clip_layer_spatial.2} parent=47 // pred_region
          _
        $region60: #{clip_layer_spatial.2} parent=47 // pred_fallthru
          _
      $region48: #{clip_layer_spatial.2} parent=5 // pred_fallthru
        _
      %p4956 = scmp.le.s32.totalorder 2, %s15
      // Predicated region
      $region61: #{clip_layer_spatial.2} parent=5 // pred_check
        %p4957 = pneg %p4956
      $region62: #{clip_layer_spatial.2} parent=5 // pred_check_branch
        %4959 = sbr.rel (%p4957) target = $region64
      $region63: #{clip_layer_spatial.2} parent=5 // pred_region
        %s4960 = ssub.s32 %s15, 2
        // Predicated region
        $region65: #{clip_layer_spatial.2} parent=63 // pred_check
          %p4961 = pneg %p196
        $region66: #{clip_layer_spatial.2} parent=63 // pred_check_branch
          %4963 = sbr.rel (%p4961) target = $region68
        $region67: #{clip_layer_spatial.2} parent=63 // pred_region
          %p4964 = scmp.lt.s32.totalorder %s21, 1
          %s4965 = scalar_select %p4964, %s21, 1
          %s4966 = smul.addr %s4965, 6
          %s4967 = smul.addr %s4966, 4
          %s4968 = scalar_lea.vmem %s7, %s4967
        $region68: #{clip_layer_spatial.2} parent=63 // pred_fallthru
          _
      $region64: #{clip_layer_spatial.2} parent=5 // pred_fallthru
        _
    $region6: #{clip_layer_spatial.2} parent=1 // loop_footer
      %s19 = sadd.s32 1, %s15
    $region7: #{clip_layer_spatial.2} parent=1 // loop_footer_branch
      %14 = sbr.rel target = $region3
    $region8: #{clip_layer_spatial.2} parent=1 // loop_exit
      _
    %4969 = vsyncpa [#allocation3], 1
    %s4970 = scalar_lea.sflag [#allocation3], 1
    %4971 = vsyncpa %s4970, 1
    %4972 = vsyncpa [#allocation5], 1

</llo_original>
